<compile_context>
chip_gen: v7x
topology: tpu7x:2x2x1
jax: 0.10.0
libtpu: 0.0.40
codegen_flags: <defaults>
</compile_context>

<pallas_src>
import math
import numpy as np
import jax
import jax.numpy as jnp
from jax.experimental import pallas as pl
from jax.experimental.pallas import tpu as pltpu

# ---------------- config (mirrors EncoderLayer(config, use_rope=True)) ----------------
EMBED_DIM = 32
NUM_HEAD = 4
HEAD_DIM = EMBED_DIM // NUM_HEAD
HIDDEN_DIM = 64            # config.hidden_dim
SEQ = 8                    # T
BATCH = 2                  # N*A
EPS = 1.1920928955078125e-07   # torch.finfo(float32).eps (nn.RMSNorm eps=None default)

assert HEAD_DIM % 2 == 0 and NUM_HEAD * HEAD_DIM == EMBED_DIM  # RoPE pair-swap guard


# ---------------- Pallas kernel: one fused batch block per grid step ----------------
def encoder_layer_kernel(x_ref, cos_ref, sin_ref,
                         wq_ref, wk_ref, wv_ref, bqkv_ref,
                         ssel_ref, sswp_ref, woh_ref, bo_ref, g_ref,
                         w1g_ref, w1u_ref, b1_ref, w2_ref, b2_ref,
                         o_ref):
    B, T, D = x_ref.shape
    H, hd = NUM_HEAD, HEAD_DIM
    M = B * T
    bf16 = jnp.bfloat16

    x = x_ref[...].reshape(M, D)                                   # (M, D) f32

    # ---- RMSNorm1 ----
    nx = x * jax.lax.rsqrt(jnp.mean(x * x, axis=-1, keepdims=True) + EPS) * g_ref[0]
    nx_bf = nx.astype(bf16)

    # ---- Q/K/V projections from pre-split weight slabs (no lane slicing of a fused
    #      (M, 3D) result).  bf16 operands, f32 accumulation on the MXU. ----
    q = jnp.dot(nx_bf, wq_ref[...], preferred_element_type=jnp.float32) + bqkv_ref[0]
    k = jnp.dot(nx_bf, wk_ref[...], preferred_element_type=jnp.float32) + bqkv_ref[1]
    v = jnp.dot(nx_bf, wv_ref[...], preferred_element_type=jnp.float32) + bqkv_ref[2]

    # ---- RoPE tables broadcast over the batch block in-kernel: tables stay (T, D),
    #      no batch_block-times duplicated HBM/VMEM traffic. ----
    cos = cos_ref[...]                                             # (T, D)
    sin = sin_ref[...]
    if B > 1:
        cos = jnp.concatenate([cos] * B, axis=0)                   # (M, D)
        sin = jnp.concatenate([sin] * B, axis=0)

    # ---- RoPE + head split fused into batched selection matmuls.
    #      ssel[h] selects head h's lanes; sswp[h] additionally applies the
    #      interleaved pair swap (with the RoPE minus sign), so
    #      head_h(rope(t)) = (t*cos) @ ssel[h] + (t*sin) @ sswp[h].
    #      Heads land directly on the leading (batch) axis: no pltpu.roll, no lane
    #      slices, no concatenates. ----
    ssel = ssel_ref[...]                                           # (H, D, hd) bf16
    sswp = sswp_ref[...]

    def split_heads_rope(t):
        tc = jnp.broadcast_to((t * cos).astype(bf16)[None], (H, M, D))
        ts = jnp.broadcast_to((t * sin).astype(bf16)[None], (H, M, D))
        th = (jnp.einsum('hmd,hdk->hmk', tc, ssel,
                         preferred_element_type=jnp.float32)
              + jnp.einsum('hmd,hdk->hmk', ts, sswp,
                           preferred_element_type=jnp.float32))    # (H, M, hd)
        return th.reshape(H * B, T, hd)

    def split_heads(t):
        tb = jnp.broadcast_to(t.astype(bf16)[None], (H, M, D))
        th = jnp.einsum('hmd,hdk->hmk', tb, ssel,
                        preferred_element_type=jnp.float32)
        return th.reshape(H * B, T, hd)

    scale = 1.0 / math.sqrt(float(hd))
    qh = split_heads_rope(q) * scale                               # (H*B, T, hd)
    kh = split_heads_rope(k)
    vh = split_heads(v)

    # ---- attention over the fused (head, batch) leading dim ----
    s = jnp.einsum('nik,njk->nij', qh.astype(bf16), kh.astype(bf16),
                   preferred_element_type=jnp.float32)             # (H*B, T, T)
    s = s - jnp.max(s, axis=-1, keepdims=True)
    p = jnp.exp(s)
    # approx EUP reciprocal: fine for inference, documented tolerance relaxation.
    p = p * pl.reciprocal(jnp.sum(p, axis=-1, keepdims=True), approx=True)
    ob = jnp.einsum('nij,njk->nik', p.astype(bf16), vh.astype(bf16),
                    preferred_element_type=jnp.float32)            # (H*B, T, hd)

    # ---- head merge folded into the output projection: per-head wo slabs, then a
    #      cheap add over the (major) head axis — no lane concatenate. ----
    obh = ob.reshape(H, M, hd).astype(bf16)
    partial = jnp.einsum('hmk,hke->hme', obh, woh_ref[...],
                         preferred_element_type=jnp.float32)       # (H, M, D)
    attn = partial[0]
    for hh in range(1, H):
        attn = attn + partial[hh]
    x = x + attn + bo_ref[0]

    # ---- RMSNorm2 + SwiGLU (gate/up weights pre-split) + residual ----
    nx2 = x * jax.lax.rsqrt(jnp.mean(x * x, axis=-1, keepdims=True) + EPS) * g_ref[1]
    nx2_bf = nx2.astype(bf16)
    h1 = jnp.dot(nx2_bf, w1g_ref[...], preferred_element_type=jnp.float32) + b1_ref[0]
    h2 = jnp.dot(nx2_bf, w1u_ref[...], preferred_element_type=jnp.float32) + b1_ref[1]
    gated = h1 * jax.nn.sigmoid(h1) * h2                           # SiLU(x1) * x2, f32
    mlp = jnp.dot(gated.astype(bf16), w2_ref[...],
                  preferred_element_type=jnp.float32) + b2_ref[0]

    o_ref[...] = (x + mlp).reshape(B, T, D)


def _const_spec(shape):
    nd = len(shape)
    return pl.BlockSpec(shape, lambda n, _nd=nd: (0,) * _nd)


def encoder_layer(x, kp, batch_block=None):
    """x: (N, T, D) float32, kp: prepare_kernel_params(...) dict.

    batch_block: batch elements fused per grid step.  Default picks the largest
    divisor of N that still gives >= 2 grid steps (v7x has 2 TensorCores and the
    pipeliner needs >= 2 steps to overlap DMA with compute).  For production shapes
    aim for batch_block*T >= 128 rows (v5e) / 256 rows (v6e, v7x) per step, and on
    v7x budget VMEM explicitly (64 MiB physical, 32 MiB scoped default): halve a
    v6e-tuned block or raise vmem_limit_bytes via pltpu.CompilerParams.
    """
    N, T, D = x.shape
    if batch_block is None:
        batch_block = N
        for cand in range(N, 0, -1):
            if N % cand == 0 and N // cand >= 2:
                batch_block = cand
                break
    assert N % batch_block == 0
    grid = (N // batch_block,)

    args = (x, kp["cos"], kp["sin"], kp["wq"], kp["wk"], kp["wv"], kp["bqkv"],
            kp["ssel"], kp["sswp"], kp["woh"], kp["bo"], kp["g"],
            kp["w1g"], kp["w1u"], kp["b1"], kp["w2"], kp["b2"])
    in_specs = ([pl.BlockSpec((batch_block, T, D), lambda n: (n, 0, 0))]
                + [_const_spec(a.shape) for a in args[1:]])

    return pl.pallas_call(
        encoder_layer_kernel,
        out_shape=jax.ShapeDtypeStruct((N, T, D), jnp.float32),
        grid_spec=pltpu.PrefetchScalarGridSpec(
            num_scalar_prefetch=0,
            grid=grid,
            in_specs=in_specs,
            out_specs=pl.BlockSpec((batch_block, T, D), lambda n: (n, 0, 0)),
        ),
        compiler_params=pltpu.CompilerParams(
            dimension_semantics=("parallel",)),
    )(*args)


# ---------------- pure-JAX reference (f32, same math) for validation ----------------
def reference(x, p):
    D, H, hd = EMBED_DIM, NUM_HEAD, HEAD_DIM

    def rms(t, g):
        return t * jax.lax.rsqrt(jnp.mean(t * t, -1, keepdims=True) + EPS) * g

    def pair_swap(t):   # out[..., 2i] = -t[..., 2i+1]; out[..., 2i+1] = t[..., 2i]
        tp = t.reshape(t.shape[:-1] + (D // 2, 2))
        sw = jnp.stack([-tp[..., 1], tp[..., 0]], axis=-1)
        return sw.reshape(t.shape)

    nx = rms(x, p["g"][0])
    q = nx @ p["wq"] + p["bqkv"][0]
    k = nx @ p["wk"] + p["bqkv"][1]
    v = nx @ p["wv"] + p["bqkv"][2]
    rope = lambda t: t * p["cos"][None] + pair_swap(t) * p["sin"][None]
    q, k = rope(q), rope(k)
    N, T, _ = x.shape
    qh = q.reshape(N, T, H, hd).transpose(0, 2, 1, 3)
    kh = k.reshape(N, T, H, hd).transpose(0, 2, 1, 3)
    vh = v.reshape(N, T, H, hd).transpose(0, 2, 1, 3)
    s = jnp.einsum("nhtd,nhsd->nhts", qh / math.sqrt(hd), kh)
    pattn = jax.nn.softmax(s, axis=-1)
    o = jnp.einsum("nhts,nhsd->nhtd", pattn, vh)
    o = o.transpose(0, 2, 1, 3).reshape(N, T, D)
    x = x + (o @ p["wo"] + p["bo"][0])
    nx2 = rms(x, p["g"][1])
    h1 = nx2 @ p["w1g"] + p["b1"][0]
    h2 = nx2 @ p["w1u"] + p["b1"][1]
    return x + ((h1 * jax.nn.sigmoid(h1)) * h2) @ p["w2"] + p["b2"][0]


# ---------------- deterministic parameter / constant construction ----------------
def make_params(key):
    D, H, hd, HID = EMBED_DIM, NUM_HEAD, HEAD_DIM, HIDDEN_DIM
    ks = jax.random.split(key, 6)

    # in_proj_weight: xavier_uniform on (3D, D), chunked into w_q / w_k / w_v;
    # kernel uses the transposes (right-multiplication layout).
    bound_qkv = math.sqrt(6.0 / (3 * D + D))
    w_in = jax.random.uniform(ks[0], (3 * D, D), jnp.float32, -bound_qkv, bound_qkv)
    wq, wk, wv = w_in[:D].T, w_in[D:2 * D].T, w_in[2 * D:].T
    bqkv = jnp.zeros((3, D), jnp.float32)                           # constant_(0)

    # out_proj: nn.Linear(D, D) default weight init; bias reset to 0.
    bo_w = 1.0 / math.sqrt(D)
    wo = jax.random.uniform(ks[1], (D, D), jnp.float32, -bo_w, bo_w).T
    bo = jnp.zeros((1, D), jnp.float32)

    g = jnp.ones((2, D), jnp.float32)                               # RMSNorm gains

    # SwiGLU linears (nn.Linear default-style uniform init), gate/up pre-split.
    b1_w = 1.0 / math.sqrt(D)
    w1 = jax.random.uniform(ks[2], (2 * HID, D), jnp.float32, -b1_w, b1_w)
    b1f = jax.random.uniform(ks[3], (2 * HID,), jnp.float32, -b1_w, b1_w)
    w1g, w1u = w1[:HID].T, w1[HID:].T                               # (D, HID) each
    b1 = jnp.stack([b1f[:HID], b1f[HID:]], axis=0)                  # (2, HID)
    b2_w = 1.0 / math.sqrt(HID)
    w2 = jax.random.uniform(ks[4], (D, HID), jnp.float32, -b2_w, b2_w).T
    b2 = jax.random.uniform(ks[5], (1, D), jnp.float32, -b2_w, b2_w)

    # RoPE tables (torchtune-style interleaved pairs), tiled per head onto D lanes.
    theta = 1.0 / (10000.0 ** (np.arange(0, hd, 2, dtype=np.float32) / hd))
    ang = np.arange(SEQ, dtype=np.float32)[:, None] * theta[None, :]   # (T, hd/2)
    cos_hd = np.repeat(np.cos(ang), 2, axis=1)                         # (T, hd)
    sin_hd = np.repeat(np.sin(ang), 2, axis=1)
    cos = jnp.asarray(np.tile(cos_hd, (1, H)))                         # (T, D)
    sin = jnp.asarray(np.tile(sin_hd, (1, H)))

    return dict(wq=wq, wk=wk, wv=wv, bqkv=bqkv, wo=wo, bo=bo, g=g,
                w1g=w1g, w1u=w1u, b1=b1, w2=w2, b2=b2, cos=cos, sin=sin)


def prepare_kernel_params(p):
    """One-time host-side prep (hoisted out of the per-call path): bf16 copies of all
    MXU operands, per-head out-proj slabs, and the head-select / RoPE-swap selection
    matrices used to fuse RoPE + head split into batched matmuls."""
    D, H, hd = EMBED_DIM, NUM_HEAD, HEAD_DIM
    ssel = np.zeros((H, D, hd), np.float32)
    sswp = np.zeros((H, D, hd), np.float32)
    for h in range(H):
        for j in range(hd):
            ssel[h, h * hd + j, j] = 1.0
            if j % 2 == 0:
                sswp[h, h * hd + j + 1, j] = -1.0     # even out-lane: -x[odd]  * sin
            else:
                sswp[h, h * hd + j - 1, j] = 1.0      # odd out-lane:  +x[even] * sin
    bf = jnp.bfloat16
    return dict(
        cos=p["cos"], sin=p["sin"],
        wq=p["wq"].astype(bf), wk=p["wk"].astype(bf), wv=p["wv"].astype(bf),
        bqkv=p["bqkv"],
        ssel=jnp.asarray(ssel, bf), sswp=jnp.asarray(sswp, bf),
        woh=p["wo"].reshape(H, hd, D).astype(bf),     # per-head out-proj slabs
        bo=p["bo"], g=p["g"],
        w1g=p["w1g"].astype(bf), w1u=p["w1u"].astype(bf), b1=p["b1"],
        w2=p["w2"].astype(bf), b2=p["b2"],
    )


if __name__ == "__main__":
    key = jax.random.PRNGKey(0)
    kx, kp = jax.random.split(key)
    x = jax.random.normal(kx, (BATCH, SEQ, EMBED_DIM), jnp.float32)
    params = make_params(kp)
    kparams = prepare_kernel_params(params)           # hoisted, done once

    fwd = jax.jit(encoder_layer, static_argnames=("batch_block",))
    out = jax.block_until_ready(fwd(x, kparams))      # grid=(2,) -> 2 parallel steps

    ref = jax.block_until_ready(reference(x, params))
    assert out.shape == (BATCH, SEQ, EMBED_DIM)
    # Tolerance relaxed vs the pure-f32 reference because all MXU operands are bf16
    # (f32 accumulation) and the softmax denominator uses the approximate EUP
    # reciprocal; structural errors would be O(1), well outside this tolerance.
    assert jnp.allclose(out, ref, atol=5e-2, rtol=5e-2), "kernel/reference mismatch"
    print("KERNEL_OK")
</pallas_src>

<mosaic_0001>
module attributes {stable_mosaic.version = 11 : i64} {
  func.func @encoder_layer_kernel(%arg0: i32, %arg1: memref<1x8x32xf32, #tpu.memory_space<vmem>>, %arg2: memref<8x32xf32, #tpu.memory_space<vmem>>, %arg3: memref<8x32xf32, #tpu.memory_space<vmem>>, %arg4: memref<32x32xbf16, #tpu.memory_space<vmem>>, %arg5: memref<32x32xbf16, #tpu.memory_space<vmem>>, %arg6: memref<32x32xbf16, #tpu.memory_space<vmem>>, %arg7: memref<3x32xf32, #tpu.memory_space<vmem>>, %arg8: memref<4x32x8xbf16, #tpu.memory_space<vmem>>, %arg9: memref<4x32x8xbf16, #tpu.memory_space<vmem>>, %arg10: memref<4x8x32xbf16, #tpu.memory_space<vmem>>, %arg11: memref<1x32xf32, #tpu.memory_space<vmem>>, %arg12: memref<2x32xf32, #tpu.memory_space<vmem>>, %arg13: memref<32x64xbf16, #tpu.memory_space<vmem>>, %arg14: memref<32x64xbf16, #tpu.memory_space<vmem>>, %arg15: memref<2x64xf32, #tpu.memory_space<vmem>>, %arg16: memref<64x32xbf16, #tpu.memory_space<vmem>>, %arg17: memref<1x32xf32, #tpu.memory_space<vmem>>, %arg18: memref<1x8x32xf32, #tpu.memory_space<vmem>>) attributes {dimension_semantics = [#tpu.dimension_semantics<parallel>], iteration_bounds = array<i64: 2>, scalar_prefetch = 0 : i64, scratch_operands = 0 : i64, tpu.core_type = #tpu.core_type<tc>, window_params = [{transform_indices = @transform_0, window_bounds = array<i64: 1, 8, 32>}, {pipeline_mode = #tpu.pipeline_mode<synchronous>, transform_indices = @transform_1, window_bounds = array<i64: 8, 32>}, {pipeline_mode = #tpu.pipeline_mode<synchronous>, transform_indices = @transform_2, window_bounds = array<i64: 8, 32>}, {pipeline_mode = #tpu.pipeline_mode<synchronous>, transform_indices = @transform_3, window_bounds = array<i64: 32, 32>}, {pipeline_mode = #tpu.pipeline_mode<synchronous>, transform_indices = @transform_4, window_bounds = array<i64: 32, 32>}, {pipeline_mode = #tpu.pipeline_mode<synchronous>, transform_indices = @transform_5, window_bounds = array<i64: 32, 32>}, {pipeline_mode = #tpu.pipeline_mode<synchronous>, transform_indices = @transform_6, window_bounds = array<i64: 3, 32>}, {pipeline_mode = #tpu.pipeline_mode<synchronous>, transform_indices = @transform_7, window_bounds = array<i64: 4, 32, 8>}, {pipeline_mode = #tpu.pipeline_mode<synchronous>, transform_indices = @transform_8, window_bounds = array<i64: 4, 32, 8>}, {pipeline_mode = #tpu.pipeline_mode<synchronous>, transform_indices = @transform_9, window_bounds = array<i64: 4, 8, 32>}, {pipeline_mode = #tpu.pipeline_mode<synchronous>, transform_indices = @transform_10, window_bounds = array<i64: 1, 32>}, {pipeline_mode = #tpu.pipeline_mode<synchronous>, transform_indices = @transform_11, window_bounds = array<i64: 2, 32>}, {pipeline_mode = #tpu.pipeline_mode<synchronous>, transform_indices = @transform_12, window_bounds = array<i64: 32, 64>}, {pipeline_mode = #tpu.pipeline_mode<synchronous>, transform_indices = @transform_13, window_bounds = array<i64: 32, 64>}, {pipeline_mode = #tpu.pipeline_mode<synchronous>, transform_indices = @transform_14, window_bounds = array<i64: 2, 64>}, {pipeline_mode = #tpu.pipeline_mode<synchronous>, transform_indices = @transform_15, window_bounds = array<i64: 64, 32>}, {pipeline_mode = #tpu.pipeline_mode<synchronous>, transform_indices = @transform_16, window_bounds = array<i64: 1, 32>}, {transform_indices = @transform_17, window_bounds = array<i64: 1, 8, 32>}]} {
    %c0 = arith.constant 0 : index
    %c0_0 = arith.constant 0 : index
    %c0_1 = arith.constant 0 : index
    %0 = vector.load %arg1[%c0, %c0_0, %c0_1] : memref<1x8x32xf32, #tpu.memory_space<vmem>>, vector<1x8x32xf32>
    %1 = vector.shape_cast %0 : vector<1x8x32xf32> to vector<8x32xf32>
    %2 = arith.mulf %1, %1 : vector<8x32xf32>
    %cst = arith.constant dense<0.000000e+00> : vector<8xf32>
    %3 = vector.multi_reduction <add>, %2, %cst [1] : vector<8x32xf32> to vector<8xf32>
    %4 = vector.shape_cast %3 : vector<8xf32> to vector<8x1xf32>
    %cst_2 = arith.constant 3.200000e+01 : f32
    %5 = vector.broadcast %cst_2 : f32 to vector<8x1xf32>
    %6 = arith.divf %4, %5 : vector<8x1xf32>
    %cst_3 = arith.constant 1.1920929E-7 : f32
    %7 = vector.broadcast %cst_3 : f32 to vector<8x1xf32>
    %8 = arith.addf %6, %7 : vector<8x1xf32>
    %9 = math.rsqrt %8 : vector<8x1xf32>
    %10 = vector.broadcast %9 : vector<8x1xf32> to vector<8x32xf32>
    %11 = arith.mulf %1, %10 : vector<8x32xf32>
    %c0_4 = arith.constant 0 : index
    %c0_5 = arith.constant 0 : index
    %12 = vector.load %arg12[%c0_4, %c0_5] : memref<2x32xf32, #tpu.memory_space<vmem>>, vector<1x32xf32>
    %13 = vector.shape_cast %12 : vector<1x32xf32> to vector<32xf32>
    %14 = vector.shape_cast %13 : vector<32xf32> to vector<1x32xf32>
    %15 = vector.broadcast %14 : vector<1x32xf32> to vector<8x32xf32>
    %16 = arith.mulf %11, %15 : vector<8x32xf32>
    %17 = arith.truncf %16 : vector<8x32xf32> to vector<8x32xbf16>
    %c0_6 = arith.constant 0 : index
    %c0_7 = arith.constant 0 : index
    %18 = vector.load %arg4[%c0_6, %c0_7] : memref<32x32xbf16, #tpu.memory_space<vmem>>, vector<32x32xbf16>
    %cst_8 = arith.constant dense<0.000000e+00> : vector<8x32xf32>
    %19 = tpu.matmul %17, %18, %cst_8 {dimension_numbers = #tpu.dot_dimension_numbers<[1], [0], [0], [1], [0, 0, 1, 1], [], []>} : vector<8x32xbf16>, vector<32x32xbf16>, vector<8x32xf32> -> vector<8x32xf32>
    %c0_9 = arith.constant 0 : index
    %c0_10 = arith.constant 0 : index
    %20 = vector.load %arg7[%c0_9, %c0_10] : memref<3x32xf32, #tpu.memory_space<vmem>>, vector<1x32xf32>
    %21 = vector.shape_cast %20 : vector<1x32xf32> to vector<32xf32>
    %22 = vector.shape_cast %21 : vector<32xf32> to vector<1x32xf32>
    %23 = vector.broadcast %22 : vector<1x32xf32> to vector<8x32xf32>
    %24 = arith.addf %19, %23 : vector<8x32xf32>
    %c0_11 = arith.constant 0 : index
    %c0_12 = arith.constant 0 : index
    %25 = vector.load %arg5[%c0_11, %c0_12] : memref<32x32xbf16, #tpu.memory_space<vmem>>, vector<32x32xbf16>
    %cst_13 = arith.constant dense<0.000000e+00> : vector<8x32xf32>
    %26 = tpu.matmul %17, %25, %cst_13 {dimension_numbers = #tpu.dot_dimension_numbers<[1], [0], [0], [1], [0, 0, 1, 1], [], []>} : vector<8x32xbf16>, vector<32x32xbf16>, vector<8x32xf32> -> vector<8x32xf32>
    %c1 = arith.constant 1 : index
    %c0_14 = arith.constant 0 : index
    %27 = vector.load %arg7[%c1, %c0_14] : memref<3x32xf32, #tpu.memory_space<vmem>>, vector<1x32xf32>
    %28 = vector.shape_cast %27 : vector<1x32xf32> to vector<32xf32>
    %29 = vector.shape_cast %28 : vector<32xf32> to vector<1x32xf32>
    %30 = vector.broadcast %29 : vector<1x32xf32> to vector<8x32xf32>
    %31 = arith.addf %26, %30 : vector<8x32xf32>
    %c0_15 = arith.constant 0 : index
    %c0_16 = arith.constant 0 : index
    %32 = vector.load %arg6[%c0_15, %c0_16] : memref<32x32xbf16, #tpu.memory_space<vmem>>, vector<32x32xbf16>
    %cst_17 = arith.constant dense<0.000000e+00> : vector<8x32xf32>
    %33 = tpu.matmul %17, %32, %cst_17 {dimension_numbers = #tpu.dot_dimension_numbers<[1], [0], [0], [1], [0, 0, 1, 1], [], []>} : vector<8x32xbf16>, vector<32x32xbf16>, vector<8x32xf32> -> vector<8x32xf32>
    %c2 = arith.constant 2 : index
    %c0_18 = arith.constant 0 : index
    %34 = vector.load %arg7[%c2, %c0_18] : memref<3x32xf32, #tpu.memory_space<vmem>>, vector<1x32xf32>
    %35 = vector.shape_cast %34 : vector<1x32xf32> to vector<32xf32>
    %36 = vector.shape_cast %35 : vector<32xf32> to vector<1x32xf32>
    %37 = vector.broadcast %36 : vector<1x32xf32> to vector<8x32xf32>
    %38 = arith.addf %33, %37 : vector<8x32xf32>
    %c0_19 = arith.constant 0 : index
    %c0_20 = arith.constant 0 : index
    %39 = vector.load %arg2[%c0_19, %c0_20] : memref<8x32xf32, #tpu.memory_space<vmem>>, vector<8x32xf32>
    %c0_21 = arith.constant 0 : index
    %c0_22 = arith.constant 0 : index
    %40 = vector.load %arg3[%c0_21, %c0_22] : memref<8x32xf32, #tpu.memory_space<vmem>>, vector<8x32xf32>
    %c0_23 = arith.constant 0 : index
    %c0_24 = arith.constant 0 : index
    %c0_25 = arith.constant 0 : index
    %41 = vector.load %arg8[%c0_23, %c0_24, %c0_25] : memref<4x32x8xbf16, #tpu.memory_space<vmem>>, vector<4x32x8xbf16>
    %c0_26 = arith.constant 0 : index
    %c0_27 = arith.constant 0 : index
    %c0_28 = arith.constant 0 : index
    %42 = vector.load %arg9[%c0_26, %c0_27, %c0_28] : memref<4x32x8xbf16, #tpu.memory_space<vmem>>, vector<4x32x8xbf16>
    %43 = arith.mulf %24, %39 : vector<8x32xf32>
    %44 = arith.truncf %43 : vector<8x32xf32> to vector<8x32xbf16>
    %45 = vector.shape_cast %44 : vector<8x32xbf16> to vector<1x8x32xbf16>
    %46 = vector.shape_cast %45 : vector<1x8x32xbf16> to vector<1x8x32xbf16>
    %47 = vector.broadcast %46 : vector<1x8x32xbf16> to vector<4x8x32xbf16>
    %48 = arith.mulf %24, %40 : vector<8x32xf32>
    %49 = arith.truncf %48 : vector<8x32xf32> to vector<8x32xbf16>
    %50 = vector.shape_cast %49 : vector<8x32xbf16> to vector<1x8x32xbf16>
    %51 = vector.shape_cast %50 : vector<1x8x32xbf16> to vector<1x8x32xbf16>
    %52 = vector.broadcast %51 : vector<1x8x32xbf16> to vector<4x8x32xbf16>
    "tpu.trace_start"() <{level = 10 : i32, message = "hmd,hdk->hmk"}> : () -> ()
    %cst_29 = arith.constant dense<0.000000e+00> : vector<4x8x8xf32>
    %53 = tpu.matmul %47, %41, %cst_29 {dimension_numbers = #tpu.dot_dimension_numbers<[2], [1], [1], [2], [0, 0, 0, 1, 1, 2], [0], [0]>} : vector<4x8x32xbf16>, vector<4x32x8xbf16>, vector<4x8x8xf32> -> vector<4x8x8xf32>
    %cst_30 = arith.constant dense<0.000000e+00> : vector<4x8x8xf32>
    %54 = tpu.matmul %52, %42, %cst_30 {dimension_numbers = #tpu.dot_dimension_numbers<[2], [1], [1], [2], [0, 0, 0, 1, 1, 2], [0], [0]>} : vector<4x8x32xbf16>, vector<4x32x8xbf16>, vector<4x8x8xf32> -> vector<4x8x8xf32>
    "tpu.trace_stop"() : () -> ()
    %55 = arith.addf %53, %54 : vector<4x8x8xf32>
    %cst_31 = arith.constant 0.353553385 : f32
    %56 = vector.broadcast %cst_31 : f32 to vector<4x8x8xf32>
    %57 = arith.mulf %55, %56 : vector<4x8x8xf32>
    %58 = arith.mulf %31, %39 : vector<8x32xf32>
    %59 = arith.truncf %58 : vector<8x32xf32> to vector<8x32xbf16>
    %60 = vector.shape_cast %59 : vector<8x32xbf16> to vector<1x8x32xbf16>
    %61 = vector.shape_cast %60 : vector<1x8x32xbf16> to vector<1x8x32xbf16>
    %62 = vector.broadcast %61 : vector<1x8x32xbf16> to vector<4x8x32xbf16>
    %63 = arith.mulf %31, %40 : vector<8x32xf32>
    %64 = arith.truncf %63 : vector<8x32xf32> to vector<8x32xbf16>
    %65 = vector.shape_cast %64 : vector<8x32xbf16> to vector<1x8x32xbf16>
    %66 = vector.shape_cast %65 : vector<1x8x32xbf16> to vector<1x8x32xbf16>
    %67 = vector.broadcast %66 : vector<1x8x32xbf16> to vector<4x8x32xbf16>
    "tpu.trace_start"() <{level = 10 : i32, message = "hmd,hdk->hmk"}> : () -> ()
    %cst_32 = arith.constant dense<0.000000e+00> : vector<4x8x8xf32>
    %68 = tpu.matmul %62, %41, %cst_32 {dimension_numbers = #tpu.dot_dimension_numbers<[2], [1], [1], [2], [0, 0, 0, 1, 1, 2], [0], [0]>} : vector<4x8x32xbf16>, vector<4x32x8xbf16>, vector<4x8x8xf32> -> vector<4x8x8xf32>
    %cst_33 = arith.constant dense<0.000000e+00> : vector<4x8x8xf32>
    %69 = tpu.matmul %67, %42, %cst_33 {dimension_numbers = #tpu.dot_dimension_numbers<[2], [1], [1], [2], [0, 0, 0, 1, 1, 2], [0], [0]>} : vector<4x8x32xbf16>, vector<4x32x8xbf16>, vector<4x8x8xf32> -> vector<4x8x8xf32>
    "tpu.trace_stop"() : () -> ()
    %70 = arith.addf %68, %69 : vector<4x8x8xf32>
    %71 = arith.truncf %38 : vector<8x32xf32> to vector<8x32xbf16>
    %72 = vector.shape_cast %71 : vector<8x32xbf16> to vector<1x8x32xbf16>
    %73 = vector.shape_cast %72 : vector<1x8x32xbf16> to vector<1x8x32xbf16>
    %74 = vector.broadcast %73 : vector<1x8x32xbf16> to vector<4x8x32xbf16>
    "tpu.trace_start"() <{level = 10 : i32, message = "hmd,hdk->hmk"}> : () -> ()
    %cst_34 = arith.constant dense<0.000000e+00> : vector<4x8x8xf32>
    %75 = tpu.matmul %74, %41, %cst_34 {dimension_numbers = #tpu.dot_dimension_numbers<[2], [1], [1], [2], [0, 0, 0, 1, 1, 2], [0], [0]>} : vector<4x8x32xbf16>, vector<4x32x8xbf16>, vector<4x8x8xf32> -> vector<4x8x8xf32>
    "tpu.trace_stop"() : () -> ()
    %76 = arith.truncf %57 : vector<4x8x8xf32> to vector<4x8x8xbf16>
    %77 = arith.truncf %70 : vector<4x8x8xf32> to vector<4x8x8xbf16>
    "tpu.trace_start"() <{level = 10 : i32, message = "nik,njk->nij"}> : () -> ()
    %cst_35 = arith.constant dense<0.000000e+00> : vector<4x8x8xf32>
    %78 = tpu.matmul %76, %77, %cst_35 {dimension_numbers = #tpu.dot_dimension_numbers<[2], [2], [1], [1], [0, 0, 0, 1, 1, 1], [0], [0]>} : vector<4x8x8xbf16>, vector<4x8x8xbf16>, vector<4x8x8xf32> -> vector<4x8x8xf32>
    "tpu.trace_stop"() : () -> ()
    %cst_36 = arith.constant dense<0xFF800000> : vector<4x8xf32>
    %79 = vector.multi_reduction <maximumf>, %78, %cst_36 [2] : vector<4x8x8xf32> to vector<4x8xf32>
    %80 = vector.shape_cast %79 : vector<4x8xf32> to vector<4x8x1xf32>
    %81 = vector.broadcast %80 : vector<4x8x1xf32> to vector<4x8x8xf32>
    %82 = arith.subf %78, %81 : vector<4x8x8xf32>
    %83 = math.exp %82 : vector<4x8x8xf32>
    %cst_37 = arith.constant dense<0.000000e+00> : vector<4x8xf32>
    %84 = vector.multi_reduction <add>, %83, %cst_37 [2] : vector<4x8x8xf32> to vector<4x8xf32>
    %85 = vector.shape_cast %84 : vector<4x8xf32> to vector<4x8x1xf32>
    %86 = tpu.reciprocal %85 {approx = true} : vector<4x8x1xf32> -> vector<4x8x1xf32>
    %87 = vector.broadcast %86 : vector<4x8x1xf32> to vector<4x8x8xf32>
    %88 = arith.mulf %83, %87 : vector<4x8x8xf32>
    %89 = arith.truncf %88 : vector<4x8x8xf32> to vector<4x8x8xbf16>
    %90 = arith.truncf %75 : vector<4x8x8xf32> to vector<4x8x8xbf16>
    "tpu.trace_start"() <{level = 10 : i32, message = "nij,njk->nik"}> : () -> ()
    %cst_38 = arith.constant dense<0.000000e+00> : vector<4x8x8xf32>
    %91 = tpu.matmul %89, %90, %cst_38 {dimension_numbers = #tpu.dot_dimension_numbers<[2], [1], [1], [2], [0, 0, 0, 1, 1, 2], [0], [0]>} : vector<4x8x8xbf16>, vector<4x8x8xbf16>, vector<4x8x8xf32> -> vector<4x8x8xf32>
    "tpu.trace_stop"() : () -> ()
    %92 = arith.truncf %91 : vector<4x8x8xf32> to vector<4x8x8xbf16>
    %c0_39 = arith.constant 0 : index
    %c0_40 = arith.constant 0 : index
    %c0_41 = arith.constant 0 : index
    %93 = vector.load %arg10[%c0_39, %c0_40, %c0_41] : memref<4x8x32xbf16, #tpu.memory_space<vmem>>, vector<4x8x32xbf16>
    "tpu.trace_start"() <{level = 10 : i32, message = "hmk,hke->hme"}> : () -> ()
    %cst_42 = arith.constant dense<0.000000e+00> : vector<4x8x32xf32>
    %94 = tpu.matmul %92, %93, %cst_42 {dimension_numbers = #tpu.dot_dimension_numbers<[2], [1], [1], [2], [0, 0, 0, 1, 1, 2], [0], [0]>} : vector<4x8x8xbf16>, vector<4x8x32xbf16>, vector<4x8x32xf32> -> vector<4x8x32xf32>
    "tpu.trace_stop"() : () -> ()
    %95 = vector.extract_strided_slice %94 {offsets = [0, 0, 0], sizes = [1, 8, 32], strides = [1, 1, 1]} : vector<4x8x32xf32> to vector<1x8x32xf32>
    %96 = vector.shape_cast %95 : vector<1x8x32xf32> to vector<8x32xf32>
    %97 = vector.extract_strided_slice %94 {offsets = [1, 0, 0], sizes = [1, 8, 32], strides = [1, 1, 1]} : vector<4x8x32xf32> to vector<1x8x32xf32>
    %98 = vector.shape_cast %97 : vector<1x8x32xf32> to vector<8x32xf32>
    %99 = arith.addf %96, %98 : vector<8x32xf32>
    %100 = vector.extract_strided_slice %94 {offsets = [2, 0, 0], sizes = [1, 8, 32], strides = [1, 1, 1]} : vector<4x8x32xf32> to vector<1x8x32xf32>
    %101 = vector.shape_cast %100 : vector<1x8x32xf32> to vector<8x32xf32>
    %102 = arith.addf %99, %101 : vector<8x32xf32>
    %103 = vector.extract_strided_slice %94 {offsets = [3, 0, 0], sizes = [1, 8, 32], strides = [1, 1, 1]} : vector<4x8x32xf32> to vector<1x8x32xf32>
    %104 = vector.shape_cast %103 : vector<1x8x32xf32> to vector<8x32xf32>
    %105 = arith.addf %102, %104 : vector<8x32xf32>
    %106 = arith.addf %1, %105 : vector<8x32xf32>
    %c0_43 = arith.constant 0 : index
    %c0_44 = arith.constant 0 : index
    %107 = vector.load %arg11[%c0_43, %c0_44] : memref<1x32xf32, #tpu.memory_space<vmem>>, vector<1x32xf32>
    %108 = vector.shape_cast %107 : vector<1x32xf32> to vector<32xf32>
    %109 = vector.shape_cast %108 : vector<32xf32> to vector<1x32xf32>
    %110 = vector.broadcast %109 : vector<1x32xf32> to vector<8x32xf32>
    %111 = arith.addf %106, %110 : vector<8x32xf32>
    %112 = arith.mulf %111, %111 : vector<8x32xf32>
    %cst_45 = arith.constant dense<0.000000e+00> : vector<8xf32>
    %113 = vector.multi_reduction <add>, %112, %cst_45 [1] : vector<8x32xf32> to vector<8xf32>
    %114 = vector.shape_cast %113 : vector<8xf32> to vector<8x1xf32>
    %cst_46 = arith.constant 3.200000e+01 : f32
    %115 = vector.broadcast %cst_46 : f32 to vector<8x1xf32>
    %116 = arith.divf %114, %115 : vector<8x1xf32>
    %cst_47 = arith.constant 1.1920929E-7 : f32
    %117 = vector.broadcast %cst_47 : f32 to vector<8x1xf32>
    %118 = arith.addf %116, %117 : vector<8x1xf32>
    %119 = math.rsqrt %118 : vector<8x1xf32>
    %120 = vector.broadcast %119 : vector<8x1xf32> to vector<8x32xf32>
    %121 = arith.mulf %111, %120 : vector<8x32xf32>
    %c1_48 = arith.constant 1 : index
    %c0_49 = arith.constant 0 : index
    %122 = vector.load %arg12[%c1_48, %c0_49] : memref<2x32xf32, #tpu.memory_space<vmem>>, vector<1x32xf32>
    %123 = vector.shape_cast %122 : vector<1x32xf32> to vector<32xf32>
    %124 = vector.shape_cast %123 : vector<32xf32> to vector<1x32xf32>
    %125 = vector.broadcast %124 : vector<1x32xf32> to vector<8x32xf32>
    %126 = arith.mulf %121, %125 : vector<8x32xf32>
    %127 = arith.truncf %126 : vector<8x32xf32> to vector<8x32xbf16>
    %c0_50 = arith.constant 0 : index
    %c0_51 = arith.constant 0 : index
    %128 = vector.load %arg13[%c0_50, %c0_51] : memref<32x64xbf16, #tpu.memory_space<vmem>>, vector<32x64xbf16>
    %cst_52 = arith.constant dense<0.000000e+00> : vector<8x64xf32>
    %129 = tpu.matmul %127, %128, %cst_52 {dimension_numbers = #tpu.dot_dimension_numbers<[1], [0], [0], [1], [0, 0, 1, 1], [], []>} : vector<8x32xbf16>, vector<32x64xbf16>, vector<8x64xf32> -> vector<8x64xf32>
    %c0_53 = arith.constant 0 : index
    %c0_54 = arith.constant 0 : index
    %130 = vector.load %arg15[%c0_53, %c0_54] : memref<2x64xf32, #tpu.memory_space<vmem>>, vector<1x64xf32>
    %131 = vector.shape_cast %130 : vector<1x64xf32> to vector<64xf32>
    %132 = vector.shape_cast %131 : vector<64xf32> to vector<1x64xf32>
    %133 = vector.broadcast %132 : vector<1x64xf32> to vector<8x64xf32>
    %134 = arith.addf %129, %133 : vector<8x64xf32>
    %c0_55 = arith.constant 0 : index
    %c0_56 = arith.constant 0 : index
    %135 = vector.load %arg14[%c0_55, %c0_56] : memref<32x64xbf16, #tpu.memory_space<vmem>>, vector<32x64xbf16>
    %cst_57 = arith.constant dense<0.000000e+00> : vector<8x64xf32>
    %136 = tpu.matmul %127, %135, %cst_57 {dimension_numbers = #tpu.dot_dimension_numbers<[1], [0], [0], [1], [0, 0, 1, 1], [], []>} : vector<8x32xbf16>, vector<32x64xbf16>, vector<8x64xf32> -> vector<8x64xf32>
    %c1_58 = arith.constant 1 : index
    %c0_59 = arith.constant 0 : index
    %137 = vector.load %arg15[%c1_58, %c0_59] : memref<2x64xf32, #tpu.memory_space<vmem>>, vector<1x64xf32>
    %138 = vector.shape_cast %137 : vector<1x64xf32> to vector<64xf32>
    %139 = vector.shape_cast %138 : vector<64xf32> to vector<1x64xf32>
    %140 = vector.broadcast %139 : vector<1x64xf32> to vector<8x64xf32>
    %141 = arith.addf %136, %140 : vector<8x64xf32>
    %142 = arith.negf %134 : vector<8x64xf32>
    %143 = math.exp %142 : vector<8x64xf32>
    %cst_60 = arith.constant 1.000000e+00 : f32
    %144 = vector.broadcast %cst_60 : f32 to vector<8x64xf32>
    %145 = arith.addf %144, %143 : vector<8x64xf32>
    %146 = arith.divf %144, %145 : vector<8x64xf32>
    %147 = arith.mulf %134, %146 : vector<8x64xf32>
    %148 = arith.mulf %147, %141 : vector<8x64xf32>
    %149 = arith.truncf %148 : vector<8x64xf32> to vector<8x64xbf16>
    %c0_61 = arith.constant 0 : index
    %c0_62 = arith.constant 0 : index
    %150 = vector.load %arg16[%c0_61, %c0_62] : memref<64x32xbf16, #tpu.memory_space<vmem>>, vector<64x32xbf16>
    %cst_63 = arith.constant dense<0.000000e+00> : vector<8x32xf32>
    %151 = tpu.matmul %149, %150, %cst_63 {dimension_numbers = #tpu.dot_dimension_numbers<[1], [0], [0], [1], [0, 0, 1, 1], [], []>} : vector<8x64xbf16>, vector<64x32xbf16>, vector<8x32xf32> -> vector<8x32xf32>
    %c0_64 = arith.constant 0 : index
    %c0_65 = arith.constant 0 : index
    %152 = vector.load %arg17[%c0_64, %c0_65] : memref<1x32xf32, #tpu.memory_space<vmem>>, vector<1x32xf32>
    %153 = vector.shape_cast %152 : vector<1x32xf32> to vector<32xf32>
    %154 = vector.shape_cast %153 : vector<32xf32> to vector<1x32xf32>
    %155 = vector.broadcast %154 : vector<1x32xf32> to vector<8x32xf32>
    %156 = arith.addf %151, %155 : vector<8x32xf32>
    %157 = arith.addf %111, %156 : vector<8x32xf32>
    %158 = vector.shape_cast %157 : vector<8x32xf32> to vector<1x8x32xf32>
    %c0_66 = arith.constant 0 : index
    %c0_67 = arith.constant 0 : index
    %c0_68 = arith.constant 0 : index
    %159 = vector.load %arg18[%c0_66, %c0_67, %c0_68] : memref<1x8x32xf32, #tpu.memory_space<vmem>>, vector<1x8x32xf32>
    tpu.vector_store %arg18[%c0_66, %c0_67, %c0_68], %158 {strides = array<i32>} : memref<1x8x32xf32, #tpu.memory_space<vmem>>, vector<1x8x32xf32>,
    return
  }
  func.func @transform_0(%arg0: i32) -> (i32, i32, i32) {
    %c0_i32 = arith.constant 0 : i32
    %c0_i32_0 = arith.constant 0 : i32
    %c0_i32_1 = arith.constant 0 : i32
    return %arg0, %c0_i32, %c0_i32_0 : i32, i32, i32
  }
  func.func @transform_1(%arg0: i32) -> (i32, i32) {
    %c0_i32 = arith.constant 0 : i32
    %c0_i32_0 = arith.constant 0 : i32
    %c0_i32_1 = arith.constant 0 : i32
    return %c0_i32, %c0_i32_0 : i32, i32
  }
  func.func @transform_2(%arg0: i32) -> (i32, i32) {
    %c0_i32 = arith.constant 0 : i32
    %c0_i32_0 = arith.constant 0 : i32
    %c0_i32_1 = arith.constant 0 : i32
    return %c0_i32, %c0_i32_0 : i32, i32
  }
  func.func @transform_3(%arg0: i32) -> (i32, i32) {
    %c0_i32 = arith.constant 0 : i32
    %c0_i32_0 = arith.constant 0 : i32
    %c0_i32_1 = arith.constant 0 : i32
    return %c0_i32, %c0_i32_0 : i32, i32
  }
  func.func @transform_4(%arg0: i32) -> (i32, i32) {
    %c0_i32 = arith.constant 0 : i32
    %c0_i32_0 = arith.constant 0 : i32
    %c0_i32_1 = arith.constant 0 : i32
    return %c0_i32, %c0_i32_0 : i32, i32
  }
  func.func @transform_5(%arg0: i32) -> (i32, i32) {
    %c0_i32 = arith.constant 0 : i32
    %c0_i32_0 = arith.constant 0 : i32
    %c0_i32_1 = arith.constant 0 : i32
    return %c0_i32, %c0_i32_0 : i32, i32
  }
  func.func @transform_6(%arg0: i32) -> (i32, i32) {
    %c0_i32 = arith.constant 0 : i32
    %c0_i32_0 = arith.constant 0 : i32
    %c0_i32_1 = arith.constant 0 : i32
    return %c0_i32, %c0_i32_0 : i32, i32
  }
  func.func @transform_7(%arg0: i32) -> (i32, i32, i32) {
    %c0_i32 = arith.constant 0 : i32
    %c0_i32_0 = arith.constant 0 : i32
    %c0_i32_1 = arith.constant 0 : i32
    %c0_i32_2 = arith.constant 0 : i32
    return %c0_i32, %c0_i32_0, %c0_i32_1 : i32, i32, i32
  }
  func.func @transform_8(%arg0: i32) -> (i32, i32, i32) {
    %c0_i32 = arith.constant 0 : i32
    %c0_i32_0 = arith.constant 0 : i32
    %c0_i32_1 = arith.constant 0 : i32
    %c0_i32_2 = arith.constant 0 : i32
    return %c0_i32, %c0_i32_0, %c0_i32_1 : i32, i32, i32
  }
  func.func @transform_9(%arg0: i32) -> (i32, i32, i32) {
    %c0_i32 = arith.constant 0 : i32
    %c0_i32_0 = arith.constant 0 : i32
    %c0_i32_1 = arith.constant 0 : i32
    %c0_i32_2 = arith.constant 0 : i32
    return %c0_i32, %c0_i32_0, %c0_i32_1 : i32, i32, i32
  }
  func.func @transform_10(%arg0: i32) -> (i32, i32) {
    %c0_i32 = arith.constant 0 : i32
    %c0_i32_0 = arith.constant 0 : i32
    %c0_i32_1 = arith.constant 0 : i32
    return %c0_i32, %c0_i32_0 : i32, i32
  }
  func.func @transform_11(%arg0: i32) -> (i32, i32) {
    %c0_i32 = arith.constant 0 : i32
    %c0_i32_0 = arith.constant 0 : i32
    %c0_i32_1 = arith.constant 0 : i32
    return %c0_i32, %c0_i32_0 : i32, i32
  }
  func.func @transform_12(%arg0: i32) -> (i32, i32) {
    %c0_i32 = arith.constant 0 : i32
    %c0_i32_0 = arith.constant 0 : i32
    %c0_i32_1 = arith.constant 0 : i32
    return %c0_i32, %c0_i32_0 : i32, i32
  }
  func.func @transform_13(%arg0: i32) -> (i32, i32) {
    %c0_i32 = arith.constant 0 : i32
    %c0_i32_0 = arith.constant 0 : i32
    %c0_i32_1 = arith.constant 0 : i32
    return %c0_i32, %c0_i32_0 : i32, i32
  }
  func.func @transform_14(%arg0: i32) -> (i32, i32) {
    %c0_i32 = arith.constant 0 : i32
    %c0_i32_0 = arith.constant 0 : i32
    %c0_i32_1 = arith.constant 0 : i32
    return %c0_i32, %c0_i32_0 : i32, i32
  }
  func.func @transform_15(%arg0: i32) -> (i32, i32) {
    %c0_i32 = arith.constant 0 : i32
    %c0_i32_0 = arith.constant 0 : i32
    %c0_i32_1 = arith.constant 0 : i32
    return %c0_i32, %c0_i32_0 : i32, i32
  }
  func.func @transform_16(%arg0: i32) -> (i32, i32) {
    %c0_i32 = arith.constant 0 : i32
    %c0_i32_0 = arith.constant 0 : i32
    %c0_i32_1 = arith.constant 0 : i32
    return %c0_i32, %c0_i32_0 : i32, i32
  }
  func.func @transform_17(%arg0: i32) -> (i32, i32, i32) {
    %c0_i32 = arith.constant 0 : i32
    %c0_i32_0 = arith.constant 0 : i32
    %c0_i32_1 = arith.constant 0 : i32
    return %arg0, %c0_i32, %c0_i32_0 : i32, i32, i32
  }
}

</mosaic_0001>

<llo_original>
// kernel: encoder_layer.1
$region0: #{encoder_layer.1}
  #allocation0 [shape = 'u32[]', space=smem, size = 0x4, offset = 0x4, fixed_abs, tag = 'smem constant byte address 0x4 - core index']
  #allocation1 [shape = 'u32[144,128]{1,0:T(1,128)}', space=vmem, size = 0x12000, scoped, tag = 'internal scratch']
  %s0 = inlined_call_operand.vmem [shape: f32[2,8,32], index: 0, kind: input, shape index: {}]
  %s1 = inlined_call_operand.vmem [shape: f32[8,32], index: 1, kind: input, shape index: {}]
  %s2 = inlined_call_operand.vmem [shape: f32[8,32], index: 2, kind: input, shape index: {}]
  %s3 = inlined_call_operand.vmem [shape: bf16[32,32], index: 3, kind: input, shape index: {}]
  %s4 = inlined_call_operand.vmem [shape: bf16[32,32], index: 4, kind: input, shape index: {}]
  %s5 = inlined_call_operand.vmem [shape: bf16[32,32], index: 5, kind: input, shape index: {}]
  %s6 = inlined_call_operand.vmem [shape: f32[3,32], index: 6, kind: input, shape index: {}]
  %s7 = inlined_call_operand.vmem [shape: bf16[4,32,8], index: 7, kind: input, shape index: {}]
  %s8 = inlined_call_operand.vmem [shape: bf16[4,32,8], index: 8, kind: input, shape index: {}]
  %s9 = inlined_call_operand.vmem [shape: bf16[4,8,32], index: 9, kind: input, shape index: {}]
  %s10 = inlined_call_operand.vmem [shape: f32[1,32], index: 10, kind: input, shape index: {}]
  %s11 = inlined_call_operand.vmem [shape: f32[2,32], index: 11, kind: input, shape index: {}]
  %s12 = inlined_call_operand.vmem [shape: bf16[32,64], index: 12, kind: input, shape index: {}]
  %s13 = inlined_call_operand.vmem [shape: bf16[32,64], index: 13, kind: input, shape index: {}]
  %s14 = inlined_call_operand.vmem [shape: f32[2,64], index: 14, kind: input, shape index: {}]
  %s15 = inlined_call_operand.vmem [shape: bf16[64,32], index: 15, kind: input, shape index: {}]
  %s16 = inlined_call_operand.vmem [shape: f32[1,32], index: 16, kind: input, shape index: {}]
  %s17 = inlined_call_operand.hbm [shape: f32[2,8,32], index: 17, kind: output, shape index: {}]
  %s18 = sld [smem:[#allocation0]]
  $region101: #{encoder_layer.1} parent=0
    _
  %s20 = ssub.s32 1, %s18
  %s21 = scalar_select 0, %s20, %s18
  $region1: #{encoder_layer.1} parent=0
    #allocation2 [shape = 'u8[8192]{0}', space=vmem, size = 0x2000, scoped, tag = 'output window, operand 0']
    #allocation3 [shape = 's32[2]{0}', space=sflag, size = 0x8, scoped, tag = 'scoped memory for encoder_layer.1']
    %22 = vsyncpa [#allocation3], 0
    %s23 = scalar_lea.sflag [#allocation3], 1
    %24 = vsyncpa %s23, 0
    loop: start=0, step=1, limit=4
    $region2: #{encoder_layer.1} parent=1 // loop_pre_header
      _
    $region3: #{encoder_layer.1} parent=1 // loop_header
      %s26 = sphi 0, %s30
      %p27 = scmp.ge.s32.totalorder %s26, 4
      %s36 = sphi 0, %s38
      %s39 = sphi 0, %s36
      %s40 = sphi 0, %s39
      %s56 = sphi 0, %s40
      %s60 = sphi 0, %s60
      %s62 = sphi 0, %s60
      %s63 = sphi 0, %s62
      %s77 = sphi 0, %s63
      %s81 = sphi 0, %s81
      %s83 = sphi 0, %s81
      %s84 = sphi 0, %s83
      %s98 = sphi 0, %s84
      %s102 = sphi 0, %s102
      %s104 = sphi 0, %s102
      %s105 = sphi 0, %s104
      %s119 = sphi 0, %s105
      %s123 = sphi 0, %s123
      %s125 = sphi 0, %s123
      %s126 = sphi 0, %s125
      %s140 = sphi 0, %s126
      %s144 = sphi 0, %s144
      %s146 = sphi 0, %s144
      %s147 = sphi 0, %s146
      %s161 = sphi 0, %s147
      %s165 = sphi 0, %s165
      %s167 = sphi 0, %s165
      %s168 = sphi 0, %s167
      %s182 = sphi 0, %s168
      %s186 = sphi 0, %s186
      %s188 = sphi 0, %s186
      %s189 = sphi 0, %s188
      %s203 = sphi 0, %s189
      %s207 = sphi 0, %s207
      %s209 = sphi 0, %s207
      %s210 = sphi 0, %s209
      %s224 = sphi 0, %s210
      %s228 = sphi 0, %s228
      %s230 = sphi 0, %s228
      %s231 = sphi 0, %s230
      %s245 = sphi 0, %s231
      %s249 = sphi 0, %s249
      %s251 = sphi 0, %s249
      %s252 = sphi 0, %s251
      %s266 = sphi 0, %s252
      %s270 = sphi 0, %s270
      %s272 = sphi 0, %s270
      %s273 = sphi 0, %s272
      %s287 = sphi 0, %s273
      %s291 = sphi 0, %s291
      %s293 = sphi 0, %s291
      %s294 = sphi 0, %s293
      %s308 = sphi 0, %s294
      %s312 = sphi 0, %s312
      %s314 = sphi 0, %s312
      %s315 = sphi 0, %s314
      %s329 = sphi 0, %s315
      %s333 = sphi 0, %s333
      %s335 = sphi 0, %s333
      %s336 = sphi 0, %s335
      %s350 = sphi 0, %s336
      %s354 = sphi 0, %s354
      %s356 = sphi 0, %s354
      %s357 = sphi 0, %s356
      %s371 = sphi 0, %s357
      %s375 = sphi 0, %s375
      %s377 = sphi 0, %s375
      %s378 = sphi 0, %s377
      %s392 = sphi 0, %s378
      %s398 = sphi 0, %s400
      %s401 = sphi 0, %s398
      %s402 = sphi 0, %s401
      %s418 = sphi 0, %s402
    $region4: #{encoder_layer.1} parent=1 // loop_header_branch
      %29 = sbr.rel (%p27) target = $region8
    $region5: #{encoder_layer.1} parent=1 // loop_body
      %s31 = ssub.s32 %s26, 1
      %s32 = ssub.s32 %s26, 2
      %s33 = sadd.s32 %s26, 1
      %s34 = ssub.s32 %s26, %s33
      %p35 = scmp.eq.s32.totalorder %s34, 0
      %s37 = sadd.s32 %s36, 1
      %s38 = scalar_select %p35, %s36, %s37
      %p41 = pneg %p35
      %p42 = scmp.eq.s32.totalorder %s26, 1
      %p43 = por %p41, %p42
      %p44 = scmp.ne.s32.totalorder %s36, %s39
      %p45 = scmp.eq.s32.totalorder %s26, 0
      %p46 = por %p44, %p45
      %p47 = scmp.ne.s32.totalorder %s36, %s39
      %p48 = scmp.eq.s32.totalorder %s31, 1
      %p49 = por %p47, %p48
      %p50 = scmp.ne.s32.totalorder %s39, %s40
      %p51 = scmp.eq.s32.totalorder %s31, 0
      %p52 = por %p50, %p51
      %p53 = scmp.ne.s32.totalorder %s39, %s40
      %p54 = scmp.eq.s32.totalorder %s32, 1
      %p55 = por %p53, %p54
      %p57 = scmp.ne.s32.totalorder %s40, %s56
      %p58 = scmp.eq.s32.totalorder %s32, 0
      %p59 = por %p57, %p58
      %s61 = sadd.s32 %s60, 1
      %p64 = scmp.eq.s32.totalorder %s26, 1
      %p65 = scmp.ne.s32.totalorder %s60, %s62
      %p66 = scmp.eq.s32.totalorder %s26, 0
      %p67 = por %p65, %p66
      %p68 = scmp.ne.s32.totalorder %s60, %s62
      %p69 = scmp.eq.s32.totalorder %s31, 1
      %p70 = por %p68, %p69
      %p71 = scmp.ne.s32.totalorder %s62, %s63
      %p72 = scmp.eq.s32.totalorder %s31, 0
      %p73 = por %p71, %p72
      %p74 = scmp.ne.s32.totalorder %s62, %s63
      %p75 = scmp.eq.s32.totalorder %s32, 1
      %p76 = por %p74, %p75
      %p78 = scmp.ne.s32.totalorder %s63, %s77
      %p79 = scmp.eq.s32.totalorder %s32, 0
      %p80 = por %p78, %p79
      %s82 = sadd.s32 %s81, 1
      %p85 = scmp.eq.s32.totalorder %s26, 1
      %p86 = scmp.ne.s32.totalorder %s81, %s83
      %p87 = scmp.eq.s32.totalorder %s26, 0
      %p88 = por %p86, %p87
      %p89 = scmp.ne.s32.totalorder %s81, %s83
      %p90 = scmp.eq.s32.totalorder %s31, 1
      %p91 = por %p89, %p90
      %p92 = scmp.ne.s32.totalorder %s83, %s84
      %p93 = scmp.eq.s32.totalorder %s31, 0
      %p94 = por %p92, %p93
      %p95 = scmp.ne.s32.totalorder %s83, %s84
      %p96 = scmp.eq.s32.totalorder %s32, 1
      %p97 = por %p95, %p96
      %p99 = scmp.ne.s32.totalorder %s84, %s98
      %p100 = scmp.eq.s32.totalorder %s32, 0
      %p101 = por %p99, %p100
      %s103 = sadd.s32 %s102, 1
      %p106 = scmp.eq.s32.totalorder %s26, 1
      %p107 = scmp.ne.s32.totalorder %s102, %s104
      %p108 = scmp.eq.s32.totalorder %s26, 0
      %p109 = por %p107, %p108
      %p110 = scmp.ne.s32.totalorder %s102, %s104
      %p111 = scmp.eq.s32.totalorder %s31, 1
      %p112 = por %p110, %p111
      %p113 = scmp.ne.s32.totalorder %s104, %s105
      %p114 = scmp.eq.s32.totalorder %s31, 0
      %p115 = por %p113, %p114
      %p116 = scmp.ne.s32.totalorder %s104, %s105
      %p117 = scmp.eq.s32.totalorder %s32, 1
      %p118 = por %p116, %p117
      %p120 = scmp.ne.s32.totalorder %s105, %s119
      %p121 = scmp.eq.s32.totalorder %s32, 0
      %p122 = por %p120, %p121
      %s124 = sadd.s32 %s123, 1
      %p127 = scmp.eq.s32.totalorder %s26, 1
      %p128 = scmp.ne.s32.totalorder %s123, %s125
      %p129 = scmp.eq.s32.totalorder %s26, 0
      %p130 = por %p128, %p129
      %p131 = scmp.ne.s32.totalorder %s123, %s125
      %p132 = scmp.eq.s32.totalorder %s31, 1
      %p133 = por %p131, %p132
      %p134 = scmp.ne.s32.totalorder %s125, %s126
      %p135 = scmp.eq.s32.totalorder %s31, 0
      %p136 = por %p134, %p135
      %p137 = scmp.ne.s32.totalorder %s125, %s126
      %p138 = scmp.eq.s32.totalorder %s32, 1
      %p139 = por %p137, %p138
      %p141 = scmp.ne.s32.totalorder %s126, %s140
      %p142 = scmp.eq.s32.totalorder %s32, 0
      %p143 = por %p141, %p142
      %s145 = sadd.s32 %s144, 1
      %p148 = scmp.eq.s32.totalorder %s26, 1
      %p149 = scmp.ne.s32.totalorder %s144, %s146
      %p150 = scmp.eq.s32.totalorder %s26, 0
      %p151 = por %p149, %p150
      %p152 = scmp.ne.s32.totalorder %s144, %s146
      %p153 = scmp.eq.s32.totalorder %s31, 1
      %p154 = por %p152, %p153
      %p155 = scmp.ne.s32.totalorder %s146, %s147
      %p156 = scmp.eq.s32.totalorder %s31, 0
      %p157 = por %p155, %p156
      %p158 = scmp.ne.s32.totalorder %s146, %s147
      %p159 = scmp.eq.s32.totalorder %s32, 1
      %p160 = por %p158, %p159
      %p162 = scmp.ne.s32.totalorder %s147, %s161
      %p163 = scmp.eq.s32.totalorder %s32, 0
      %p164 = por %p162, %p163
      %s166 = sadd.s32 %s165, 1
      %p169 = scmp.eq.s32.totalorder %s26, 1
      %p170 = scmp.ne.s32.totalorder %s165, %s167
      %p171 = scmp.eq.s32.totalorder %s26, 0
      %p172 = por %p170, %p171
      %p173 = scmp.ne.s32.totalorder %s165, %s167
      %p174 = scmp.eq.s32.totalorder %s31, 1
      %p175 = por %p173, %p174
      %p176 = scmp.ne.s32.totalorder %s167, %s168
      %p177 = scmp.eq.s32.totalorder %s31, 0
      %p178 = por %p176, %p177
      %p179 = scmp.ne.s32.totalorder %s167, %s168
      %p180 = scmp.eq.s32.totalorder %s32, 1
      %p181 = por %p179, %p180
      %p183 = scmp.ne.s32.totalorder %s168, %s182
      %p184 = scmp.eq.s32.totalorder %s32, 0
      %p185 = por %p183, %p184
      %s187 = sadd.s32 %s186, 1
      %p190 = scmp.eq.s32.totalorder %s26, 1
      %p191 = scmp.ne.s32.totalorder %s186, %s188
      %p192 = scmp.eq.s32.totalorder %s26, 0
      %p193 = por %p191, %p192
      %p194 = scmp.ne.s32.totalorder %s186, %s188
      %p195 = scmp.eq.s32.totalorder %s31, 1
      %p196 = por %p194, %p195
      %p197 = scmp.ne.s32.totalorder %s188, %s189
      %p198 = scmp.eq.s32.totalorder %s31, 0
      %p199 = por %p197, %p198
      %p200 = scmp.ne.s32.totalorder %s188, %s189
      %p201 = scmp.eq.s32.totalorder %s32, 1
      %p202 = por %p200, %p201
      %p204 = scmp.ne.s32.totalorder %s189, %s203
      %p205 = scmp.eq.s32.totalorder %s32, 0
      %p206 = por %p204, %p205
      %s208 = sadd.s32 %s207, 1
      %p211 = scmp.eq.s32.totalorder %s26, 1
      %p212 = scmp.ne.s32.totalorder %s207, %s209
      %p213 = scmp.eq.s32.totalorder %s26, 0
      %p214 = por %p212, %p213
      %p215 = scmp.ne.s32.totalorder %s207, %s209
      %p216 = scmp.eq.s32.totalorder %s31, 1
      %p217 = por %p215, %p216
      %p218 = scmp.ne.s32.totalorder %s209, %s210
      %p219 = scmp.eq.s32.totalorder %s31, 0
      %p220 = por %p218, %p219
      %p221 = scmp.ne.s32.totalorder %s209, %s210
      %p222 = scmp.eq.s32.totalorder %s32, 1
      %p223 = por %p221, %p222
      %p225 = scmp.ne.s32.totalorder %s210, %s224
      %p226 = scmp.eq.s32.totalorder %s32, 0
      %p227 = por %p225, %p226
      %s229 = sadd.s32 %s228, 1
      %p232 = scmp.eq.s32.totalorder %s26, 1
      %p233 = scmp.ne.s32.totalorder %s228, %s230
      %p234 = scmp.eq.s32.totalorder %s26, 0
      %p235 = por %p233, %p234
      %p236 = scmp.ne.s32.totalorder %s228, %s230
      %p237 = scmp.eq.s32.totalorder %s31, 1
      %p238 = por %p236, %p237
      %p239 = scmp.ne.s32.totalorder %s230, %s231
      %p240 = scmp.eq.s32.totalorder %s31, 0
      %p241 = por %p239, %p240
      %p242 = scmp.ne.s32.totalorder %s230, %s231
      %p243 = scmp.eq.s32.totalorder %s32, 1
      %p244 = por %p242, %p243
      %p246 = scmp.ne.s32.totalorder %s231, %s245
      %p247 = scmp.eq.s32.totalorder %s32, 0
      %p248 = por %p246, %p247
      %s250 = sadd.s32 %s249, 1
      %p253 = scmp.eq.s32.totalorder %s26, 1
      %p254 = scmp.ne.s32.totalorder %s249, %s251
      %p255 = scmp.eq.s32.totalorder %s26, 0
      %p256 = por %p254, %p255
      %p257 = scmp.ne.s32.totalorder %s249, %s251
      %p258 = scmp.eq.s32.totalorder %s31, 1
      %p259 = por %p257, %p258
      %p260 = scmp.ne.s32.totalorder %s251, %s252
      %p261 = scmp.eq.s32.totalorder %s31, 0
      %p262 = por %p260, %p261
      %p263 = scmp.ne.s32.totalorder %s251, %s252
      %p264 = scmp.eq.s32.totalorder %s32, 1
      %p265 = por %p263, %p264
      %p267 = scmp.ne.s32.totalorder %s252, %s266
      %p268 = scmp.eq.s32.totalorder %s32, 0
      %p269 = por %p267, %p268
      %s271 = sadd.s32 %s270, 1
      %p274 = scmp.eq.s32.totalorder %s26, 1
      %p275 = scmp.ne.s32.totalorder %s270, %s272
      %p276 = scmp.eq.s32.totalorder %s26, 0
      %p277 = por %p275, %p276
      %p278 = scmp.ne.s32.totalorder %s270, %s272
      %p279 = scmp.eq.s32.totalorder %s31, 1
      %p280 = por %p278, %p279
      %p281 = scmp.ne.s32.totalorder %s272, %s273
      %p282 = scmp.eq.s32.totalorder %s31, 0
      %p283 = por %p281, %p282
      %p284 = scmp.ne.s32.totalorder %s272, %s273
      %p285 = scmp.eq.s32.totalorder %s32, 1
      %p286 = por %p284, %p285
      %p288 = scmp.ne.s32.totalorder %s273, %s287
      %p289 = scmp.eq.s32.totalorder %s32, 0
      %p290 = por %p288, %p289
      %s292 = sadd.s32 %s291, 1
      %p295 = scmp.eq.s32.totalorder %s26, 1
      %p296 = scmp.ne.s32.totalorder %s291, %s293
      %p297 = scmp.eq.s32.totalorder %s26, 0
      %p298 = por %p296, %p297
      %p299 = scmp.ne.s32.totalorder %s291, %s293
      %p300 = scmp.eq.s32.totalorder %s31, 1
      %p301 = por %p299, %p300
      %p302 = scmp.ne.s32.totalorder %s293, %s294
      %p303 = scmp.eq.s32.totalorder %s31, 0
      %p304 = por %p302, %p303
      %p305 = scmp.ne.s32.totalorder %s293, %s294
      %p306 = scmp.eq.s32.totalorder %s32, 1
      %p307 = por %p305, %p306
      %p309 = scmp.ne.s32.totalorder %s294, %s308
      %p310 = scmp.eq.s32.totalorder %s32, 0
      %p311 = por %p309, %p310
      %s313 = sadd.s32 %s312, 1
      %p316 = scmp.eq.s32.totalorder %s26, 1
      %p317 = scmp.ne.s32.totalorder %s312, %s314
      %p318 = scmp.eq.s32.totalorder %s26, 0
      %p319 = por %p317, %p318
      %p320 = scmp.ne.s32.totalorder %s312, %s314
      %p321 = scmp.eq.s32.totalorder %s31, 1
      %p322 = por %p320, %p321
      %p323 = scmp.ne.s32.totalorder %s314, %s315
      %p324 = scmp.eq.s32.totalorder %s31, 0
      %p325 = por %p323, %p324
      %p326 = scmp.ne.s32.totalorder %s314, %s315
      %p327 = scmp.eq.s32.totalorder %s32, 1
      %p328 = por %p326, %p327
      %p330 = scmp.ne.s32.totalorder %s315, %s329
      %p331 = scmp.eq.s32.totalorder %s32, 0
      %p332 = por %p330, %p331
      %s334 = sadd.s32 %s333, 1
      %p337 = scmp.eq.s32.totalorder %s26, 1
      %p338 = scmp.ne.s32.totalorder %s333, %s335
      %p339 = scmp.eq.s32.totalorder %s26, 0
      %p340 = por %p338, %p339
      %p341 = scmp.ne.s32.totalorder %s333, %s335
      %p342 = scmp.eq.s32.totalorder %s31, 1
      %p343 = por %p341, %p342
      %p344 = scmp.ne.s32.totalorder %s335, %s336
      %p345 = scmp.eq.s32.totalorder %s31, 0
      %p346 = por %p344, %p345
      %p347 = scmp.ne.s32.totalorder %s335, %s336
      %p348 = scmp.eq.s32.totalorder %s32, 1
      %p349 = por %p347, %p348
      %p351 = scmp.ne.s32.totalorder %s336, %s350
      %p352 = scmp.eq.s32.totalorder %s32, 0
      %p353 = por %p351, %p352
      %s355 = sadd.s32 %s354, 1
      %p358 = scmp.eq.s32.totalorder %s26, 1
      %p359 = scmp.ne.s32.totalorder %s354, %s356
      %p360 = scmp.eq.s32.totalorder %s26, 0
      %p361 = por %p359, %p360
      %p362 = scmp.ne.s32.totalorder %s354, %s356
      %p363 = scmp.eq.s32.totalorder %s31, 1
      %p364 = por %p362, %p363
      %p365 = scmp.ne.s32.totalorder %s356, %s357
      %p366 = scmp.eq.s32.totalorder %s31, 0
      %p367 = por %p365, %p366
      %p368 = scmp.ne.s32.totalorder %s356, %s357
      %p369 = scmp.eq.s32.totalorder %s32, 1
      %p370 = por %p368, %p369
      %p372 = scmp.ne.s32.totalorder %s357, %s371
      %p373 = scmp.eq.s32.totalorder %s32, 0
      %p374 = por %p372, %p373
      %s376 = sadd.s32 %s375, 1
      %p379 = scmp.eq.s32.totalorder %s26, 1
      %p380 = scmp.ne.s32.totalorder %s375, %s377
      %p381 = scmp.eq.s32.totalorder %s26, 0
      %p382 = por %p380, %p381
      %p383 = scmp.ne.s32.totalorder %s375, %s377
      %p384 = scmp.eq.s32.totalorder %s31, 1
      %p385 = por %p383, %p384
      %p386 = scmp.ne.s32.totalorder %s377, %s378
      %p387 = scmp.eq.s32.totalorder %s31, 0
      %p388 = por %p386, %p387
      %p389 = scmp.ne.s32.totalorder %s377, %s378
      %p390 = scmp.eq.s32.totalorder %s32, 1
      %p391 = por %p389, %p390
      %p393 = scmp.ne.s32.totalorder %s378, %s392
      %p394 = scmp.eq.s32.totalorder %s32, 0
      %p395 = por %p393, %p394
      %s396 = ssub.s32 %s26, %s33
      %p397 = scmp.eq.s32.totalorder %s396, 0
      %s399 = sadd.s32 %s398, 1
      %s400 = scalar_select %p397, %s398, %s399
      %p403 = pneg %p397
      %p404 = scmp.eq.s32.totalorder %s26, 1
      %p405 = por %p403, %p404
      %p406 = scmp.ne.s32.totalorder %s398, %s401
      %p407 = scmp.eq.s32.totalorder %s26, 0
      %p408 = por %p406, %p407
      %p409 = scmp.ne.s32.totalorder %s398, %s401
      %p410 = scmp.eq.s32.totalorder %s31, 1
      %p411 = por %p409, %p410
      %p412 = scmp.ne.s32.totalorder %s401, %s402
      %p413 = scmp.eq.s32.totalorder %s31, 0
      %p414 = por %p412, %p413
      %p415 = scmp.ne.s32.totalorder %s401, %s402
      %p416 = scmp.eq.s32.totalorder %s32, 1
      %p417 = por %p415, %p416
      %p419 = scmp.ne.s32.totalorder %s402, %s418
      %p420 = scmp.eq.s32.totalorder %s32, 0
      %p421 = por %p419, %p420
      %p422 = scmp.le.s32.totalorder 1, %s26
      %p423 = scmp.lt.s32.totalorder %s26, 3
      %p424 = pnand %p422, %p423
      %p425 = pneg %p424
      // Predicated region
      $region9: #{encoder_layer.1} parent=5 // pred_check
        _
      $region10: #{encoder_layer.1} parent=5 // pred_check_branch
        %427 = sbr.rel (%p424) target = $region12
      $region11: #{encoder_layer.1} parent=5 // pred_region
        %s428 = ssub.s32 %s26, 1
        // Predicated region
        $region13: #{encoder_layer.1} parent=11 // pred_check
          %p429 = pneg %p73
        $region14: #{encoder_layer.1} parent=11 // pred_check_branch
          %431 = sbr.rel (%p429) target = $region16
        $region15: #{encoder_layer.1} parent=11 // pred_region
          _
        $region16: #{encoder_layer.1} parent=11 // pred_fallthru
          _
        // Predicated region
        $region17: #{encoder_layer.1} parent=11 // pred_check
          %p432 = pneg %p94
        $region18: #{encoder_layer.1} parent=11 // pred_check_branch
          %434 = sbr.rel (%p432) target = $region20
        $region19: #{encoder_layer.1} parent=11 // pred_region
          _
        $region20: #{encoder_layer.1} parent=11 // pred_fallthru
          _
        // Predicated region
        $region21: #{encoder_layer.1} parent=11 // pred_check
          %p435 = pneg %p115
        $region22: #{encoder_layer.1} parent=11 // pred_check_branch
          %437 = sbr.rel (%p435) target = $region24
        $region23: #{encoder_layer.1} parent=11 // pred_region
          _
        $region24: #{encoder_layer.1} parent=11 // pred_fallthru
          _
        // Predicated region
        $region25: #{encoder_layer.1} parent=11 // pred_check
          %p438 = pneg %p136
        $region26: #{encoder_layer.1} parent=11 // pred_check_branch
          %440 = sbr.rel (%p438) target = $region28
        $region27: #{encoder_layer.1} parent=11 // pred_region
          _
        $region28: #{encoder_layer.1} parent=11 // pred_fallthru
          _
        // Predicated region
        $region29: #{encoder_layer.1} parent=11 // pred_check
          %p441 = pneg %p157
        $region30: #{encoder_layer.1} parent=11 // pred_check_branch
          %443 = sbr.rel (%p441) target = $region32
        $region31: #{encoder_layer.1} parent=11 // pred_region
          _
        $region32: #{encoder_layer.1} parent=11 // pred_fallthru
          _
        // Predicated region
        $region33: #{encoder_layer.1} parent=11 // pred_check
          %p444 = pneg %p178
        $region34: #{encoder_layer.1} parent=11 // pred_check_branch
          %446 = sbr.rel (%p444) target = $region36
        $region35: #{encoder_layer.1} parent=11 // pred_region
          _
        $region36: #{encoder_layer.1} parent=11 // pred_fallthru
          _
        // Predicated region
        $region37: #{encoder_layer.1} parent=11 // pred_check
          %p447 = pneg %p199
        $region38: #{encoder_layer.1} parent=11 // pred_check_branch
          %449 = sbr.rel (%p447) target = $region40
        $region39: #{encoder_layer.1} parent=11 // pred_region
          _
        $region40: #{encoder_layer.1} parent=11 // pred_fallthru
          _
        // Predicated region
        $region41: #{encoder_layer.1} parent=11 // pred_check
          %p450 = pneg %p220
        $region42: #{encoder_layer.1} parent=11 // pred_check_branch
          %452 = sbr.rel (%p450) target = $region44
        $region43: #{encoder_layer.1} parent=11 // pred_region
          _
        $region44: #{encoder_layer.1} parent=11 // pred_fallthru
          _
        // Predicated region
        $region45: #{encoder_layer.1} parent=11 // pred_check
          %p453 = pneg %p241
        $region46: #{encoder_layer.1} parent=11 // pred_check_branch
          %455 = sbr.rel (%p453) target = $region48
        $region47: #{encoder_layer.1} parent=11 // pred_region
          _
        $region48: #{encoder_layer.1} parent=11 // pred_fallthru
          _
        // Predicated region
        $region49: #{encoder_layer.1} parent=11 // pred_check
          %p456 = pneg %p262
        $region50: #{encoder_layer.1} parent=11 // pred_check_branch
          %458 = sbr.rel (%p456) target = $region52
        $region51: #{encoder_layer.1} parent=11 // pred_region
          _
        $region52: #{encoder_layer.1} parent=11 // pred_fallthru
          _
        // Predicated region
        $region53: #{encoder_layer.1} parent=11 // pred_check
          %p459 = pneg %p283
        $region54: #{encoder_layer.1} parent=11 // pred_check_branch
          %461 = sbr.rel (%p459) target = $region56
        $region55: #{encoder_layer.1} parent=11 // pred_region
          _
        $region56: #{encoder_layer.1} parent=11 // pred_fallthru
          _
        // Predicated region
        $region57: #{encoder_layer.1} parent=11 // pred_check
          %p462 = pneg %p304
        $region58: #{encoder_layer.1} parent=11 // pred_check_branch
          %464 = sbr.rel (%p462) target = $region60
        $region59: #{encoder_layer.1} parent=11 // pred_region
          _
        $region60: #{encoder_layer.1} parent=11 // pred_fallthru
          _
        // Predicated region
        $region61: #{encoder_layer.1} parent=11 // pred_check
          %p465 = pneg %p325
        $region62: #{encoder_layer.1} parent=11 // pred_check_branch
          %467 = sbr.rel (%p465) target = $region64
        $region63: #{encoder_layer.1} parent=11 // pred_region
          _
        $region64: #{encoder_layer.1} parent=11 // pred_fallthru
          _
        // Predicated region
        $region65: #{encoder_layer.1} parent=11 // pred_check
          %p468 = pneg %p346
        $region66: #{encoder_layer.1} parent=11 // pred_check_branch
          %470 = sbr.rel (%p468) target = $region68
        $region67: #{encoder_layer.1} parent=11 // pred_region
          _
        $region68: #{encoder_layer.1} parent=11 // pred_fallthru
          _
        // Predicated region
        $region69: #{encoder_layer.1} parent=11 // pred_check
          %p471 = pneg %p367
        $region70: #{encoder_layer.1} parent=11 // pred_check_branch
          %473 = sbr.rel (%p471) target = $region72
        $region71: #{encoder_layer.1} parent=11 // pred_region
          _
        $region72: #{encoder_layer.1} parent=11 // pred_fallthru
          _
        // Predicated region
        $region73: #{encoder_layer.1} parent=11 // pred_check
          %p474 = pneg %p388
        $region74: #{encoder_layer.1} parent=11 // pred_check_branch
          %476 = sbr.rel (%p474) target = $region76
        $region75: #{encoder_layer.1} parent=11 // pred_region
          _
        $region76: #{encoder_layer.1} parent=11 // pred_fallthru
          _
      $region12: #{encoder_layer.1} parent=5 // pred_fallthru
        _
      %p477 = scmp.lt.s32.totalorder %s26, 2
      // Predicated region
      $region77: #{encoder_layer.1} parent=5 // pred_check
        %p478 = pneg %p477
      $region78: #{encoder_layer.1} parent=5 // pred_check_branch
        %480 = sbr.rel (%p478) target = $region80
      $region79: #{encoder_layer.1} parent=5 // pred_region
        // Predicated region
        $region81: #{encoder_layer.1} parent=79 // pred_check
          %p481 = pneg %p46
        $region82: #{encoder_layer.1} parent=79 // pred_check_branch
          %483 = sbr.rel (%p481) target = $region84
        $region83: #{encoder_layer.1} parent=79 // pred_region
          %p484 = scmp.lt.s32.totalorder %s26, 1
          %s485 = scalar_select %p484, %s26, 1
          %s486 = smul.addr %s485, 8
          %s487 = scalar_lea.vmem %s0, %s486
        $region84: #{encoder_layer.1} parent=79 // pred_fallthru
          _
      $region80: #{encoder_layer.1} parent=5 // pred_fallthru
        _
      %p488 = scmp.le.s32.totalorder 1, %s26
      %p489 = scmp.lt.s32.totalorder %s26, 3
      %p490 = pnand %p488, %p489
      %p491 = pneg %p490
      // Predicated region
      $region85: #{encoder_layer.1} parent=5 // pred_check
        _
      $region86: #{encoder_layer.1} parent=5 // pred_check_branch
        %493 = sbr.rel (%p490) target = $region88
      $region87: #{encoder_layer.1} parent=5 // pred_region
        %s494 = ssub.s32 %s26, 1
        %p495 = scmp.lt.s32.totalorder %s31, 1
        %s496 = scalar_select %p495, %s31, 1
        %s497 = smul.addr %s496, 8
        %s498 = scalar_lea.vmem %s0, %s497
        %p499 = pneg %p52
        %p500 = pneg %p49
        %p501 = pneg %p73
        %p502 = pneg %p70
        %p503 = pneg %p94
        %p504 = pneg %p91
        %p505 = pneg %p115
        %p506 = pneg %p112
        %p507 = pneg %p136
        %p508 = pneg %p133
        %p509 = pneg %p157
        %p510 = pneg %p154
        %p511 = pneg %p178
        %p512 = pneg %p175
        %p513 = pneg %p199
        %p514 = pneg %p196
        %p515 = pneg %p220
        %p516 = pneg %p217
        %p517 = pneg %p241
        %p518 = pneg %p238
        %p519 = pneg %p262
        %p520 = pneg %p259
        %p521 = pneg %p283
        %p522 = pneg %p280
        %p523 = pneg %p304
        %p524 = pneg %p301
        %p525 = pneg %p325
        %p526 = pneg %p322
        %p527 = pneg %p346
        %p528 = pneg %p343
        %p529 = pneg %p367
        %p530 = pneg %p364
        %p531 = pneg %p388
        %p532 = pneg %p385
        %p533 = pneg %p414
        %p534 = pneg %p411
        %s535 = sand.u32 %s401, 1
        %s536 = scalar_lea.sflag [#allocation3], %s535
        %s537 = sand.u32 %s401, 1
        %s538 = smul.addr %s537, 8
        %s539 = scalar_lea.vmem [#allocation2], %s538
        %p540 = scmp.lt.s32.totalorder %s31, 1
        %s541 = scalar_select %p540, %s31, 1
        %s542 = smul.addr %s541, 8
        %s543 = scalar_lea.vmem %s0, %s542
        %v545 = vld [vmem:[%s543] sm:$0xff]
        %v546 = vmul.f32 %v545, %v545
        %vm547 = vcmask 261120
        %v548 = vsel %vm547, %v546, 0.0
        %549 = vadd.xlane.f32.xlu0 %v548
        %v550 = vpop.xlane.xlu0 %549
        %v551 = vrcp.pop 32.0
        %v552 = vmul.f32 %v550, %v551
        %v553 = vadd.f32 %v552, 1.1920929e-07
        %v554 = vrsqrt.pop %v553
        %v555 = vmul.f32 %v545, %v554
        %v556 = vld [vmem:[%s11] sm:$0x1]
        %v557 = vlaneseq
        %v558 = vshrl.u32 %v557, 7
        %v559 = vsub.s32 0, %v558
        %v560 = vrot.slane %v556, %v559
        %v561 = vmul.f32 %v555, %v560
        %v562 = vpack.c.bf16 %v561, %v561
        %v563 = vld [vmem:[%s3] sm:$0xf]
        %v564 = vld [vmem:[%s3 + $0x4] sm:$0xf]
        %v565 = vld [vmem:[%s3 + $0x8] sm:$0xf]
        %v566 = vld [vmem:[%s3 + $0xc] sm:$0xf]
        %v567 = vld [vmem:[%s6] sm:$0x1]
        %v568 = vlaneseq
        %v569 = vshrl.u32 %v568, 7
        %v570 = vsub.s32 0, %v569
        %v571 = vrot.slane %v567, %v570
        %v576 = vunpack.c.l.b16 %v563
        %v577 = vunpack.c.l.b16 %v564
        %v578 = vunpack.c.l.b16 %v565
        %v579 = vunpack.c.l.b16 %v566
        %v580 = vpack.c.b16 %v577, %v576
        %v581 = vpack.c.b16 %v579, %v578
        %v585 = vsel %vm547, %v562, 0
        %587 = vmatprep.subr.bf16.mxu0 0
        %588 = vmatpush1.bf16.msra.mxu0 %v580
        %589 = vmatprep.subr.bf16.mxu0 0
        %590 = vmatpush1.bf16.msra.mxu0 %v581
        %591 = vmatprep.subr.bf16.mxu0 0
        %592 = vmatpush1.bf16.msra.mxu0 0
        %593 = vmatprep.subr.bf16.mxu0 0
        %594 = vmatpush1.bf16.msra.mxu0 0
        %595 = vmatprep.subr.bf16.mxu0 0
        %596 = vmatpush1.bf16.msra.mxu0 0
        %597 = vmatprep.subr.bf16.mxu0 0
        %598 = vmatpush1.bf16.msra.mxu0 0
        %599 = vmatprep.subr.bf16.mxu0 0
        %600 = vmatpush1.bf16.msra.mxu0 0
        %601 = vmatprep.subr.bf16.mxu0 0
        %602 = vmatpush1.bf16.msra.mxu0 0
        %603 = vmatprep.subr.bf16.mxu0 0
        %604 = vmatpush1.bf16.msra.mxu0 0
        %605 = vmatprep.subr.bf16.mxu0 0
        %606 = vmatpush1.bf16.msra.mxu0 0
        %607 = vmatprep.subr.bf16.mxu0 0
        %608 = vmatpush1.bf16.msra.mxu0 0
        %609 = vmatprep.subr.bf16.mxu0 0
        %610 = vmatpush1.bf16.msra.mxu0 0
        %611 = vmatprep.subr.bf16.mxu0 0
        %612 = vmatpush1.bf16.msra.mxu0 0
        %613 = vmatprep.subr.bf16.mxu0 0
        %614 = vmatpush1.bf16.msra.mxu0 0
        %615 = vmatprep.subr.bf16.mxu0 0
        %616 = vmatpush1.bf16.msra.mxu0 0
        %617 = vmatprep.subr.bf16.mxu0 0
        %618 = vmatpush1.bf16.msra.mxu0 0
        %619 = vmatprep.mubr.bf16.mxu0 0
        %620 = vmatmul.mubr.bf16.gmra.mrb[0].mxu0 %v585
        %v621 = vpop.f32.mrb[0].mxu0
        %v622 = vadd.f32 %v571, %v621
        %v623 = vpop.f32.mrb[0].mxu0
        %v624 = vpop.f32.mrb[0].mxu0
        %v625 = vpop.f32.mrb[0].mxu0
        %626 = vdwg.mxu0
        %v627 = vld [vmem:[%s4] sm:$0xf]
        %v628 = vld [vmem:[%s4 + $0x4] sm:$0xf]
        %v629 = vld [vmem:[%s4 + $0x8] sm:$0xf]
        %v630 = vld [vmem:[%s4 + $0xc] sm:$0xf]
        %v631 = vld [vmem:[%s6 + $0x1] sm:$0x1]
        %v632 = vlaneseq
        %v633 = vshrl.u32 %v632, 7
        %v634 = vsub.s32 0, %v633
        %v635 = vrot.slane %v631, %v634
        %v640 = vunpack.c.l.b16 %v627
        %v641 = vunpack.c.l.b16 %v628
        %v642 = vunpack.c.l.b16 %v629
        %v643 = vunpack.c.l.b16 %v630
        %v644 = vpack.c.b16 %v641, %v640
        %v645 = vpack.c.b16 %v643, %v642
        %648 = vmatprep.subr.bf16.mxu0 0
        %649 = vmatpush1.bf16.msra.mxu0 %v644
        %650 = vmatprep.subr.bf16.mxu0 0
        %651 = vmatpush1.bf16.msra.mxu0 %v645
        %652 = vmatprep.subr.bf16.mxu0 0
        %653 = vmatpush1.bf16.msra.mxu0 0
        %654 = vmatprep.subr.bf16.mxu0 0
        %655 = vmatpush1.bf16.msra.mxu0 0
        %656 = vmatprep.subr.bf16.mxu0 0
        %657 = vmatpush1.bf16.msra.mxu0 0
        %658 = vmatprep.subr.bf16.mxu0 0
        %659 = vmatpush1.bf16.msra.mxu0 0
        %660 = vmatprep.subr.bf16.mxu0 0
        %661 = vmatpush1.bf16.msra.mxu0 0
        %662 = vmatprep.subr.bf16.mxu0 0
        %663 = vmatpush1.bf16.msra.mxu0 0
        %664 = vmatprep.subr.bf16.mxu0 0
        %665 = vmatpush1.bf16.msra.mxu0 0
        %666 = vmatprep.subr.bf16.mxu0 0
        %667 = vmatpush1.bf16.msra.mxu0 0
        %668 = vmatprep.subr.bf16.mxu0 0
        %669 = vmatpush1.bf16.msra.mxu0 0
        %670 = vmatprep.subr.bf16.mxu0 0
        %671 = vmatpush1.bf16.msra.mxu0 0
        %672 = vmatprep.subr.bf16.mxu0 0
        %673 = vmatpush1.bf16.msra.mxu0 0
        %674 = vmatprep.subr.bf16.mxu0 0
        %675 = vmatpush1.bf16.msra.mxu0 0
        %676 = vmatprep.subr.bf16.mxu0 0
        %677 = vmatpush1.bf16.msra.mxu0 0
        %678 = vmatprep.subr.bf16.mxu0 0
        %679 = vmatpush1.bf16.msra.mxu0 0
        %680 = vmatprep.mubr.bf16.mxu0 0
        %681 = vmatmul.mubr.bf16.gmra.mrb[0].mxu0 %v585
        %v682 = vpop.f32.mrb[0].mxu0
        %v683 = vadd.f32 %v635, %v682
        %v684 = vpop.f32.mrb[0].mxu0
        %v685 = vpop.f32.mrb[0].mxu0
        %v686 = vpop.f32.mrb[0].mxu0
        %687 = vdwg.mxu0
        %v688 = vld [vmem:[%s5] sm:$0xf]
        %v689 = vld [vmem:[%s5 + $0x4] sm:$0xf]
        %v690 = vld [vmem:[%s5 + $0x8] sm:$0xf]
        %v691 = vld [vmem:[%s5 + $0xc] sm:$0xf]
        %v692 = vld [vmem:[%s6 + $0x2] sm:$0x1]
        %v693 = vlaneseq
        %v694 = vshrl.u32 %v693, 7
        %v695 = vsub.s32 0, %v694
        %v696 = vrot.slane %v692, %v695
        %v701 = vunpack.c.l.b16 %v688
        %v702 = vunpack.c.l.b16 %v689
        %v703 = vunpack.c.l.b16 %v690
        %v704 = vunpack.c.l.b16 %v691
        %v705 = vpack.c.b16 %v702, %v701
        %v706 = vpack.c.b16 %v704, %v703
        %709 = vmatprep.subr.bf16.mxu0 0
        %710 = vmatpush1.bf16.msra.mxu0 %v705
        %711 = vmatprep.subr.bf16.mxu0 0
        %712 = vmatpush1.bf16.msra.mxu0 %v706
        %713 = vmatprep.subr.bf16.mxu0 0
        %714 = vmatpush1.bf16.msra.mxu0 0
        %715 = vmatprep.subr.bf16.mxu0 0
        %716 = vmatpush1.bf16.msra.mxu0 0
        %717 = vmatprep.subr.bf16.mxu0 0
        %718 = vmatpush1.bf16.msra.mxu0 0
        %719 = vmatprep.subr.bf16.mxu0 0
        %720 = vmatpush1.bf16.msra.mxu0 0
        %721 = vmatprep.subr.bf16.mxu0 0
        %722 = vmatpush1.bf16.msra.mxu0 0
        %723 = vmatprep.subr.bf16.mxu0 0
        %724 = vmatpush1.bf16.msra.mxu0 0
        %725 = vmatprep.subr.bf16.mxu0 0
        %726 = vmatpush1.bf16.msra.mxu0 0
        %727 = vmatprep.subr.bf16.mxu0 0
        %728 = vmatpush1.bf16.msra.mxu0 0
        %729 = vmatprep.subr.bf16.mxu0 0
        %730 = vmatpush1.bf16.msra.mxu0 0
        %731 = vmatprep.subr.bf16.mxu0 0
        %732 = vmatpush1.bf16.msra.mxu0 0
        %733 = vmatprep.subr.bf16.mxu0 0
        %734 = vmatpush1.bf16.msra.mxu0 0
        %735 = vmatprep.subr.bf16.mxu0 0
        %736 = vmatpush1.bf16.msra.mxu0 0
        %737 = vmatprep.subr.bf16.mxu0 0
        %738 = vmatpush1.bf16.msra.mxu0 0
        %739 = vmatprep.subr.bf16.mxu0 0
        %740 = vmatpush1.bf16.msra.mxu0 0
        %741 = vmatprep.mubr.bf16.mxu0 0
        %742 = vmatmul.mubr.bf16.gmra.mrb[0].mxu0 %v585
        %v743 = vpop.f32.mrb[0].mxu0
        %v744 = vadd.f32 %v696, %v743
        %v745 = vpop.f32.mrb[0].mxu0
        %v746 = vpop.f32.mrb[0].mxu0
        %v747 = vpop.f32.mrb[0].mxu0
        %748 = vdwg.mxu0
        %v749 = vld [vmem:[%s1] sm:$0xff]
        %v750 = vld [vmem:[%s2] sm:$0xff]
        %v751 = vld [vmem:[%s7] sm:$0xf]
        %v752 = vld [vmem:[%s7 + $0x4] sm:$0xf]
        %v753 = vld [vmem:[%s7 + $0x8] sm:$0xf]
        %v754 = vld [vmem:[%s7 + $0xc] sm:$0xf]
        %v755 = vld [vmem:[%s7 + $0x10] sm:$0xf]
        %v756 = vld [vmem:[%s7 + $0x14] sm:$0xf]
        %v757 = vld [vmem:[%s7 + $0x18] sm:$0xf]
        %v758 = vld [vmem:[%s7 + $0x1c] sm:$0xf]
        %v759 = vld [vmem:[%s7 + $0x20] sm:$0xf]
        %v760 = vld [vmem:[%s7 + $0x24] sm:$0xf]
        %v761 = vld [vmem:[%s7 + $0x28] sm:$0xf]
        %v762 = vld [vmem:[%s7 + $0x2c] sm:$0xf]
        %v763 = vld [vmem:[%s7 + $0x30] sm:$0xf]
        %v764 = vld [vmem:[%s7 + $0x34] sm:$0xf]
        %v765 = vld [vmem:[%s7 + $0x38] sm:$0xf]
        %v766 = vld [vmem:[%s7 + $0x3c] sm:$0xf]
        %v767 = vld [vmem:[%s8] sm:$0xf]
        %v768 = vld [vmem:[%s8 + $0x4] sm:$0xf]
        %v769 = vld [vmem:[%s8 + $0x8] sm:$0xf]
        %v770 = vld [vmem:[%s8 + $0xc] sm:$0xf]
        %v771 = vld [vmem:[%s8 + $0x10] sm:$0xf]
        %v772 = vld [vmem:[%s8 + $0x14] sm:$0xf]
        %v773 = vld [vmem:[%s8 + $0x18] sm:$0xf]
        %v774 = vld [vmem:[%s8 + $0x1c] sm:$0xf]
        %v775 = vld [vmem:[%s8 + $0x20] sm:$0xf]
        %v776 = vld [vmem:[%s8 + $0x24] sm:$0xf]
        %v777 = vld [vmem:[%s8 + $0x28] sm:$0xf]
        %v778 = vld [vmem:[%s8 + $0x2c] sm:$0xf]
        %v779 = vld [vmem:[%s8 + $0x30] sm:$0xf]
        %v780 = vld [vmem:[%s8 + $0x34] sm:$0xf]
        %v781 = vld [vmem:[%s8 + $0x38] sm:$0xf]
        %v782 = vld [vmem:[%s8 + $0x3c] sm:$0xf]
        %v783 = vmul.f32 %v622, %v749
        %v784 = vpack.c.bf16 %v783, %v783
        %v785 = vmul.f32 %v622, %v750
        %v786 = vpack.c.bf16 %v785, %v785
        %v791 = vunpack.c.l.b16 %v767
        %v792 = vunpack.c.l.b16 %v768
        %v793 = vunpack.c.l.b16 %v769
        %v794 = vunpack.c.l.b16 %v770
        %v795 = vpack.c.b16 %v792, %v791
        %v796 = vpack.c.b16 %v794, %v793
        %v800 = vsel %vm547, %v786, 0
        %802 = vmatprep.subr.bf16.mxu0 0
        %803 = vmatpush1.bf16.msra.mxu0 %v795
        %804 = vmatprep.subr.bf16.mxu0 0
        %805 = vmatpush1.bf16.msra.mxu0 %v796
        %806 = vmatprep.subr.bf16.mxu0 0
        %807 = vmatpush1.bf16.msra.mxu0 0
        %808 = vmatprep.subr.bf16.mxu0 0
        %809 = vmatpush1.bf16.msra.mxu0 0
        %810 = vmatprep.subr.bf16.mxu0 0
        %811 = vmatpush1.bf16.msra.mxu0 0
        %812 = vmatprep.subr.bf16.mxu0 0
        %813 = vmatpush1.bf16.msra.mxu0 0
        %814 = vmatprep.subr.bf16.mxu0 0
        %815 = vmatpush1.bf16.msra.mxu0 0
        %816 = vmatprep.subr.bf16.mxu0 0
        %817 = vmatpush1.bf16.msra.mxu0 0
        %818 = vmatprep.subr.bf16.mxu0 0
        %819 = vmatpush1.bf16.msra.mxu0 0
        %820 = vmatprep.subr.bf16.mxu0 0
        %821 = vmatpush1.bf16.msra.mxu0 0
        %822 = vmatprep.subr.bf16.mxu0 0
        %823 = vmatpush1.bf16.msra.mxu0 0
        %824 = vmatprep.subr.bf16.mxu0 0
        %825 = vmatpush1.bf16.msra.mxu0 0
        %826 = vmatprep.subr.bf16.mxu0 0
        %827 = vmatpush1.bf16.msra.mxu0 0
        %828 = vmatprep.subr.bf16.mxu0 0
        %829 = vmatpush1.bf16.msra.mxu0 0
        %830 = vmatprep.subr.bf16.mxu0 0
        %831 = vmatpush1.bf16.msra.mxu0 0
        %832 = vmatprep.subr.bf16.mxu0 0
        %833 = vmatpush1.bf16.msra.mxu0 0
        %834 = vmatprep.mubr.bf16.mxu0 0
        %835 = vmatmul.mubr.bf16.gmra.mrb[0].mxu0 %v800
        %v836 = vpop.f32.mrb[0].mxu0
        %v837 = vadd.f32 0.0, %v836
        %v838 = vpop.f32.mrb[0].mxu0
        %v839 = vpop.f32.mrb[0].mxu0
        %v840 = vpop.f32.mrb[0].mxu0
        %841 = vdwg.mxu0
        %v846 = vunpack.c.l.b16 %v771
        %v847 = vunpack.c.l.b16 %v772
        %v848 = vunpack.c.l.b16 %v773
        %v849 = vunpack.c.l.b16 %v774
        %v850 = vpack.c.b16 %v847, %v846
        %v851 = vpack.c.b16 %v849, %v848
        %854 = vmatprep.subr.bf16.mxu0 0
        %855 = vmatpush1.bf16.msra.mxu0 %v850
        %856 = vmatprep.subr.bf16.mxu0 0
        %857 = vmatpush1.bf16.msra.mxu0 %v851
        %858 = vmatprep.subr.bf16.mxu0 0
        %859 = vmatpush1.bf16.msra.mxu0 0
        %860 = vmatprep.subr.bf16.mxu0 0
        %861 = vmatpush1.bf16.msra.mxu0 0
        %862 = vmatprep.subr.bf16.mxu0 0
        %863 = vmatpush1.bf16.msra.mxu0 0
        %864 = vmatprep.subr.bf16.mxu0 0
        %865 = vmatpush1.bf16.msra.mxu0 0
        %866 = vmatprep.subr.bf16.mxu0 0
        %867 = vmatpush1.bf16.msra.mxu0 0
        %868 = vmatprep.subr.bf16.mxu0 0
        %869 = vmatpush1.bf16.msra.mxu0 0
        %870 = vmatprep.subr.bf16.mxu0 0
        %871 = vmatpush1.bf16.msra.mxu0 0
        %872 = vmatprep.subr.bf16.mxu0 0
        %873 = vmatpush1.bf16.msra.mxu0 0
        %874 = vmatprep.subr.bf16.mxu0 0
        %875 = vmatpush1.bf16.msra.mxu0 0
        %876 = vmatprep.subr.bf16.mxu0 0
        %877 = vmatpush1.bf16.msra.mxu0 0
        %878 = vmatprep.subr.bf16.mxu0 0
        %879 = vmatpush1.bf16.msra.mxu0 0
        %880 = vmatprep.subr.bf16.mxu0 0
        %881 = vmatpush1.bf16.msra.mxu0 0
        %882 = vmatprep.subr.bf16.mxu0 0
        %883 = vmatpush1.bf16.msra.mxu0 0
        %884 = vmatprep.subr.bf16.mxu0 0
        %885 = vmatpush1.bf16.msra.mxu0 0
        %886 = vmatprep.mubr.bf16.mxu0 0
        %887 = vmatmul.mubr.bf16.gmra.mrb[0].mxu0 %v800
        %v888 = vpop.f32.mrb[0].mxu0
        %v889 = vadd.f32 0.0, %v888
        %v890 = vpop.f32.mrb[0].mxu0
        %v891 = vpop.f32.mrb[0].mxu0
        %v892 = vpop.f32.mrb[0].mxu0
        %893 = vdwg.mxu0
        %v898 = vunpack.c.l.b16 %v775
        %v899 = vunpack.c.l.b16 %v776
        %v900 = vunpack.c.l.b16 %v777
        %v901 = vunpack.c.l.b16 %v778
        %v902 = vpack.c.b16 %v899, %v898
        %v903 = vpack.c.b16 %v901, %v900
        %906 = vmatprep.subr.bf16.mxu0 0
        %907 = vmatpush1.bf16.msra.mxu0 %v902
        %908 = vmatprep.subr.bf16.mxu0 0
        %909 = vmatpush1.bf16.msra.mxu0 %v903
        %910 = vmatprep.subr.bf16.mxu0 0
        %911 = vmatpush1.bf16.msra.mxu0 0
        %912 = vmatprep.subr.bf16.mxu0 0
        %913 = vmatpush1.bf16.msra.mxu0 0
        %914 = vmatprep.subr.bf16.mxu0 0
        %915 = vmatpush1.bf16.msra.mxu0 0
        %916 = vmatprep.subr.bf16.mxu0 0
        %917 = vmatpush1.bf16.msra.mxu0 0
        %918 = vmatprep.subr.bf16.mxu0 0
        %919 = vmatpush1.bf16.msra.mxu0 0
        %920 = vmatprep.subr.bf16.mxu0 0
        %921 = vmatpush1.bf16.msra.mxu0 0
        %922 = vmatprep.subr.bf16.mxu0 0
        %923 = vmatpush1.bf16.msra.mxu0 0
        %924 = vmatprep.subr.bf16.mxu0 0
        %925 = vmatpush1.bf16.msra.mxu0 0
        %926 = vmatprep.subr.bf16.mxu0 0
        %927 = vmatpush1.bf16.msra.mxu0 0
        %928 = vmatprep.subr.bf16.mxu0 0
        %929 = vmatpush1.bf16.msra.mxu0 0
        %930 = vmatprep.subr.bf16.mxu0 0
        %931 = vmatpush1.bf16.msra.mxu0 0
        %932 = vmatprep.subr.bf16.mxu0 0
        %933 = vmatpush1.bf16.msra.mxu0 0
        %934 = vmatprep.subr.bf16.mxu0 0
        %935 = vmatpush1.bf16.msra.mxu0 0
        %936 = vmatprep.subr.bf16.mxu0 0
        %937 = vmatpush1.bf16.msra.mxu0 0
        %938 = vmatprep.mubr.bf16.mxu0 0
        %939 = vmatmul.mubr.bf16.gmra.mrb[0].mxu0 %v800
        %v940 = vpop.f32.mrb[0].mxu0
        %v941 = vadd.f32 0.0, %v940
        %v942 = vpop.f32.mrb[0].mxu0
        %v943 = vpop.f32.mrb[0].mxu0
        %v944 = vpop.f32.mrb[0].mxu0
        %945 = vdwg.mxu0
        %v950 = vunpack.c.l.b16 %v779
        %v951 = vunpack.c.l.b16 %v780
        %v952 = vunpack.c.l.b16 %v781
        %v953 = vunpack.c.l.b16 %v782
        %v954 = vpack.c.b16 %v951, %v950
        %v955 = vpack.c.b16 %v953, %v952
        %958 = vmatprep.subr.bf16.mxu0 0
        %959 = vmatpush1.bf16.msra.mxu0 %v954
        %960 = vmatprep.subr.bf16.mxu0 0
        %961 = vmatpush1.bf16.msra.mxu0 %v955
        %962 = vmatprep.subr.bf16.mxu0 0
        %963 = vmatpush1.bf16.msra.mxu0 0
        %964 = vmatprep.subr.bf16.mxu0 0
        %965 = vmatpush1.bf16.msra.mxu0 0
        %966 = vmatprep.subr.bf16.mxu0 0
        %967 = vmatpush1.bf16.msra.mxu0 0
        %968 = vmatprep.subr.bf16.mxu0 0
        %969 = vmatpush1.bf16.msra.mxu0 0
        %970 = vmatprep.subr.bf16.mxu0 0
        %971 = vmatpush1.bf16.msra.mxu0 0
        %972 = vmatprep.subr.bf16.mxu0 0
        %973 = vmatpush1.bf16.msra.mxu0 0
        %974 = vmatprep.subr.bf16.mxu0 0
        %975 = vmatpush1.bf16.msra.mxu0 0
        %976 = vmatprep.subr.bf16.mxu0 0
        %977 = vmatpush1.bf16.msra.mxu0 0
        %978 = vmatprep.subr.bf16.mxu0 0
        %979 = vmatpush1.bf16.msra.mxu0 0
        %980 = vmatprep.subr.bf16.mxu0 0
        %981 = vmatpush1.bf16.msra.mxu0 0
        %982 = vmatprep.subr.bf16.mxu0 0
        %983 = vmatpush1.bf16.msra.mxu0 0
        %984 = vmatprep.subr.bf16.mxu0 0
        %985 = vmatpush1.bf16.msra.mxu0 0
        %986 = vmatprep.subr.bf16.mxu0 0
        %987 = vmatpush1.bf16.msra.mxu0 0
        %988 = vmatprep.subr.bf16.mxu0 0
        %989 = vmatpush1.bf16.msra.mxu0 0
        %990 = vmatprep.mubr.bf16.mxu0 0
        %991 = vmatmul.mubr.bf16.gmra.mrb[0].mxu0 %v800
        %v992 = vpop.f32.mrb[0].mxu0
        %v993 = vadd.f32 0.0, %v992
        %v994 = vpop.f32.mrb[0].mxu0
        %v995 = vpop.f32.mrb[0].mxu0
        %v996 = vpop.f32.mrb[0].mxu0
        %997 = vdwg.mxu0
        %v1002 = vunpack.c.l.b16 %v751
        %v1003 = vunpack.c.l.b16 %v752
        %v1004 = vunpack.c.l.b16 %v753
        %v1005 = vunpack.c.l.b16 %v754
        %v1006 = vpack.c.b16 %v1003, %v1002
        %v1007 = vpack.c.b16 %v1005, %v1004
        %v1011 = vsel %vm547, %v784, 0
        %1013 = vmatprep.subr.bf16.mxu0 0
        %1014 = vmatpush1.bf16.msra.mxu0 %v1006
        %1015 = vmatprep.subr.bf16.mxu0 0
        %1016 = vmatpush1.bf16.msra.mxu0 %v1007
        %1017 = vmatprep.subr.bf16.mxu0 0
        %1018 = vmatpush1.bf16.msra.mxu0 0
        %1019 = vmatprep.subr.bf16.mxu0 0
        %1020 = vmatpush1.bf16.msra.mxu0 0
        %1021 = vmatprep.subr.bf16.mxu0 0
        %1022 = vmatpush1.bf16.msra.mxu0 0
        %1023 = vmatprep.subr.bf16.mxu0 0
        %1024 = vmatpush1.bf16.msra.mxu0 0
        %1025 = vmatprep.subr.bf16.mxu0 0
        %1026 = vmatpush1.bf16.msra.mxu0 0
        %1027 = vmatprep.subr.bf16.mxu0 0
        %1028 = vmatpush1.bf16.msra.mxu0 0
        %1029 = vmatprep.subr.bf16.mxu0 0
        %1030 = vmatpush1.bf16.msra.mxu0 0
        %1031 = vmatprep.subr.bf16.mxu0 0
        %1032 = vmatpush1.bf16.msra.mxu0 0
        %1033 = vmatprep.subr.bf16.mxu0 0
        %1034 = vmatpush1.bf16.msra.mxu0 0
        %1035 = vmatprep.subr.bf16.mxu0 0
        %1036 = vmatpush1.bf16.msra.mxu0 0
        %1037 = vmatprep.subr.bf16.mxu0 0
        %1038 = vmatpush1.bf16.msra.mxu0 0
        %1039 = vmatprep.subr.bf16.mxu0 0
        %1040 = vmatpush1.bf16.msra.mxu0 0
        %1041 = vmatprep.subr.bf16.mxu0 0
        %1042 = vmatpush1.bf16.msra.mxu0 0
        %1043 = vmatprep.subr.bf16.mxu0 0
        %1044 = vmatpush1.bf16.msra.mxu0 0
        %1045 = vmatprep.mubr.bf16.mxu0 0
        %1046 = vmatmul.mubr.bf16.gmra.mrb[0].mxu0 %v1011
        %v1047 = vpop.f32.mrb[0].mxu0
        %v1048 = vadd.f32 %v837, %v1047
        %v1049 = vpop.f32.mrb[0].mxu0
        %v1050 = vpop.f32.mrb[0].mxu0
        %v1051 = vpop.f32.mrb[0].mxu0
        %1052 = vdwg.mxu0
        %v1057 = vunpack.c.l.b16 %v755
        %v1058 = vunpack.c.l.b16 %v756
        %v1059 = vunpack.c.l.b16 %v757
        %v1060 = vunpack.c.l.b16 %v758
        %v1061 = vpack.c.b16 %v1058, %v1057
        %v1062 = vpack.c.b16 %v1060, %v1059
        %1065 = vmatprep.subr.bf16.mxu0 0
        %1066 = vmatpush1.bf16.msra.mxu0 %v1061
        %1067 = vmatprep.subr.bf16.mxu0 0
        %1068 = vmatpush1.bf16.msra.mxu0 %v1062
        %1069 = vmatprep.subr.bf16.mxu0 0
        %1070 = vmatpush1.bf16.msra.mxu0 0
        %1071 = vmatprep.subr.bf16.mxu0 0
        %1072 = vmatpush1.bf16.msra.mxu0 0
        %1073 = vmatprep.subr.bf16.mxu0 0
        %1074 = vmatpush1.bf16.msra.mxu0 0
        %1075 = vmatprep.subr.bf16.mxu0 0
        %1076 = vmatpush1.bf16.msra.mxu0 0
        %1077 = vmatprep.subr.bf16.mxu0 0
        %1078 = vmatpush1.bf16.msra.mxu0 0
        %1079 = vmatprep.subr.bf16.mxu0 0
        %1080 = vmatpush1.bf16.msra.mxu0 0
        %1081 = vmatprep.subr.bf16.mxu0 0
        %1082 = vmatpush1.bf16.msra.mxu0 0
        %1083 = vmatprep.subr.bf16.mxu0 0
        %1084 = vmatpush1.bf16.msra.mxu0 0
        %1085 = vmatprep.subr.bf16.mxu0 0
        %1086 = vmatpush1.bf16.msra.mxu0 0
        %1087 = vmatprep.subr.bf16.mxu0 0
        %1088 = vmatpush1.bf16.msra.mxu0 0
        %1089 = vmatprep.subr.bf16.mxu0 0
        %1090 = vmatpush1.bf16.msra.mxu0 0
        %1091 = vmatprep.subr.bf16.mxu0 0
        %1092 = vmatpush1.bf16.msra.mxu0 0
        %1093 = vmatprep.subr.bf16.mxu0 0
        %1094 = vmatpush1.bf16.msra.mxu0 0
        %1095 = vmatprep.subr.bf16.mxu0 0
        %1096 = vmatpush1.bf16.msra.mxu0 0
        %1097 = vmatprep.mubr.bf16.mxu0 0
        %1098 = vmatmul.mubr.bf16.gmra.mrb[0].mxu0 %v1011
        %v1099 = vpop.f32.mrb[0].mxu0
        %v1100 = vadd.f32 %v889, %v1099
        %v1101 = vpop.f32.mrb[0].mxu0
        %v1102 = vpop.f32.mrb[0].mxu0
        %v1103 = vpop.f32.mrb[0].mxu0
        %1104 = vdwg.mxu0
        %v1109 = vunpack.c.l.b16 %v759
        %v1110 = vunpack.c.l.b16 %v760
        %v1111 = vunpack.c.l.b16 %v761
        %v1112 = vunpack.c.l.b16 %v762
        %v1113 = vpack.c.b16 %v1110, %v1109
        %v1114 = vpack.c.b16 %v1112, %v1111
        %1117 = vmatprep.subr.bf16.mxu0 0
        %1118 = vmatpush1.bf16.msra.mxu0 %v1113
        %1119 = vmatprep.subr.bf16.mxu0 0
        %1120 = vmatpush1.bf16.msra.mxu0 %v1114
        %1121 = vmatprep.subr.bf16.mxu0 0
        %1122 = vmatpush1.bf16.msra.mxu0 0
        %1123 = vmatprep.subr.bf16.mxu0 0
        %1124 = vmatpush1.bf16.msra.mxu0 0
        %1125 = vmatprep.subr.bf16.mxu0 0
        %1126 = vmatpush1.bf16.msra.mxu0 0
        %1127 = vmatprep.subr.bf16.mxu0 0
        %1128 = vmatpush1.bf16.msra.mxu0 0
        %1129 = vmatprep.subr.bf16.mxu0 0
        %1130 = vmatpush1.bf16.msra.mxu0 0
        %1131 = vmatprep.subr.bf16.mxu0 0
        %1132 = vmatpush1.bf16.msra.mxu0 0
        %1133 = vmatprep.subr.bf16.mxu0 0
        %1134 = vmatpush1.bf16.msra.mxu0 0
        %1135 = vmatprep.subr.bf16.mxu0 0
        %1136 = vmatpush1.bf16.msra.mxu0 0
        %1137 = vmatprep.subr.bf16.mxu0 0
        %1138 = vmatpush1.bf16.msra.mxu0 0
        %1139 = vmatprep.subr.bf16.mxu0 0
        %1140 = vmatpush1.bf16.msra.mxu0 0
        %1141 = vmatprep.subr.bf16.mxu0 0
        %1142 = vmatpush1.bf16.msra.mxu0 0
        %1143 = vmatprep.subr.bf16.mxu0 0
        %1144 = vmatpush1.bf16.msra.mxu0 0
        %1145 = vmatprep.subr.bf16.mxu0 0
        %1146 = vmatpush1.bf16.msra.mxu0 0
        %1147 = vmatprep.subr.bf16.mxu0 0
        %1148 = vmatpush1.bf16.msra.mxu0 0
        %1149 = vmatprep.mubr.bf16.mxu0 0
        %1150 = vmatmul.mubr.bf16.gmra.mrb[0].mxu0 %v1011
        %v1151 = vpop.f32.mrb[0].mxu0
        %v1152 = vadd.f32 %v941, %v1151
        %v1153 = vpop.f32.mrb[0].mxu0
        %v1154 = vpop.f32.mrb[0].mxu0
        %v1155 = vpop.f32.mrb[0].mxu0
        %1156 = vdwg.mxu0
        %v1161 = vunpack.c.l.b16 %v763
        %v1162 = vunpack.c.l.b16 %v764
        %v1163 = vunpack.c.l.b16 %v765
        %v1164 = vunpack.c.l.b16 %v766
        %v1165 = vpack.c.b16 %v1162, %v1161
        %v1166 = vpack.c.b16 %v1164, %v1163
        %1169 = vmatprep.subr.bf16.mxu0 0
        %1170 = vmatpush1.bf16.msra.mxu0 %v1165
        %1171 = vmatprep.subr.bf16.mxu0 0
        %1172 = vmatpush1.bf16.msra.mxu0 %v1166
        %1173 = vmatprep.subr.bf16.mxu0 0
        %1174 = vmatpush1.bf16.msra.mxu0 0
        %1175 = vmatprep.subr.bf16.mxu0 0
        %1176 = vmatpush1.bf16.msra.mxu0 0
        %1177 = vmatprep.subr.bf16.mxu0 0
        %1178 = vmatpush1.bf16.msra.mxu0 0
        %1179 = vmatprep.subr.bf16.mxu0 0
        %1180 = vmatpush1.bf16.msra.mxu0 0
        %1181 = vmatprep.subr.bf16.mxu0 0
        %1182 = vmatpush1.bf16.msra.mxu0 0
        %1183 = vmatprep.subr.bf16.mxu0 0
        %1184 = vmatpush1.bf16.msra.mxu0 0
        %1185 = vmatprep.subr.bf16.mxu0 0
        %1186 = vmatpush1.bf16.msra.mxu0 0
        %1187 = vmatprep.subr.bf16.mxu0 0
        %1188 = vmatpush1.bf16.msra.mxu0 0
        %1189 = vmatprep.subr.bf16.mxu0 0
        %1190 = vmatpush1.bf16.msra.mxu0 0
        %1191 = vmatprep.subr.bf16.mxu0 0
        %1192 = vmatpush1.bf16.msra.mxu0 0
        %1193 = vmatprep.subr.bf16.mxu0 0
        %1194 = vmatpush1.bf16.msra.mxu0 0
        %1195 = vmatprep.subr.bf16.mxu0 0
        %1196 = vmatpush1.bf16.msra.mxu0 0
        %1197 = vmatprep.subr.bf16.mxu0 0
        %1198 = vmatpush1.bf16.msra.mxu0 0
        %1199 = vmatprep.subr.bf16.mxu0 0
        %1200 = vmatpush1.bf16.msra.mxu0 0
        %1201 = vmatprep.mubr.bf16.mxu0 0
        %1202 = vmatmul.mubr.bf16.gmra.mrb[0].mxu0 %v1011
        %v1203 = vpop.f32.mrb[0].mxu0
        %v1204 = vadd.f32 %v993, %v1203
        %v1205 = vpop.f32.mrb[0].mxu0
        %v1206 = vpop.f32.mrb[0].mxu0
        %v1207 = vpop.f32.mrb[0].mxu0
        %1208 = vdwg.mxu0
        %v1209 = vmul.f32 %v1048, 0.35355338
        %v1210 = vmul.f32 %v1100, 0.35355338
        %v1211 = vmul.f32 %v1152, 0.35355338
        %v1212 = vmul.f32 %v1204, 0.35355338
        %v1213 = vmul.f32 %v683, %v749
        %v1214 = vpack.c.bf16 %v1213, %v1213
        %v1215 = vmul.f32 %v683, %v750
        %v1216 = vpack.c.bf16 %v1215, %v1215
        %v1218 = vsel %vm547, %v1216, 0
        %1220 = vmatprep.subr.bf16.mxu0 0
        %1221 = vmatpush1.bf16.msra.mxu0 %v795
        %1222 = vmatprep.subr.bf16.mxu0 0
        %1223 = vmatpush1.bf16.msra.mxu0 %v796
        %1224 = vmatprep.subr.bf16.mxu0 0
        %1225 = vmatpush1.bf16.msra.mxu0 0
        %1226 = vmatprep.subr.bf16.mxu0 0
        %1227 = vmatpush1.bf16.msra.mxu0 0
        %1228 = vmatprep.subr.bf16.mxu0 0
        %1229 = vmatpush1.bf16.msra.mxu0 0
        %1230 = vmatprep.subr.bf16.mxu0 0
        %1231 = vmatpush1.bf16.msra.mxu0 0
        %1232 = vmatprep.subr.bf16.mxu0 0
        %1233 = vmatpush1.bf16.msra.mxu0 0
        %1234 = vmatprep.subr.bf16.mxu0 0
        %1235 = vmatpush1.bf16.msra.mxu0 0
        %1236 = vmatprep.subr.bf16.mxu0 0
        %1237 = vmatpush1.bf16.msra.mxu0 0
        %1238 = vmatprep.subr.bf16.mxu0 0
        %1239 = vmatpush1.bf16.msra.mxu0 0
        %1240 = vmatprep.subr.bf16.mxu0 0
        %1241 = vmatpush1.bf16.msra.mxu0 0
        %1242 = vmatprep.subr.bf16.mxu0 0
        %1243 = vmatpush1.bf16.msra.mxu0 0
        %1244 = vmatprep.subr.bf16.mxu0 0
        %1245 = vmatpush1.bf16.msra.mxu0 0
        %1246 = vmatprep.subr.bf16.mxu0 0
        %1247 = vmatpush1.bf16.msra.mxu0 0
        %1248 = vmatprep.subr.bf16.mxu0 0
        %1249 = vmatpush1.bf16.msra.mxu0 0
        %1250 = vmatprep.subr.bf16.mxu0 0
        %1251 = vmatpush1.bf16.msra.mxu0 0
        %1252 = vmatprep.mubr.bf16.mxu0 0
        %1253 = vmatmul.mubr.bf16.gmra.mrb[0].mxu0 %v1218
        %v1254 = vpop.f32.mrb[0].mxu0
        %v1255 = vadd.f32 0.0, %v1254
        %v1256 = vpop.f32.mrb[0].mxu0
        %v1257 = vpop.f32.mrb[0].mxu0
        %v1258 = vpop.f32.mrb[0].mxu0
        %1259 = vdwg.mxu0
        %1260 = vmatprep.subr.bf16.mxu0 0
        %1261 = vmatpush1.bf16.msra.mxu0 %v850
        %1262 = vmatprep.subr.bf16.mxu0 0
        %1263 = vmatpush1.bf16.msra.mxu0 %v851
        %1264 = vmatprep.subr.bf16.mxu0 0
        %1265 = vmatpush1.bf16.msra.mxu0 0
        %1266 = vmatprep.subr.bf16.mxu0 0
        %1267 = vmatpush1.bf16.msra.mxu0 0
        %1268 = vmatprep.subr.bf16.mxu0 0
        %1269 = vmatpush1.bf16.msra.mxu0 0
        %1270 = vmatprep.subr.bf16.mxu0 0
        %1271 = vmatpush1.bf16.msra.mxu0 0
        %1272 = vmatprep.subr.bf16.mxu0 0
        %1273 = vmatpush1.bf16.msra.mxu0 0
        %1274 = vmatprep.subr.bf16.mxu0 0
        %1275 = vmatpush1.bf16.msra.mxu0 0
        %1276 = vmatprep.subr.bf16.mxu0 0
        %1277 = vmatpush1.bf16.msra.mxu0 0
        %1278 = vmatprep.subr.bf16.mxu0 0
        %1279 = vmatpush1.bf16.msra.mxu0 0
        %1280 = vmatprep.subr.bf16.mxu0 0
        %1281 = vmatpush1.bf16.msra.mxu0 0
        %1282 = vmatprep.subr.bf16.mxu0 0
        %1283 = vmatpush1.bf16.msra.mxu0 0
        %1284 = vmatprep.subr.bf16.mxu0 0
        %1285 = vmatpush1.bf16.msra.mxu0 0
        %1286 = vmatprep.subr.bf16.mxu0 0
        %1287 = vmatpush1.bf16.msra.mxu0 0
        %1288 = vmatprep.subr.bf16.mxu0 0
        %1289 = vmatpush1.bf16.msra.mxu0 0
        %1290 = vmatprep.subr.bf16.mxu0 0
        %1291 = vmatpush1.bf16.msra.mxu0 0
        %1292 = vmatprep.mubr.bf16.mxu0 0
        %1293 = vmatmul.mubr.bf16.gmra.mrb[0].mxu0 %v1218
        %v1294 = vpop.f32.mrb[0].mxu0
        %v1295 = vadd.f32 0.0, %v1294
        %v1296 = vpop.f32.mrb[0].mxu0
        %v1297 = vpop.f32.mrb[0].mxu0
        %v1298 = vpop.f32.mrb[0].mxu0
        %1299 = vdwg.mxu0
        %1300 = vmatprep.subr.bf16.mxu0 0
        %1301 = vmatpush1.bf16.msra.mxu0 %v902
        %1302 = vmatprep.subr.bf16.mxu0 0
        %1303 = vmatpush1.bf16.msra.mxu0 %v903
        %1304 = vmatprep.subr.bf16.mxu0 0
        %1305 = vmatpush1.bf16.msra.mxu0 0
        %1306 = vmatprep.subr.bf16.mxu0 0
        %1307 = vmatpush1.bf16.msra.mxu0 0
        %1308 = vmatprep.subr.bf16.mxu0 0
        %1309 = vmatpush1.bf16.msra.mxu0 0
        %1310 = vmatprep.subr.bf16.mxu0 0
        %1311 = vmatpush1.bf16.msra.mxu0 0
        %1312 = vmatprep.subr.bf16.mxu0 0
        %1313 = vmatpush1.bf16.msra.mxu0 0
        %1314 = vmatprep.subr.bf16.mxu0 0
        %1315 = vmatpush1.bf16.msra.mxu0 0
        %1316 = vmatprep.subr.bf16.mxu0 0
        %1317 = vmatpush1.bf16.msra.mxu0 0
        %1318 = vmatprep.subr.bf16.mxu0 0
        %1319 = vmatpush1.bf16.msra.mxu0 0
        %1320 = vmatprep.subr.bf16.mxu0 0
        %1321 = vmatpush1.bf16.msra.mxu0 0
        %1322 = vmatprep.subr.bf16.mxu0 0
        %1323 = vmatpush1.bf16.msra.mxu0 0
        %1324 = vmatprep.subr.bf16.mxu0 0
        %1325 = vmatpush1.bf16.msra.mxu0 0
        %1326 = vmatprep.subr.bf16.mxu0 0
        %1327 = vmatpush1.bf16.msra.mxu0 0
        %1328 = vmatprep.subr.bf16.mxu0 0
        %1329 = vmatpush1.bf16.msra.mxu0 0
        %1330 = vmatprep.subr.bf16.mxu0 0
        %1331 = vmatpush1.bf16.msra.mxu0 0
        %1332 = vmatprep.mubr.bf16.mxu0 0
        %1333 = vmatmul.mubr.bf16.gmra.mrb[0].mxu0 %v1218
        %v1334 = vpop.f32.mrb[0].mxu0
        %v1335 = vadd.f32 0.0, %v1334
        %v1336 = vpop.f32.mrb[0].mxu0
        %v1337 = vpop.f32.mrb[0].mxu0
        %v1338 = vpop.f32.mrb[0].mxu0
        %1339 = vdwg.mxu0
        %1340 = vmatprep.subr.bf16.mxu0 0
        %1341 = vmatpush1.bf16.msra.mxu0 %v954
        %1342 = vmatprep.subr.bf16.mxu0 0
        %1343 = vmatpush1.bf16.msra.mxu0 %v955
        %1344 = vmatprep.subr.bf16.mxu0 0
        %1345 = vmatpush1.bf16.msra.mxu0 0
        %1346 = vmatprep.subr.bf16.mxu0 0
        %1347 = vmatpush1.bf16.msra.mxu0 0
        %1348 = vmatprep.subr.bf16.mxu0 0
        %1349 = vmatpush1.bf16.msra.mxu0 0
        %1350 = vmatprep.subr.bf16.mxu0 0
        %1351 = vmatpush1.bf16.msra.mxu0 0
        %1352 = vmatprep.subr.bf16.mxu0 0
        %1353 = vmatpush1.bf16.msra.mxu0 0
        %1354 = vmatprep.subr.bf16.mxu0 0
        %1355 = vmatpush1.bf16.msra.mxu0 0
        %1356 = vmatprep.subr.bf16.mxu0 0
        %1357 = vmatpush1.bf16.msra.mxu0 0
        %1358 = vmatprep.subr.bf16.mxu0 0
        %1359 = vmatpush1.bf16.msra.mxu0 0
        %1360 = vmatprep.subr.bf16.mxu0 0
        %1361 = vmatpush1.bf16.msra.mxu0 0
        %1362 = vmatprep.subr.bf16.mxu0 0
        %1363 = vmatpush1.bf16.msra.mxu0 0
        %1364 = vmatprep.subr.bf16.mxu0 0
        %1365 = vmatpush1.bf16.msra.mxu0 0
        %1366 = vmatprep.subr.bf16.mxu0 0
        %1367 = vmatpush1.bf16.msra.mxu0 0
        %1368 = vmatprep.subr.bf16.mxu0 0
        %1369 = vmatpush1.bf16.msra.mxu0 0
        %1370 = vmatprep.subr.bf16.mxu0 0
        %1371 = vmatpush1.bf16.msra.mxu0 0
        %1372 = vmatprep.mubr.bf16.mxu0 0
        %1373 = vmatmul.mubr.bf16.gmra.mrb[0].mxu0 %v1218
        %v1374 = vpop.f32.mrb[0].mxu0
        %v1375 = vadd.f32 0.0, %v1374
        %v1376 = vpop.f32.mrb[0].mxu0
        %v1377 = vpop.f32.mrb[0].mxu0
        %v1378 = vpop.f32.mrb[0].mxu0
        %1379 = vdwg.mxu0
        %v1381 = vsel %vm547, %v1214, 0
        %1383 = vmatprep.subr.bf16.mxu0 0
        %1384 = vmatpush1.bf16.msra.mxu0 %v1006
        %1385 = vmatprep.subr.bf16.mxu0 0
        %1386 = vmatpush1.bf16.msra.mxu0 %v1007
        %1387 = vmatprep.subr.bf16.mxu0 0
        %1388 = vmatpush1.bf16.msra.mxu0 0
        %1389 = vmatprep.subr.bf16.mxu0 0
        %1390 = vmatpush1.bf16.msra.mxu0 0
        %1391 = vmatprep.subr.bf16.mxu0 0
        %1392 = vmatpush1.bf16.msra.mxu0 0
        %1393 = vmatprep.subr.bf16.mxu0 0
        %1394 = vmatpush1.bf16.msra.mxu0 0
        %1395 = vmatprep.subr.bf16.mxu0 0
        %1396 = vmatpush1.bf16.msra.mxu0 0
        %1397 = vmatprep.subr.bf16.mxu0 0
        %1398 = vmatpush1.bf16.msra.mxu0 0
        %1399 = vmatprep.subr.bf16.mxu0 0
        %1400 = vmatpush1.bf16.msra.mxu0 0
        %1401 = vmatprep.subr.bf16.mxu0 0
        %1402 = vmatpush1.bf16.msra.mxu0 0
        %1403 = vmatprep.subr.bf16.mxu0 0
        %1404 = vmatpush1.bf16.msra.mxu0 0
        %1405 = vmatprep.subr.bf16.mxu0 0
        %1406 = vmatpush1.bf16.msra.mxu0 0
        %1407 = vmatprep.subr.bf16.mxu0 0
        %1408 = vmatpush1.bf16.msra.mxu0 0
        %1409 = vmatprep.subr.bf16.mxu0 0
        %1410 = vmatpush1.bf16.msra.mxu0 0
        %1411 = vmatprep.subr.bf16.mxu0 0
        %1412 = vmatpush1.bf16.msra.mxu0 0
        %1413 = vmatprep.subr.bf16.mxu0 0
        %1414 = vmatpush1.bf16.msra.mxu0 0
        %1415 = vmatprep.mubr.bf16.mxu0 0
        %1416 = vmatmul.mubr.bf16.gmra.mrb[0].mxu0 %v1381
        %v1417 = vpop.f32.mrb[0].mxu0
        %v1418 = vadd.f32 %v1255, %v1417
        %v1419 = vpop.f32.mrb[0].mxu0
        %v1420 = vpop.f32.mrb[0].mxu0
        %v1421 = vpop.f32.mrb[0].mxu0
        %1422 = vdwg.mxu0
        %1423 = vmatprep.subr.bf16.mxu0 0
        %1424 = vmatpush1.bf16.msra.mxu0 %v1061
        %1425 = vmatprep.subr.bf16.mxu0 0
        %1426 = vmatpush1.bf16.msra.mxu0 %v1062
        %1427 = vmatprep.subr.bf16.mxu0 0
        %1428 = vmatpush1.bf16.msra.mxu0 0
        %1429 = vmatprep.subr.bf16.mxu0 0
        %1430 = vmatpush1.bf16.msra.mxu0 0
        %1431 = vmatprep.subr.bf16.mxu0 0
        %1432 = vmatpush1.bf16.msra.mxu0 0
        %1433 = vmatprep.subr.bf16.mxu0 0
        %1434 = vmatpush1.bf16.msra.mxu0 0
        %1435 = vmatprep.subr.bf16.mxu0 0
        %1436 = vmatpush1.bf16.msra.mxu0 0
        %1437 = vmatprep.subr.bf16.mxu0 0
        %1438 = vmatpush1.bf16.msra.mxu0 0
        %1439 = vmatprep.subr.bf16.mxu0 0
        %1440 = vmatpush1.bf16.msra.mxu0 0
        %1441 = vmatprep.subr.bf16.mxu0 0
        %1442 = vmatpush1.bf16.msra.mxu0 0
        %1443 = vmatprep.subr.bf16.mxu0 0
        %1444 = vmatpush1.bf16.msra.mxu0 0
        %1445 = vmatprep.subr.bf16.mxu0 0
        %1446 = vmatpush1.bf16.msra.mxu0 0
        %1447 = vmatprep.subr.bf16.mxu0 0
        %1448 = vmatpush1.bf16.msra.mxu0 0
        %1449 = vmatprep.subr.bf16.mxu0 0
        %1450 = vmatpush1.bf16.msra.mxu0 0
        %1451 = vmatprep.subr.bf16.mxu0 0
        %1452 = vmatpush1.bf16.msra.mxu0 0
        %1453 = vmatprep.subr.bf16.mxu0 0
        %1454 = vmatpush1.bf16.msra.mxu0 0
        %1455 = vmatprep.mubr.bf16.mxu0 0
        %1456 = vmatmul.mubr.bf16.gmra.mrb[0].mxu0 %v1381
        %v1457 = vpop.f32.mrb[0].mxu0
        %v1458 = vadd.f32 %v1295, %v1457
        %v1459 = vpop.f32.mrb[0].mxu0
        %v1460 = vpop.f32.mrb[0].mxu0
        %v1461 = vpop.f32.mrb[0].mxu0
        %1462 = vdwg.mxu0
        %1463 = vmatprep.subr.bf16.mxu0 0
        %1464 = vmatpush1.bf16.msra.mxu0 %v1113
        %1465 = vmatprep.subr.bf16.mxu0 0
        %1466 = vmatpush1.bf16.msra.mxu0 %v1114
        %1467 = vmatprep.subr.bf16.mxu0 0
        %1468 = vmatpush1.bf16.msra.mxu0 0
        %1469 = vmatprep.subr.bf16.mxu0 0
        %1470 = vmatpush1.bf16.msra.mxu0 0
        %1471 = vmatprep.subr.bf16.mxu0 0
        %1472 = vmatpush1.bf16.msra.mxu0 0
        %1473 = vmatprep.subr.bf16.mxu0 0
        %1474 = vmatpush1.bf16.msra.mxu0 0
        %1475 = vmatprep.subr.bf16.mxu0 0
        %1476 = vmatpush1.bf16.msra.mxu0 0
        %1477 = vmatprep.subr.bf16.mxu0 0
        %1478 = vmatpush1.bf16.msra.mxu0 0
        %1479 = vmatprep.subr.bf16.mxu0 0
        %1480 = vmatpush1.bf16.msra.mxu0 0
        %1481 = vmatprep.subr.bf16.mxu0 0
        %1482 = vmatpush1.bf16.msra.mxu0 0
        %1483 = vmatprep.subr.bf16.mxu0 0
        %1484 = vmatpush1.bf16.msra.mxu0 0
        %1485 = vmatprep.subr.bf16.mxu0 0
        %1486 = vmatpush1.bf16.msra.mxu0 0
        %1487 = vmatprep.subr.bf16.mxu0 0
        %1488 = vmatpush1.bf16.msra.mxu0 0
        %1489 = vmatprep.subr.bf16.mxu0 0
        %1490 = vmatpush1.bf16.msra.mxu0 0
        %1491 = vmatprep.subr.bf16.mxu0 0
        %1492 = vmatpush1.bf16.msra.mxu0 0
        %1493 = vmatprep.subr.bf16.mxu0 0
        %1494 = vmatpush1.bf16.msra.mxu0 0
        %1495 = vmatprep.mubr.bf16.mxu0 0
        %1496 = vmatmul.mubr.bf16.gmra.mrb[0].mxu0 %v1381
        %v1497 = vpop.f32.mrb[0].mxu0
        %v1498 = vadd.f32 %v1335, %v1497
        %v1499 = vpop.f32.mrb[0].mxu0
        %v1500 = vpop.f32.mrb[0].mxu0
        %v1501 = vpop.f32.mrb[0].mxu0
        %1502 = vdwg.mxu0
        %1503 = vmatprep.subr.bf16.mxu0 0
        %1504 = vmatpush1.bf16.msra.mxu0 %v1165
        %1505 = vmatprep.subr.bf16.mxu0 0
        %1506 = vmatpush1.bf16.msra.mxu0 %v1166
        %1507 = vmatprep.subr.bf16.mxu0 0
        %1508 = vmatpush1.bf16.msra.mxu0 0
        %1509 = vmatprep.subr.bf16.mxu0 0
        %1510 = vmatpush1.bf16.msra.mxu0 0
        %1511 = vmatprep.subr.bf16.mxu0 0
        %1512 = vmatpush1.bf16.msra.mxu0 0
        %1513 = vmatprep.subr.bf16.mxu0 0
        %1514 = vmatpush1.bf16.msra.mxu0 0
        %1515 = vmatprep.subr.bf16.mxu0 0
        %1516 = vmatpush1.bf16.msra.mxu0 0
        %1517 = vmatprep.subr.bf16.mxu0 0
        %1518 = vmatpush1.bf16.msra.mxu0 0
        %1519 = vmatprep.subr.bf16.mxu0 0
        %1520 = vmatpush1.bf16.msra.mxu0 0
        %1521 = vmatprep.subr.bf16.mxu0 0
        %1522 = vmatpush1.bf16.msra.mxu0 0
        %1523 = vmatprep.subr.bf16.mxu0 0
        %1524 = vmatpush1.bf16.msra.mxu0 0
        %1525 = vmatprep.subr.bf16.mxu0 0
        %1526 = vmatpush1.bf16.msra.mxu0 0
        %1527 = vmatprep.subr.bf16.mxu0 0
        %1528 = vmatpush1.bf16.msra.mxu0 0
        %1529 = vmatprep.subr.bf16.mxu0 0
        %1530 = vmatpush1.bf16.msra.mxu0 0
        %1531 = vmatprep.subr.bf16.mxu0 0
        %1532 = vmatpush1.bf16.msra.mxu0 0
        %1533 = vmatprep.subr.bf16.mxu0 0
        %1534 = vmatpush1.bf16.msra.mxu0 0
        %1535 = vmatprep.mubr.bf16.mxu0 0
        %1536 = vmatmul.mubr.bf16.gmra.mrb[0].mxu0 %v1381
        %v1537 = vpop.f32.mrb[0].mxu0
        %v1538 = vadd.f32 %v1375, %v1537
        %v1539 = vpop.f32.mrb[0].mxu0
        %v1540 = vpop.f32.mrb[0].mxu0
        %v1541 = vpop.f32.mrb[0].mxu0
        %1542 = vdwg.mxu0
        %v1543 = vpack.c.bf16 %v744, %v744
        %v1545 = vsel %vm547, %v1543, 0
        %1547 = vmatprep.subr.bf16.mxu0 0
        %1548 = vmatpush1.bf16.msra.mxu0 %v1006
        %1549 = vmatprep.subr.bf16.mxu0 0
        %1550 = vmatpush1.bf16.msra.mxu0 %v1007
        %1551 = vmatprep.subr.bf16.mxu0 0
        %1552 = vmatpush1.bf16.msra.mxu0 0
        %1553 = vmatprep.subr.bf16.mxu0 0
        %1554 = vmatpush1.bf16.msra.mxu0 0
        %1555 = vmatprep.subr.bf16.mxu0 0
        %1556 = vmatpush1.bf16.msra.mxu0 0
        %1557 = vmatprep.subr.bf16.mxu0 0
        %1558 = vmatpush1.bf16.msra.mxu0 0
        %1559 = vmatprep.subr.bf16.mxu0 0
        %1560 = vmatpush1.bf16.msra.mxu0 0
        %1561 = vmatprep.subr.bf16.mxu0 0
        %1562 = vmatpush1.bf16.msra.mxu0 0
        %1563 = vmatprep.subr.bf16.mxu0 0
        %1564 = vmatpush1.bf16.msra.mxu0 0
        %1565 = vmatprep.subr.bf16.mxu0 0
        %1566 = vmatpush1.bf16.msra.mxu0 0
        %1567 = vmatprep.subr.bf16.mxu0 0
        %1568 = vmatpush1.bf16.msra.mxu0 0
        %1569 = vmatprep.subr.bf16.mxu0 0
        %1570 = vmatpush1.bf16.msra.mxu0 0
        %1571 = vmatprep.subr.bf16.mxu0 0
        %1572 = vmatpush1.bf16.msra.mxu0 0
        %1573 = vmatprep.subr.bf16.mxu0 0
        %1574 = vmatpush1.bf16.msra.mxu0 0
        %1575 = vmatprep.subr.bf16.mxu0 0
        %1576 = vmatpush1.bf16.msra.mxu0 0
        %1577 = vmatprep.subr.bf16.mxu0 0
        %1578 = vmatpush1.bf16.msra.mxu0 0
        %1579 = vmatprep.mubr.bf16.mxu0 0
        %1580 = vmatmul.mubr.bf16.gmra.mrb[0].mxu0 %v1545
        %v1581 = vpop.f32.mrb[0].mxu0
        %v1582 = vadd.f32 0.0, %v1581
        %v1583 = vpop.f32.mrb[0].mxu0
        %v1584 = vpop.f32.mrb[0].mxu0
        %v1585 = vpop.f32.mrb[0].mxu0
        %1586 = vdwg.mxu0
        %1587 = vmatprep.subr.bf16.mxu0 0
        %1588 = vmatpush1.bf16.msra.mxu0 %v1061
        %1589 = vmatprep.subr.bf16.mxu0 0
        %1590 = vmatpush1.bf16.msra.mxu0 %v1062
        %1591 = vmatprep.subr.bf16.mxu0 0
        %1592 = vmatpush1.bf16.msra.mxu0 0
        %1593 = vmatprep.subr.bf16.mxu0 0
        %1594 = vmatpush1.bf16.msra.mxu0 0
        %1595 = vmatprep.subr.bf16.mxu0 0
        %1596 = vmatpush1.bf16.msra.mxu0 0
        %1597 = vmatprep.subr.bf16.mxu0 0
        %1598 = vmatpush1.bf16.msra.mxu0 0
        %1599 = vmatprep.subr.bf16.mxu0 0
        %1600 = vmatpush1.bf16.msra.mxu0 0
        %1601 = vmatprep.subr.bf16.mxu0 0
        %1602 = vmatpush1.bf16.msra.mxu0 0
        %1603 = vmatprep.subr.bf16.mxu0 0
        %1604 = vmatpush1.bf16.msra.mxu0 0
        %1605 = vmatprep.subr.bf16.mxu0 0
        %1606 = vmatpush1.bf16.msra.mxu0 0
        %1607 = vmatprep.subr.bf16.mxu0 0
        %1608 = vmatpush1.bf16.msra.mxu0 0
        %1609 = vmatprep.subr.bf16.mxu0 0
        %1610 = vmatpush1.bf16.msra.mxu0 0
        %1611 = vmatprep.subr.bf16.mxu0 0
        %1612 = vmatpush1.bf16.msra.mxu0 0
        %1613 = vmatprep.subr.bf16.mxu0 0
        %1614 = vmatpush1.bf16.msra.mxu0 0
        %1615 = vmatprep.subr.bf16.mxu0 0
        %1616 = vmatpush1.bf16.msra.mxu0 0
        %1617 = vmatprep.subr.bf16.mxu0 0
        %1618 = vmatpush1.bf16.msra.mxu0 0
        %1619 = vmatprep.mubr.bf16.mxu0 0
        %1620 = vmatmul.mubr.bf16.gmra.mrb[0].mxu0 %v1545
        %v1621 = vpop.f32.mrb[0].mxu0
        %v1622 = vadd.f32 0.0, %v1621
        %v1623 = vpop.f32.mrb[0].mxu0
        %v1624 = vpop.f32.mrb[0].mxu0
        %v1625 = vpop.f32.mrb[0].mxu0
        %1626 = vdwg.mxu0
        %1627 = vmatprep.subr.bf16.mxu0 0
        %1628 = vmatpush1.bf16.msra.mxu0 %v1113
        %1629 = vmatprep.subr.bf16.mxu0 0
        %1630 = vmatpush1.bf16.msra.mxu0 %v1114
        %1631 = vmatprep.subr.bf16.mxu0 0
        %1632 = vmatpush1.bf16.msra.mxu0 0
        %1633 = vmatprep.subr.bf16.mxu0 0
        %1634 = vmatpush1.bf16.msra.mxu0 0
        %1635 = vmatprep.subr.bf16.mxu0 0
        %1636 = vmatpush1.bf16.msra.mxu0 0
        %1637 = vmatprep.subr.bf16.mxu0 0
        %1638 = vmatpush1.bf16.msra.mxu0 0
        %1639 = vmatprep.subr.bf16.mxu0 0
        %1640 = vmatpush1.bf16.msra.mxu0 0
        %1641 = vmatprep.subr.bf16.mxu0 0
        %1642 = vmatpush1.bf16.msra.mxu0 0
        %1643 = vmatprep.subr.bf16.mxu0 0
        %1644 = vmatpush1.bf16.msra.mxu0 0
        %1645 = vmatprep.subr.bf16.mxu0 0
        %1646 = vmatpush1.bf16.msra.mxu0 0
        %1647 = vmatprep.subr.bf16.mxu0 0
        %1648 = vmatpush1.bf16.msra.mxu0 0
        %1649 = vmatprep.subr.bf16.mxu0 0
        %1650 = vmatpush1.bf16.msra.mxu0 0
        %1651 = vmatprep.subr.bf16.mxu0 0
        %1652 = vmatpush1.bf16.msra.mxu0 0
        %1653 = vmatprep.subr.bf16.mxu0 0
        %1654 = vmatpush1.bf16.msra.mxu0 0
        %1655 = vmatprep.subr.bf16.mxu0 0
        %1656 = vmatpush1.bf16.msra.mxu0 0
        %1657 = vmatprep.subr.bf16.mxu0 0
        %1658 = vmatpush1.bf16.msra.mxu0 0
        %1659 = vmatprep.mubr.bf16.mxu0 0
        %1660 = vmatmul.mubr.bf16.gmra.mrb[0].mxu0 %v1545
        %v1661 = vpop.f32.mrb[0].mxu0
        %v1662 = vadd.f32 0.0, %v1661
        %v1663 = vpop.f32.mrb[0].mxu0
        %v1664 = vpop.f32.mrb[0].mxu0
        %v1665 = vpop.f32.mrb[0].mxu0
        %1666 = vdwg.mxu0
        %1667 = vmatprep.subr.bf16.mxu0 0
        %1668 = vmatpush1.bf16.msra.mxu0 %v1165
        %1669 = vmatprep.subr.bf16.mxu0 0
        %1670 = vmatpush1.bf16.msra.mxu0 %v1166
        %1671 = vmatprep.subr.bf16.mxu0 0
        %1672 = vmatpush1.bf16.msra.mxu0 0
        %1673 = vmatprep.subr.bf16.mxu0 0
        %1674 = vmatpush1.bf16.msra.mxu0 0
        %1675 = vmatprep.subr.bf16.mxu0 0
        %1676 = vmatpush1.bf16.msra.mxu0 0
        %1677 = vmatprep.subr.bf16.mxu0 0
        %1678 = vmatpush1.bf16.msra.mxu0 0
        %1679 = vmatprep.subr.bf16.mxu0 0
        %1680 = vmatpush1.bf16.msra.mxu0 0
        %1681 = vmatprep.subr.bf16.mxu0 0
        %1682 = vmatpush1.bf16.msra.mxu0 0
        %1683 = vmatprep.subr.bf16.mxu0 0
        %1684 = vmatpush1.bf16.msra.mxu0 0
        %1685 = vmatprep.subr.bf16.mxu0 0
        %1686 = vmatpush1.bf16.msra.mxu0 0
        %1687 = vmatprep.subr.bf16.mxu0 0
        %1688 = vmatpush1.bf16.msra.mxu0 0
        %1689 = vmatprep.subr.bf16.mxu0 0
        %1690 = vmatpush1.bf16.msra.mxu0 0
        %1691 = vmatprep.subr.bf16.mxu0 0
        %1692 = vmatpush1.bf16.msra.mxu0 0
        %1693 = vmatprep.subr.bf16.mxu0 0
        %1694 = vmatpush1.bf16.msra.mxu0 0
        %1695 = vmatprep.subr.bf16.mxu0 0
        %1696 = vmatpush1.bf16.msra.mxu0 0
        %1697 = vmatprep.subr.bf16.mxu0 0
        %1698 = vmatpush1.bf16.msra.mxu0 0
        %1699 = vmatprep.mubr.bf16.mxu0 0
        %1700 = vmatmul.mubr.bf16.gmra.mrb[0].mxu0 %v1545
        %v1701 = vpop.f32.mrb[0].mxu0
        %v1702 = vadd.f32 0.0, %v1701
        %v1703 = vpop.f32.mrb[0].mxu0
        %v1704 = vpop.f32.mrb[0].mxu0
        %v1705 = vpop.f32.mrb[0].mxu0
        %1706 = vdwg.mxu0
        %v1707 = vpack.c.bf16 %v1209, %v1209
        %v1708 = vpack.c.bf16 %v1210, %v1210
        %v1709 = vpack.c.bf16 %v1211, %v1211
        %v1710 = vpack.c.bf16 %v1212, %v1212
        %v1711 = vpack.c.bf16 %v1418, %v1418
        %v1712 = vpack.c.bf16 %v1458, %v1458
        %v1713 = vpack.c.bf16 %v1498, %v1498
        %v1714 = vpack.c.bf16 %v1538, %v1538
        %vm1715 = vcmask 64512
        %v1717 = vsel %vm1715, %v1707, 0
        %v1720 = vsel %vm1715, %v1711, 0
        %1722 = vmatprep.subr.bf16.mxu0 0
        %1723 = vmatpush1.bf16.xpose.msra.mxu0 %v1720
        %1724 = vmatprep.subr.bf16.mxu0 0
        %1725 = vmatpush1.bf16.xpose.msra.mxu0 0
        %1726 = vmatprep.subr.bf16.mxu0 0
        %1727 = vmatpush1.bf16.xpose.msra.mxu0 0
        %1728 = vmatprep.subr.bf16.mxu0 0
        %1729 = vmatpush1.bf16.xpose.msra.mxu0 0
        %1730 = vmatprep.subr.bf16.mxu0 0
        %1731 = vmatpush1.bf16.xpose.msra.mxu0 0
        %1732 = vmatprep.subr.bf16.mxu0 0
        %1733 = vmatpush1.bf16.xpose.msra.mxu0 0
        %1734 = vmatprep.subr.bf16.mxu0 0
        %1735 = vmatpush1.bf16.xpose.msra.mxu0 0
        %1736 = vmatprep.subr.bf16.mxu0 0
        %1737 = vmatpush1.bf16.xpose.msra.mxu0 0
        %1738 = vmatprep.subr.bf16.mxu0 0
        %1739 = vmatpush1.bf16.xpose.msra.mxu0 0
        %1740 = vmatprep.subr.bf16.mxu0 0
        %1741 = vmatpush1.bf16.xpose.msra.mxu0 0
        %1742 = vmatprep.subr.bf16.mxu0 0
        %1743 = vmatpush1.bf16.xpose.msra.mxu0 0
        %1744 = vmatprep.subr.bf16.mxu0 0
        %1745 = vmatpush1.bf16.xpose.msra.mxu0 0
        %1746 = vmatprep.subr.bf16.mxu0 0
        %1747 = vmatpush1.bf16.xpose.msra.mxu0 0
        %1748 = vmatprep.subr.bf16.mxu0 0
        %1749 = vmatpush1.bf16.xpose.msra.mxu0 0
        %1750 = vmatprep.subr.bf16.mxu0 0
        %1751 = vmatpush1.bf16.xpose.msra.mxu0 0
        %1752 = vmatprep.subr.bf16.mxu0 0
        %1753 = vmatpush1.bf16.xpose.msra.mxu0 0
        %1754 = vmatprep.mubr.bf16.mxu0 0
        %1755 = vmatmul.mubr.bf16.gmra.mrb[0].mxu0 %v1717
        %v1756 = vpop.f32.mrb[0].mxu0
        %v1757 = vadd.f32 0.0, %v1756
        %v1758 = vpop.f32.mrb[0].mxu0
        %v1759 = vpop.f32.mrb[0].mxu0
        %v1760 = vpop.f32.mrb[0].mxu0
        %1761 = vdwg.mxu0
        %v1763 = vsel %vm1715, %v1708, 0
        %v1766 = vsel %vm1715, %v1712, 0
        %1768 = vmatprep.subr.bf16.mxu0 0
        %1769 = vmatpush1.bf16.xpose.msra.mxu0 %v1766
        %1770 = vmatprep.subr.bf16.mxu0 0
        %1771 = vmatpush1.bf16.xpose.msra.mxu0 0
        %1772 = vmatprep.subr.bf16.mxu0 0
        %1773 = vmatpush1.bf16.xpose.msra.mxu0 0
        %1774 = vmatprep.subr.bf16.mxu0 0
        %1775 = vmatpush1.bf16.xpose.msra.mxu0 0
        %1776 = vmatprep.subr.bf16.mxu0 0
        %1777 = vmatpush1.bf16.xpose.msra.mxu0 0
        %1778 = vmatprep.subr.bf16.mxu0 0
        %1779 = vmatpush1.bf16.xpose.msra.mxu0 0
        %1780 = vmatprep.subr.bf16.mxu0 0
        %1781 = vmatpush1.bf16.xpose.msra.mxu0 0
        %1782 = vmatprep.subr.bf16.mxu0 0
        %1783 = vmatpush1.bf16.xpose.msra.mxu0 0
        %1784 = vmatprep.subr.bf16.mxu0 0
        %1785 = vmatpush1.bf16.xpose.msra.mxu0 0
        %1786 = vmatprep.subr.bf16.mxu0 0
        %1787 = vmatpush1.bf16.xpose.msra.mxu0 0
        %1788 = vmatprep.subr.bf16.mxu0 0
        %1789 = vmatpush1.bf16.xpose.msra.mxu0 0
        %1790 = vmatprep.subr.bf16.mxu0 0
        %1791 = vmatpush1.bf16.xpose.msra.mxu0 0
        %1792 = vmatprep.subr.bf16.mxu0 0
        %1793 = vmatpush1.bf16.xpose.msra.mxu0 0
        %1794 = vmatprep.subr.bf16.mxu0 0
        %1795 = vmatpush1.bf16.xpose.msra.mxu0 0
        %1796 = vmatprep.subr.bf16.mxu0 0
        %1797 = vmatpush1.bf16.xpose.msra.mxu0 0
        %1798 = vmatprep.subr.bf16.mxu0 0
        %1799 = vmatpush1.bf16.xpose.msra.mxu0 0
        %1800 = vmatprep.mubr.bf16.mxu0 0
        %1801 = vmatmul.mubr.bf16.gmra.mrb[0].mxu0 %v1763
        %v1802 = vpop.f32.mrb[0].mxu0
        %v1803 = vadd.f32 0.0, %v1802
        %v1804 = vpop.f32.mrb[0].mxu0
        %v1805 = vpop.f32.mrb[0].mxu0
        %v1806 = vpop.f32.mrb[0].mxu0
        %1807 = vdwg.mxu0
        %v1809 = vsel %vm1715, %v1709, 0
        %v1812 = vsel %vm1715, %v1713, 0
        %1814 = vmatprep.subr.bf16.mxu0 0
        %1815 = vmatpush1.bf16.xpose.msra.mxu0 %v1812
        %1816 = vmatprep.subr.bf16.mxu0 0
        %1817 = vmatpush1.bf16.xpose.msra.mxu0 0
        %1818 = vmatprep.subr.bf16.mxu0 0
        %1819 = vmatpush1.bf16.xpose.msra.mxu0 0
        %1820 = vmatprep.subr.bf16.mxu0 0
        %1821 = vmatpush1.bf16.xpose.msra.mxu0 0
        %1822 = vmatprep.subr.bf16.mxu0 0
        %1823 = vmatpush1.bf16.xpose.msra.mxu0 0
        %1824 = vmatprep.subr.bf16.mxu0 0
        %1825 = vmatpush1.bf16.xpose.msra.mxu0 0
        %1826 = vmatprep.subr.bf16.mxu0 0
        %1827 = vmatpush1.bf16.xpose.msra.mxu0 0
        %1828 = vmatprep.subr.bf16.mxu0 0
        %1829 = vmatpush1.bf16.xpose.msra.mxu0 0
        %1830 = vmatprep.subr.bf16.mxu0 0
        %1831 = vmatpush1.bf16.xpose.msra.mxu0 0
        %1832 = vmatprep.subr.bf16.mxu0 0
        %1833 = vmatpush1.bf16.xpose.msra.mxu0 0
        %1834 = vmatprep.subr.bf16.mxu0 0
        %1835 = vmatpush1.bf16.xpose.msra.mxu0 0
        %1836 = vmatprep.subr.bf16.mxu0 0
        %1837 = vmatpush1.bf16.xpose.msra.mxu0 0
        %1838 = vmatprep.subr.bf16.mxu0 0
        %1839 = vmatpush1.bf16.xpose.msra.mxu0 0
        %1840 = vmatprep.subr.bf16.mxu0 0
        %1841 = vmatpush1.bf16.xpose.msra.mxu0 0
        %1842 = vmatprep.subr.bf16.mxu0 0
        %1843 = vmatpush1.bf16.xpose.msra.mxu0 0
        %1844 = vmatprep.subr.bf16.mxu0 0
        %1845 = vmatpush1.bf16.xpose.msra.mxu0 0
        %1846 = vmatprep.mubr.bf16.mxu0 0
        %1847 = vmatmul.mubr.bf16.gmra.mrb[0].mxu0 %v1809
        %v1848 = vpop.f32.mrb[0].mxu0
        %v1849 = vadd.f32 0.0, %v1848
        %v1850 = vpop.f32.mrb[0].mxu0
        %v1851 = vpop.f32.mrb[0].mxu0
        %v1852 = vpop.f32.mrb[0].mxu0
        %1853 = vdwg.mxu0
        %v1855 = vsel %vm1715, %v1710, 0
        %v1858 = vsel %vm1715, %v1714, 0
        %1860 = vmatprep.subr.bf16.mxu0 0
        %1861 = vmatpush1.bf16.xpose.msra.mxu0 %v1858
        %1862 = vmatprep.subr.bf16.mxu0 0
        %1863 = vmatpush1.bf16.xpose.msra.mxu0 0
        %1864 = vmatprep.subr.bf16.mxu0 0
        %1865 = vmatpush1.bf16.xpose.msra.mxu0 0
        %1866 = vmatprep.subr.bf16.mxu0 0
        %1867 = vmatpush1.bf16.xpose.msra.mxu0 0
        %1868 = vmatprep.subr.bf16.mxu0 0
        %1869 = vmatpush1.bf16.xpose.msra.mxu0 0
        %1870 = vmatprep.subr.bf16.mxu0 0
        %1871 = vmatpush1.bf16.xpose.msra.mxu0 0
        %1872 = vmatprep.subr.bf16.mxu0 0
        %1873 = vmatpush1.bf16.xpose.msra.mxu0 0
        %1874 = vmatprep.subr.bf16.mxu0 0
        %1875 = vmatpush1.bf16.xpose.msra.mxu0 0
        %1876 = vmatprep.subr.bf16.mxu0 0
        %1877 = vmatpush1.bf16.xpose.msra.mxu0 0
        %1878 = vmatprep.subr.bf16.mxu0 0
        %1879 = vmatpush1.bf16.xpose.msra.mxu0 0
        %1880 = vmatprep.subr.bf16.mxu0 0
        %1881 = vmatpush1.bf16.xpose.msra.mxu0 0
        %1882 = vmatprep.subr.bf16.mxu0 0
        %1883 = vmatpush1.bf16.xpose.msra.mxu0 0
        %1884 = vmatprep.subr.bf16.mxu0 0
        %1885 = vmatpush1.bf16.xpose.msra.mxu0 0
        %1886 = vmatprep.subr.bf16.mxu0 0
        %1887 = vmatpush1.bf16.xpose.msra.mxu0 0
        %1888 = vmatprep.subr.bf16.mxu0 0
        %1889 = vmatpush1.bf16.xpose.msra.mxu0 0
        %1890 = vmatprep.subr.bf16.mxu0 0
        %1891 = vmatpush1.bf16.xpose.msra.mxu0 0
        %1892 = vmatprep.mubr.bf16.mxu0 0
        %1893 = vmatmul.mubr.bf16.gmra.mrb[0].mxu0 %v1855
        %v1894 = vpop.f32.mrb[0].mxu0
        %v1895 = vadd.f32 0.0, %v1894
        %v1896 = vpop.f32.mrb[0].mxu0
        %v1897 = vpop.f32.mrb[0].mxu0
        %v1898 = vpop.f32.mrb[0].mxu0
        %1899 = vdwg.mxu0
        %v1900 = vsel %vm1715, %v1757, -inf
        %1901 = vmax.xlane.f32.xlu0 %v1900
        %v1902 = vpop.xlane.xlu0 %1901
        %v1903 = vsel %vm1715, %v1803, -inf
        %1904 = vmax.xlane.f32.xlu0 %v1903
        %v1905 = vpop.xlane.xlu0 %1904
        %v1906 = vsel %vm1715, %v1849, -inf
        %1907 = vmax.xlane.f32.xlu0 %v1906
        %v1908 = vpop.xlane.xlu0 %1907
        %v1909 = vsel %vm1715, %v1895, -inf
        %1910 = vmax.xlane.f32.xlu0 %v1909
        %v1911 = vpop.xlane.xlu0 %1910
        %v1912 = vsub.f32 %v1757, %v1902
        %v1913 = vsub.f32 %v1803, %v1905
        %v1914 = vsub.f32 %v1849, %v1908
        %v1915 = vsub.f32 %v1895, %v1911
        %v1916 = vmul.f32 %v1912, 1.442695
        %v1917 = vpow.pop %v1916
        %v1918 = vmul.f32 %v1913, 1.442695
        %v1919 = vpow.pop %v1918
        %v1920 = vmul.f32 %v1914, 1.442695
        %v1921 = vpow.pop %v1920
        %v1922 = vmul.f32 %v1915, 1.442695
        %v1923 = vpow.pop %v1922
        %v1924 = vsel %vm1715, %v1917, 0.0
        %1925 = vadd.xlane.f32.xlu0 %v1924
        %v1926 = vpop.xlane.xlu0 %1925
        %v1927 = vsel %vm1715, %v1919, 0.0
        %1928 = vadd.xlane.f32.xlu0 %v1927
        %v1929 = vpop.xlane.xlu0 %1928
        %v1930 = vsel %vm1715, %v1921, 0.0
        %1931 = vadd.xlane.f32.xlu0 %v1930
        %v1932 = vpop.xlane.xlu0 %1931
        %v1933 = vsel %vm1715, %v1923, 0.0
        %1934 = vadd.xlane.f32.xlu0 %v1933
        %v1935 = vpop.xlane.xlu0 %1934
        %v1936 = vrcp.pop %v1926
        %v1937 = vrcp.pop %v1929
        %v1938 = vrcp.pop %v1932
        %v1939 = vrcp.pop %v1935
        %v1940 = vmul.f32 %v1917, %v1936
        %v1941 = vmul.f32 %v1919, %v1937
        %v1942 = vmul.f32 %v1921, %v1938
        %v1943 = vmul.f32 %v1923, %v1939
        %v1944 = vpack.c.bf16 %v1940, %v1940
        %v1945 = vpack.c.bf16 %v1941, %v1941
        %v1946 = vpack.c.bf16 %v1942, %v1942
        %v1947 = vpack.c.bf16 %v1943, %v1943
        %v1948 = vpack.c.bf16 %v1582, %v1582
        %v1949 = vpack.c.bf16 %v1622, %v1622
        %v1950 = vpack.c.bf16 %v1662, %v1662
        %v1951 = vpack.c.bf16 %v1702, %v1702
        %v1953 = vsel %vm1715, %v1944, 0
        %vm1955 = vcmask 1043456
        %v1957 = vsel %vm1955, %v1948, 0
        %1959 = vmatprep.subr.bf16.mxu0 0
        %1960 = vmatpush1.bf16.msra.mxu0 %v1957
        %1961 = vmatprep.subr.bf16.mxu0 0
        %1962 = vmatpush1.bf16.msra.mxu0 0
        %1963 = vmatprep.subr.bf16.mxu0 0
        %1964 = vmatpush1.bf16.msra.mxu0 0
        %1965 = vmatprep.subr.bf16.mxu0 0
        %1966 = vmatpush1.bf16.msra.mxu0 0
        %1967 = vmatprep.subr.bf16.mxu0 0
        %1968 = vmatpush1.bf16.msra.mxu0 0
        %1969 = vmatprep.subr.bf16.mxu0 0
        %1970 = vmatpush1.bf16.msra.mxu0 0
        %1971 = vmatprep.subr.bf16.mxu0 0
        %1972 = vmatpush1.bf16.msra.mxu0 0
        %1973 = vmatprep.subr.bf16.mxu0 0
        %1974 = vmatpush1.bf16.msra.mxu0 0
        %1975 = vmatprep.subr.bf16.mxu0 0
        %1976 = vmatpush1.bf16.msra.mxu0 0
        %1977 = vmatprep.subr.bf16.mxu0 0
        %1978 = vmatpush1.bf16.msra.mxu0 0
        %1979 = vmatprep.subr.bf16.mxu0 0
        %1980 = vmatpush1.bf16.msra.mxu0 0
        %1981 = vmatprep.subr.bf16.mxu0 0
        %1982 = vmatpush1.bf16.msra.mxu0 0
        %1983 = vmatprep.subr.bf16.mxu0 0
        %1984 = vmatpush1.bf16.msra.mxu0 0
        %1985 = vmatprep.subr.bf16.mxu0 0
        %1986 = vmatpush1.bf16.msra.mxu0 0
        %1987 = vmatprep.subr.bf16.mxu0 0
        %1988 = vmatpush1.bf16.msra.mxu0 0
        %1989 = vmatprep.subr.bf16.mxu0 0
        %1990 = vmatpush1.bf16.msra.mxu0 0
        %1991 = vmatprep.mubr.bf16.mxu0 0
        %1992 = vmatmul.mubr.bf16.gmra.mrb[0].mxu0 %v1953
        %v1993 = vpop.f32.mrb[0].mxu0
        %v1994 = vadd.f32 0.0, %v1993
        %v1995 = vpop.f32.mrb[0].mxu0
        %v1996 = vpop.f32.mrb[0].mxu0
        %v1997 = vpop.f32.mrb[0].mxu0
        %1998 = vdwg.mxu0
        %v2000 = vsel %vm1715, %v1945, 0
        %v2003 = vsel %vm1955, %v1949, 0
        %2005 = vmatprep.subr.bf16.mxu0 0
        %2006 = vmatpush1.bf16.msra.mxu0 %v2003
        %2007 = vmatprep.subr.bf16.mxu0 0
        %2008 = vmatpush1.bf16.msra.mxu0 0
        %2009 = vmatprep.subr.bf16.mxu0 0
        %2010 = vmatpush1.bf16.msra.mxu0 0
        %2011 = vmatprep.subr.bf16.mxu0 0
        %2012 = vmatpush1.bf16.msra.mxu0 0
        %2013 = vmatprep.subr.bf16.mxu0 0
        %2014 = vmatpush1.bf16.msra.mxu0 0
        %2015 = vmatprep.subr.bf16.mxu0 0
        %2016 = vmatpush1.bf16.msra.mxu0 0
        %2017 = vmatprep.subr.bf16.mxu0 0
        %2018 = vmatpush1.bf16.msra.mxu0 0
        %2019 = vmatprep.subr.bf16.mxu0 0
        %2020 = vmatpush1.bf16.msra.mxu0 0
        %2021 = vmatprep.subr.bf16.mxu0 0
        %2022 = vmatpush1.bf16.msra.mxu0 0
        %2023 = vmatprep.subr.bf16.mxu0 0
        %2024 = vmatpush1.bf16.msra.mxu0 0
        %2025 = vmatprep.subr.bf16.mxu0 0
        %2026 = vmatpush1.bf16.msra.mxu0 0
        %2027 = vmatprep.subr.bf16.mxu0 0
        %2028 = vmatpush1.bf16.msra.mxu0 0
        %2029 = vmatprep.subr.bf16.mxu0 0
        %2030 = vmatpush1.bf16.msra.mxu0 0
        %2031 = vmatprep.subr.bf16.mxu0 0
        %2032 = vmatpush1.bf16.msra.mxu0 0
        %2033 = vmatprep.subr.bf16.mxu0 0
        %2034 = vmatpush1.bf16.msra.mxu0 0
        %2035 = vmatprep.subr.bf16.mxu0 0
        %2036 = vmatpush1.bf16.msra.mxu0 0
        %2037 = vmatprep.mubr.bf16.mxu0 0
        %2038 = vmatmul.mubr.bf16.gmra.mrb[0].mxu0 %v2000
        %v2039 = vpop.f32.mrb[0].mxu0
        %v2040 = vadd.f32 0.0, %v2039
        %v2041 = vpop.f32.mrb[0].mxu0
        %v2042 = vpop.f32.mrb[0].mxu0
        %v2043 = vpop.f32.mrb[0].mxu0
        %2044 = vdwg.mxu0
        %v2046 = vsel %vm1715, %v1946, 0
        %v2049 = vsel %vm1955, %v1950, 0
        %2051 = vmatprep.subr.bf16.mxu0 0
        %2052 = vmatpush1.bf16.msra.mxu0 %v2049
        %2053 = vmatprep.subr.bf16.mxu0 0
        %2054 = vmatpush1.bf16.msra.mxu0 0
        %2055 = vmatprep.subr.bf16.mxu0 0
        %2056 = vmatpush1.bf16.msra.mxu0 0
        %2057 = vmatprep.subr.bf16.mxu0 0
        %2058 = vmatpush1.bf16.msra.mxu0 0
        %2059 = vmatprep.subr.bf16.mxu0 0
        %2060 = vmatpush1.bf16.msra.mxu0 0
        %2061 = vmatprep.subr.bf16.mxu0 0
        %2062 = vmatpush1.bf16.msra.mxu0 0
        %2063 = vmatprep.subr.bf16.mxu0 0
        %2064 = vmatpush1.bf16.msra.mxu0 0
        %2065 = vmatprep.subr.bf16.mxu0 0
        %2066 = vmatpush1.bf16.msra.mxu0 0
        %2067 = vmatprep.subr.bf16.mxu0 0
        %2068 = vmatpush1.bf16.msra.mxu0 0
        %2069 = vmatprep.subr.bf16.mxu0 0
        %2070 = vmatpush1.bf16.msra.mxu0 0
        %2071 = vmatprep.subr.bf16.mxu0 0
        %2072 = vmatpush1.bf16.msra.mxu0 0
        %2073 = vmatprep.subr.bf16.mxu0 0
        %2074 = vmatpush1.bf16.msra.mxu0 0
        %2075 = vmatprep.subr.bf16.mxu0 0
        %2076 = vmatpush1.bf16.msra.mxu0 0
        %2077 = vmatprep.subr.bf16.mxu0 0
        %2078 = vmatpush1.bf16.msra.mxu0 0
        %2079 = vmatprep.subr.bf16.mxu0 0
        %2080 = vmatpush1.bf16.msra.mxu0 0
        %2081 = vmatprep.subr.bf16.mxu0 0
        %2082 = vmatpush1.bf16.msra.mxu0 0
        %2083 = vmatprep.mubr.bf16.mxu0 0
        %2084 = vmatmul.mubr.bf16.gmra.mrb[0].mxu0 %v2046
        %v2085 = vpop.f32.mrb[0].mxu0
        %v2086 = vadd.f32 0.0, %v2085
        %v2087 = vpop.f32.mrb[0].mxu0
        %v2088 = vpop.f32.mrb[0].mxu0
        %v2089 = vpop.f32.mrb[0].mxu0
        %2090 = vdwg.mxu0
        %v2092 = vsel %vm1715, %v1947, 0
        %v2095 = vsel %vm1955, %v1951, 0
        %2097 = vmatprep.subr.bf16.mxu0 0
        %2098 = vmatpush1.bf16.msra.mxu0 %v2095
        %2099 = vmatprep.subr.bf16.mxu0 0
        %2100 = vmatpush1.bf16.msra.mxu0 0
        %2101 = vmatprep.subr.bf16.mxu0 0
        %2102 = vmatpush1.bf16.msra.mxu0 0
        %2103 = vmatprep.subr.bf16.mxu0 0
        %2104 = vmatpush1.bf16.msra.mxu0 0
        %2105 = vmatprep.subr.bf16.mxu0 0
        %2106 = vmatpush1.bf16.msra.mxu0 0
        %2107 = vmatprep.subr.bf16.mxu0 0
        %2108 = vmatpush1.bf16.msra.mxu0 0
        %2109 = vmatprep.subr.bf16.mxu0 0
        %2110 = vmatpush1.bf16.msra.mxu0 0
        %2111 = vmatprep.subr.bf16.mxu0 0
        %2112 = vmatpush1.bf16.msra.mxu0 0
        %2113 = vmatprep.subr.bf16.mxu0 0
        %2114 = vmatpush1.bf16.msra.mxu0 0
        %2115 = vmatprep.subr.bf16.mxu0 0
        %2116 = vmatpush1.bf16.msra.mxu0 0
        %2117 = vmatprep.subr.bf16.mxu0 0
        %2118 = vmatpush1.bf16.msra.mxu0 0
        %2119 = vmatprep.subr.bf16.mxu0 0
        %2120 = vmatpush1.bf16.msra.mxu0 0
        %2121 = vmatprep.subr.bf16.mxu0 0
        %2122 = vmatpush1.bf16.msra.mxu0 0
        %2123 = vmatprep.subr.bf16.mxu0 0
        %2124 = vmatpush1.bf16.msra.mxu0 0
        %2125 = vmatprep.subr.bf16.mxu0 0
        %2126 = vmatpush1.bf16.msra.mxu0 0
        %2127 = vmatprep.subr.bf16.mxu0 0
        %2128 = vmatpush1.bf16.msra.mxu0 0
        %2129 = vmatprep.mubr.bf16.mxu0 0
        %2130 = vmatmul.mubr.bf16.gmra.mrb[0].mxu0 %v2092
        %v2131 = vpop.f32.mrb[0].mxu0
        %v2132 = vadd.f32 0.0, %v2131
        %v2133 = vpop.f32.mrb[0].mxu0
        %v2134 = vpop.f32.mrb[0].mxu0
        %v2135 = vpop.f32.mrb[0].mxu0
        %2136 = vdwg.mxu0
        %v2137 = vpack.c.bf16 %v1994, %v1994
        %v2138 = vpack.c.bf16 %v2040, %v2040
        %v2139 = vpack.c.bf16 %v2086, %v2086
        %v2140 = vpack.c.bf16 %v2132, %v2132
        %v2141 = vld [vmem:[%s9] sm:$0xf]
        %v2142 = vld [vmem:[%s9 + $0x4] sm:$0xf]
        %v2143 = vld [vmem:[%s9 + $0x8] sm:$0xf]
        %v2144 = vld [vmem:[%s9 + $0xc] sm:$0xf]
        %v2146 = vsel %vm1715, %v2137, 0
        %v2149 = vsel %vm1955, %v2141, 0
        %2151 = vmatprep.subr.bf16.mxu0 0
        %2152 = vmatpush1.bf16.msra.mxu0 %v2149
        %2153 = vmatprep.subr.bf16.mxu0 0
        %2154 = vmatpush1.bf16.msra.mxu0 0
        %2155 = vmatprep.subr.bf16.mxu0 0
        %2156 = vmatpush1.bf16.msra.mxu0 0
        %2157 = vmatprep.subr.bf16.mxu0 0
        %2158 = vmatpush1.bf16.msra.mxu0 0
        %2159 = vmatprep.subr.bf16.mxu0 0
        %2160 = vmatpush1.bf16.msra.mxu0 0
        %2161 = vmatprep.subr.bf16.mxu0 0
        %2162 = vmatpush1.bf16.msra.mxu0 0
        %2163 = vmatprep.subr.bf16.mxu0 0
        %2164 = vmatpush1.bf16.msra.mxu0 0
        %2165 = vmatprep.subr.bf16.mxu0 0
        %2166 = vmatpush1.bf16.msra.mxu0 0
        %2167 = vmatprep.subr.bf16.mxu0 0
        %2168 = vmatpush1.bf16.msra.mxu0 0
        %2169 = vmatprep.subr.bf16.mxu0 0
        %2170 = vmatpush1.bf16.msra.mxu0 0
        %2171 = vmatprep.subr.bf16.mxu0 0
        %2172 = vmatpush1.bf16.msra.mxu0 0
        %2173 = vmatprep.subr.bf16.mxu0 0
        %2174 = vmatpush1.bf16.msra.mxu0 0
        %2175 = vmatprep.subr.bf16.mxu0 0
        %2176 = vmatpush1.bf16.msra.mxu0 0
        %2177 = vmatprep.subr.bf16.mxu0 0
        %2178 = vmatpush1.bf16.msra.mxu0 0
        %2179 = vmatprep.subr.bf16.mxu0 0
        %2180 = vmatpush1.bf16.msra.mxu0 0
        %2181 = vmatprep.subr.bf16.mxu0 0
        %2182 = vmatpush1.bf16.msra.mxu0 0
        %2183 = vmatprep.mubr.bf16.mxu0 0
        %2184 = vmatmul.mubr.bf16.gmra.mrb[0].mxu0 %v2146
        %v2185 = vpop.f32.mrb[0].mxu0
        %v2186 = vadd.f32 0.0, %v2185
        %v2187 = vpop.f32.mrb[0].mxu0
        %v2188 = vpop.f32.mrb[0].mxu0
        %v2189 = vpop.f32.mrb[0].mxu0
        %2190 = vdwg.mxu0
        %v2192 = vsel %vm1715, %v2138, 0
        %v2195 = vsel %vm1955, %v2142, 0
        %2197 = vmatprep.subr.bf16.mxu0 0
        %2198 = vmatpush1.bf16.msra.mxu0 %v2195
        %2199 = vmatprep.subr.bf16.mxu0 0
        %2200 = vmatpush1.bf16.msra.mxu0 0
        %2201 = vmatprep.subr.bf16.mxu0 0
        %2202 = vmatpush1.bf16.msra.mxu0 0
        %2203 = vmatprep.subr.bf16.mxu0 0
        %2204 = vmatpush1.bf16.msra.mxu0 0
        %2205 = vmatprep.subr.bf16.mxu0 0
        %2206 = vmatpush1.bf16.msra.mxu0 0
        %2207 = vmatprep.subr.bf16.mxu0 0
        %2208 = vmatpush1.bf16.msra.mxu0 0
        %2209 = vmatprep.subr.bf16.mxu0 0
        %2210 = vmatpush1.bf16.msra.mxu0 0
        %2211 = vmatprep.subr.bf16.mxu0 0
        %2212 = vmatpush1.bf16.msra.mxu0 0
        %2213 = vmatprep.subr.bf16.mxu0 0
        %2214 = vmatpush1.bf16.msra.mxu0 0
        %2215 = vmatprep.subr.bf16.mxu0 0
        %2216 = vmatpush1.bf16.msra.mxu0 0
        %2217 = vmatprep.subr.bf16.mxu0 0
        %2218 = vmatpush1.bf16.msra.mxu0 0
        %2219 = vmatprep.subr.bf16.mxu0 0
        %2220 = vmatpush1.bf16.msra.mxu0 0
        %2221 = vmatprep.subr.bf16.mxu0 0
        %2222 = vmatpush1.bf16.msra.mxu0 0
        %2223 = vmatprep.subr.bf16.mxu0 0
        %2224 = vmatpush1.bf16.msra.mxu0 0
        %2225 = vmatprep.subr.bf16.mxu0 0
        %2226 = vmatpush1.bf16.msra.mxu0 0
        %2227 = vmatprep.subr.bf16.mxu0 0
        %2228 = vmatpush1.bf16.msra.mxu0 0
        %2229 = vmatprep.mubr.bf16.mxu0 0
        %2230 = vmatmul.mubr.bf16.gmra.mrb[0].mxu0 %v2192
        %v2231 = vpop.f32.mrb[0].mxu0
        %v2232 = vadd.f32 0.0, %v2231
        %v2233 = vpop.f32.mrb[0].mxu0
        %v2234 = vpop.f32.mrb[0].mxu0
        %v2235 = vpop.f32.mrb[0].mxu0
        %2236 = vdwg.mxu0
        %v2238 = vsel %vm1715, %v2139, 0
        %v2241 = vsel %vm1955, %v2143, 0
        %2243 = vmatprep.subr.bf16.mxu0 0
        %2244 = vmatpush1.bf16.msra.mxu0 %v2241
        %2245 = vmatprep.subr.bf16.mxu0 0
        %2246 = vmatpush1.bf16.msra.mxu0 0
        %2247 = vmatprep.subr.bf16.mxu0 0
        %2248 = vmatpush1.bf16.msra.mxu0 0
        %2249 = vmatprep.subr.bf16.mxu0 0
        %2250 = vmatpush1.bf16.msra.mxu0 0
        %2251 = vmatprep.subr.bf16.mxu0 0
        %2252 = vmatpush1.bf16.msra.mxu0 0
        %2253 = vmatprep.subr.bf16.mxu0 0
        %2254 = vmatpush1.bf16.msra.mxu0 0
        %2255 = vmatprep.subr.bf16.mxu0 0
        %2256 = vmatpush1.bf16.msra.mxu0 0
        %2257 = vmatprep.subr.bf16.mxu0 0
        %2258 = vmatpush1.bf16.msra.mxu0 0
        %2259 = vmatprep.subr.bf16.mxu0 0
        %2260 = vmatpush1.bf16.msra.mxu0 0
        %2261 = vmatprep.subr.bf16.mxu0 0
        %2262 = vmatpush1.bf16.msra.mxu0 0
        %2263 = vmatprep.subr.bf16.mxu0 0
        %2264 = vmatpush1.bf16.msra.mxu0 0
        %2265 = vmatprep.subr.bf16.mxu0 0
        %2266 = vmatpush1.bf16.msra.mxu0 0
        %2267 = vmatprep.subr.bf16.mxu0 0
        %2268 = vmatpush1.bf16.msra.mxu0 0
        %2269 = vmatprep.subr.bf16.mxu0 0
        %2270 = vmatpush1.bf16.msra.mxu0 0
        %2271 = vmatprep.subr.bf16.mxu0 0
        %2272 = vmatpush1.bf16.msra.mxu0 0
        %2273 = vmatprep.subr.bf16.mxu0 0
        %2274 = vmatpush1.bf16.msra.mxu0 0
        %2275 = vmatprep.mubr.bf16.mxu0 0
        %2276 = vmatmul.mubr.bf16.gmra.mrb[0].mxu0 %v2238
        %v2277 = vpop.f32.mrb[0].mxu0
        %v2278 = vadd.f32 0.0, %v2277
        %v2279 = vpop.f32.mrb[0].mxu0
        %v2280 = vpop.f32.mrb[0].mxu0
        %v2281 = vpop.f32.mrb[0].mxu0
        %2282 = vdwg.mxu0
        %v2284 = vsel %vm1715, %v2140, 0
        %v2287 = vsel %vm1955, %v2144, 0
        %2289 = vmatprep.subr.bf16.mxu0 0
        %2290 = vmatpush1.bf16.msra.mxu0 %v2287
        %2291 = vmatprep.subr.bf16.mxu0 0
        %2292 = vmatpush1.bf16.msra.mxu0 0
        %2293 = vmatprep.subr.bf16.mxu0 0
        %2294 = vmatpush1.bf16.msra.mxu0 0
        %2295 = vmatprep.subr.bf16.mxu0 0
        %2296 = vmatpush1.bf16.msra.mxu0 0
        %2297 = vmatprep.subr.bf16.mxu0 0
        %2298 = vmatpush1.bf16.msra.mxu0 0
        %2299 = vmatprep.subr.bf16.mxu0 0
        %2300 = vmatpush1.bf16.msra.mxu0 0
        %2301 = vmatprep.subr.bf16.mxu0 0
        %2302 = vmatpush1.bf16.msra.mxu0 0
        %2303 = vmatprep.subr.bf16.mxu0 0
        %2304 = vmatpush1.bf16.msra.mxu0 0
        %2305 = vmatprep.subr.bf16.mxu0 0
        %2306 = vmatpush1.bf16.msra.mxu0 0
        %2307 = vmatprep.subr.bf16.mxu0 0
        %2308 = vmatpush1.bf16.msra.mxu0 0
        %2309 = vmatprep.subr.bf16.mxu0 0
        %2310 = vmatpush1.bf16.msra.mxu0 0
        %2311 = vmatprep.subr.bf16.mxu0 0
        %2312 = vmatpush1.bf16.msra.mxu0 0
        %2313 = vmatprep.subr.bf16.mxu0 0
        %2314 = vmatpush1.bf16.msra.mxu0 0
        %2315 = vmatprep.subr.bf16.mxu0 0
        %2316 = vmatpush1.bf16.msra.mxu0 0
        %2317 = vmatprep.subr.bf16.mxu0 0
        %2318 = vmatpush1.bf16.msra.mxu0 0
        %2319 = vmatprep.subr.bf16.mxu0 0
        %2320 = vmatpush1.bf16.msra.mxu0 0
        %2321 = vmatprep.mubr.bf16.mxu0 0
        %2322 = vmatmul.mubr.bf16.gmra.mrb[0].mxu0 %v2284
        %v2323 = vpop.f32.mrb[0].mxu0
        %v2324 = vadd.f32 0.0, %v2323
        %v2325 = vpop.f32.mrb[0].mxu0
        %v2326 = vpop.f32.mrb[0].mxu0
        %v2327 = vpop.f32.mrb[0].mxu0
        %2328 = vdwg.mxu0
        %v2329 = vadd.f32 %v2186, %v2232
        %v2330 = vadd.f32 %v2329, %v2278
        %v2331 = vadd.f32 %v2330, %v2324
        %v2332 = vadd.f32 %v545, %v2331
        %v2333 = vld [vmem:[%s10] sm:$0x1]
        %v2335 = vlaneseq
        %v2336 = vshrl.u32 %v2335, 7
        %v2337 = vsub.s32 0, %v2336
        %v2338 = vrot.slane %v2333, %v2337
        %v2340 = vadd.f32 %v2332, %v2338
        %v2341 = vmul.f32 %v2340, %v2340
        %v2342 = vsel %vm547, %v2341, 0.0
        %2343 = vadd.xlane.f32.xlu0 %v2342
        %v2344 = vpop.xlane.xlu0 %2343
        %v2345 = vmul.f32 %v2344, %v551
        %v2346 = vadd.f32 %v2345, 1.1920929e-07
        %v2347 = vrsqrt.pop %v2346
        %v2348 = vmul.f32 %v2340, %v2347
        %v2349 = vld [vmem:[%s11 + $0x1] sm:$0x1]
        %v2350 = vlaneseq
        %v2351 = vshrl.u32 %v2350, 7
        %v2352 = vsub.s32 0, %v2351
        %v2353 = vrot.slane %v2349, %v2352
        %v2354 = vmul.f32 %v2348, %v2353
        %v2355 = vpack.c.bf16 %v2354, %v2354
        %v2356 = vld [vmem:[%s12] sm:$0xf]
        %v2357 = vld [vmem:[%s12 + $0x4] sm:$0xf]
        %v2358 = vld [vmem:[%s12 + $0x8] sm:$0xf]
        %v2359 = vld [vmem:[%s12 + $0xc] sm:$0xf]
        %v2360 = vld [vmem:[%s14] sm:$0x1]
        %v2361 = vlaneseq
        %v2362 = vshrl.u32 %v2361, 7
        %v2363 = vsub.s32 0, %v2362
        %v2364 = vrot.slane %v2360, %v2363
        %v2369 = vunpack.c.l.b16 %v2356
        %v2370 = vunpack.c.l.b16 %v2357
        %v2371 = vunpack.c.l.b16 %v2358
        %v2372 = vunpack.c.l.b16 %v2359
        %v2373 = vpack.c.b16 %v2370, %v2369
        %v2374 = vpack.c.b16 %v2372, %v2371
        %v2378 = vsel %vm547, %v2355, 0
        %2380 = vmatprep.subr.bf16.mxu0 0
        %2381 = vmatpush1.bf16.msra.mxu0 %v2373
        %2382 = vmatprep.subr.bf16.mxu0 0
        %2383 = vmatpush1.bf16.msra.mxu0 %v2374
        %2384 = vmatprep.subr.bf16.mxu0 0
        %2385 = vmatpush1.bf16.msra.mxu0 0
        %2386 = vmatprep.subr.bf16.mxu0 0
        %2387 = vmatpush1.bf16.msra.mxu0 0
        %2388 = vmatprep.subr.bf16.mxu0 0
        %2389 = vmatpush1.bf16.msra.mxu0 0
        %2390 = vmatprep.subr.bf16.mxu0 0
        %2391 = vmatpush1.bf16.msra.mxu0 0
        %2392 = vmatprep.subr.bf16.mxu0 0
        %2393 = vmatpush1.bf16.msra.mxu0 0
        %2394 = vmatprep.subr.bf16.mxu0 0
        %2395 = vmatpush1.bf16.msra.mxu0 0
        %2396 = vmatprep.subr.bf16.mxu0 0
        %2397 = vmatpush1.bf16.msra.mxu0 0
        %2398 = vmatprep.subr.bf16.mxu0 0
        %2399 = vmatpush1.bf16.msra.mxu0 0
        %2400 = vmatprep.subr.bf16.mxu0 0
        %2401 = vmatpush1.bf16.msra.mxu0 0
        %2402 = vmatprep.subr.bf16.mxu0 0
        %2403 = vmatpush1.bf16.msra.mxu0 0
        %2404 = vmatprep.subr.bf16.mxu0 0
        %2405 = vmatpush1.bf16.msra.mxu0 0
        %2406 = vmatprep.subr.bf16.mxu0 0
        %2407 = vmatpush1.bf16.msra.mxu0 0
        %2408 = vmatprep.subr.bf16.mxu0 0
        %2409 = vmatpush1.bf16.msra.mxu0 0
        %2410 = vmatprep.subr.bf16.mxu0 0
        %2411 = vmatpush1.bf16.msra.mxu0 0
        %2412 = vmatprep.mubr.bf16.mxu0 0
        %2413 = vmatmul.mubr.bf16.gmra.mrb[0].mxu0 %v2378
        %v2414 = vpop.f32.mrb[0].mxu0
        %v2415 = vadd.f32 %v2364, %v2414
        %v2416 = vpop.f32.mrb[0].mxu0
        %v2417 = vpop.f32.mrb[0].mxu0
        %v2418 = vpop.f32.mrb[0].mxu0
        %2419 = vdwg.mxu0
        %v2420 = vld [vmem:[%s13] sm:$0xf]
        %v2421 = vld [vmem:[%s13 + $0x4] sm:$0xf]
        %v2422 = vld [vmem:[%s13 + $0x8] sm:$0xf]
        %v2423 = vld [vmem:[%s13 + $0xc] sm:$0xf]
        %v2424 = vld [vmem:[%s14 + $0x1] sm:$0x1]
        %v2425 = vlaneseq
        %v2426 = vshrl.u32 %v2425, 7
        %v2427 = vsub.s32 0, %v2426
        %v2428 = vrot.slane %v2424, %v2427
        %v2433 = vunpack.c.l.b16 %v2420
        %v2434 = vunpack.c.l.b16 %v2421
        %v2435 = vunpack.c.l.b16 %v2422
        %v2436 = vunpack.c.l.b16 %v2423
        %v2437 = vpack.c.b16 %v2434, %v2433
        %v2438 = vpack.c.b16 %v2436, %v2435
        %2441 = vmatprep.subr.bf16.mxu0 0
        %2442 = vmatpush1.bf16.msra.mxu0 %v2437
        %2443 = vmatprep.subr.bf16.mxu0 0
        %2444 = vmatpush1.bf16.msra.mxu0 %v2438
        %2445 = vmatprep.subr.bf16.mxu0 0
        %2446 = vmatpush1.bf16.msra.mxu0 0
        %2447 = vmatprep.subr.bf16.mxu0 0
        %2448 = vmatpush1.bf16.msra.mxu0 0
        %2449 = vmatprep.subr.bf16.mxu0 0
        %2450 = vmatpush1.bf16.msra.mxu0 0
        %2451 = vmatprep.subr.bf16.mxu0 0
        %2452 = vmatpush1.bf16.msra.mxu0 0
        %2453 = vmatprep.subr.bf16.mxu0 0
        %2454 = vmatpush1.bf16.msra.mxu0 0
        %2455 = vmatprep.subr.bf16.mxu0 0
        %2456 = vmatpush1.bf16.msra.mxu0 0
        %2457 = vmatprep.subr.bf16.mxu0 0
        %2458 = vmatpush1.bf16.msra.mxu0 0
        %2459 = vmatprep.subr.bf16.mxu0 0
        %2460 = vmatpush1.bf16.msra.mxu0 0
        %2461 = vmatprep.subr.bf16.mxu0 0
        %2462 = vmatpush1.bf16.msra.mxu0 0
        %2463 = vmatprep.subr.bf16.mxu0 0
        %2464 = vmatpush1.bf16.msra.mxu0 0
        %2465 = vmatprep.subr.bf16.mxu0 0
        %2466 = vmatpush1.bf16.msra.mxu0 0
        %2467 = vmatprep.subr.bf16.mxu0 0
        %2468 = vmatpush1.bf16.msra.mxu0 0
        %2469 = vmatprep.subr.bf16.mxu0 0
        %2470 = vmatpush1.bf16.msra.mxu0 0
        %2471 = vmatprep.subr.bf16.mxu0 0
        %2472 = vmatpush1.bf16.msra.mxu0 0
        %2473 = vmatprep.mubr.bf16.mxu0 0
        %2474 = vmatmul.mubr.bf16.gmra.mrb[0].mxu0 %v2378
        %v2475 = vpop.f32.mrb[0].mxu0
        %v2476 = vadd.f32 %v2428, %v2475
        %v2477 = vpop.f32.mrb[0].mxu0
        %v2478 = vpop.f32.mrb[0].mxu0
        %v2479 = vpop.f32.mrb[0].mxu0
        %2480 = vdwg.mxu0
        %v2481 = vxor.u32 %v2415, 2147483648
        %v2482 = vmul.f32 %v2481, 1.442695
        %v2483 = vpow.pop %v2482
        %v2484 = vadd.f32 %v2483, 1.0
        %v2485 = vrcp.pop %v2484
        %v2486 = vmul.f32 1.0, %v2485
        %v2487 = vmul.f32 %v2415, %v2486
        %v2488 = vmul.f32 %v2487, %v2476
        %v2489 = vpack.c.bf16 %v2488, %v2488
        %v2490 = vld [vmem:[%s15] sm:$0xf]
        %v2491 = vld [vmem:[%s15 + $0x4] sm:$0xf]
        %v2492 = vld [vmem:[%s15 + $0x8] sm:$0xf]
        %v2493 = vld [vmem:[%s15 + $0xc] sm:$0xf]
        %v2494 = vld [vmem:[%s15 + $0x10] sm:$0xf]
        %v2495 = vld [vmem:[%s15 + $0x14] sm:$0xf]
        %v2496 = vld [vmem:[%s15 + $0x18] sm:$0xf]
        %v2497 = vld [vmem:[%s15 + $0x1c] sm:$0xf]
        %v2498 = vld [vmem:[%s16] sm:$0x1]
        %v2500 = vlaneseq
        %v2501 = vshrl.u32 %v2500, 7
        %v2502 = vsub.s32 0, %v2501
        %v2503 = vrot.slane %v2498, %v2502
        %v2513 = vunpack.c.l.b16 %v2490
        %v2514 = vunpack.c.l.b16 %v2491
        %v2515 = vunpack.c.l.b16 %v2492
        %v2516 = vunpack.c.l.b16 %v2493
        %v2517 = vunpack.c.l.b16 %v2494
        %v2518 = vunpack.c.l.b16 %v2495
        %v2519 = vunpack.c.l.b16 %v2496
        %v2520 = vunpack.c.l.b16 %v2497
        %v2521 = vpack.c.b16 %v2514, %v2513
        %v2522 = vpack.c.b16 %v2516, %v2515
        %v2523 = vpack.c.b16 %v2518, %v2517
        %v2524 = vpack.c.b16 %v2520, %v2519
        %vm2529 = vcmask 523264
        %v2531 = vsel %vm2529, %v2489, 0
        %2533 = vmatprep.subr.bf16.mxu0 0
        %2534 = vmatpush1.bf16.msra.mxu0 %v2521
        %2535 = vmatprep.subr.bf16.mxu0 0
        %2536 = vmatpush1.bf16.msra.mxu0 %v2522
        %2537 = vmatprep.subr.bf16.mxu0 0
        %2538 = vmatpush1.bf16.msra.mxu0 %v2523
        %2539 = vmatprep.subr.bf16.mxu0 0
        %2540 = vmatpush1.bf16.msra.mxu0 %v2524
        %2541 = vmatprep.subr.bf16.mxu0 0
        %2542 = vmatpush1.bf16.msra.mxu0 0
        %2543 = vmatprep.subr.bf16.mxu0 0
        %2544 = vmatpush1.bf16.msra.mxu0 0
        %2545 = vmatprep.subr.bf16.mxu0 0
        %2546 = vmatpush1.bf16.msra.mxu0 0
        %2547 = vmatprep.subr.bf16.mxu0 0
        %2548 = vmatpush1.bf16.msra.mxu0 0
        %2549 = vmatprep.subr.bf16.mxu0 0
        %2550 = vmatpush1.bf16.msra.mxu0 0
        %2551 = vmatprep.subr.bf16.mxu0 0
        %2552 = vmatpush1.bf16.msra.mxu0 0
        %2553 = vmatprep.subr.bf16.mxu0 0
        %2554 = vmatpush1.bf16.msra.mxu0 0
        %2555 = vmatprep.subr.bf16.mxu0 0
        %2556 = vmatpush1.bf16.msra.mxu0 0
        %2557 = vmatprep.subr.bf16.mxu0 0
        %2558 = vmatpush1.bf16.msra.mxu0 0
        %2559 = vmatprep.subr.bf16.mxu0 0
        %2560 = vmatpush1.bf16.msra.mxu0 0
        %2561 = vmatprep.subr.bf16.mxu0 0
        %2562 = vmatpush1.bf16.msra.mxu0 0
        %2563 = vmatprep.subr.bf16.mxu0 0
        %2564 = vmatpush1.bf16.msra.mxu0 0
        %2565 = vmatprep.mubr.bf16.mxu0 0
        %2566 = vmatmul.mubr.bf16.gmra.mrb[0].mxu0 %v2531
        %v2567 = vpop.f32.mrb[0].mxu0
        %v2568 = vadd.f32 %v2503, %v2567
        %v2569 = vpop.f32.mrb[0].mxu0
        %v2570 = vpop.f32.mrb[0].mxu0
        %v2571 = vpop.f32.mrb[0].mxu0
        %2572 = vdwg.mxu0
        %v2573 = vadd.f32 %v2340, %v2568
        %2574 = vst.msk [vmem:[%s539] sm:$0xff] %vm547, %v2573
        %s2575 = sand.u32 %s401, 1
        %s2576 = scalar_lea.sflag [#allocation3], %s2575
        %s2577 = sand.u32 %s401, 1
        %s2578 = smul.addr %s2577, 8
        %s2579 = scalar_lea.vmem [#allocation2], %s2578
        // Predicated region
        $region89: #{encoder_layer.1} parent=87 // pred_check
          %p2580 = pneg %p411
        $region90: #{encoder_layer.1} parent=87 // pred_check_branch
          %2582 = sbr.rel (%p2580) target = $region92
        $region91: #{encoder_layer.1} parent=87 // pred_region
          %s2584 = ssub.s32 128, 128
          %2585 = vsyncadd %s2576, %s2584
          %s2586 = smul.addr %s31, 128
          %s2587 = scalar_lea.hbm %s17, %s2586
          %s2589 = sshll.u32 %s2579, 4
          %s2590 = int_to_ptr.vmem [resolvable:$true] %s2589
          %2592 = dma.vmem_to_hbm [thread:$0]  %s2590, 128, %s2587, %s2576
        $region92: #{encoder_layer.1} parent=87 // pred_fallthru
          _
      $region88: #{encoder_layer.1} parent=5 // pred_fallthru
        _
      %p2593 = scmp.le.s32.totalorder 2, %s26
      // Predicated region
      $region93: #{encoder_layer.1} parent=5 // pred_check
        %p2594 = pneg %p2593
      $region94: #{encoder_layer.1} parent=5 // pred_check_branch
        %2596 = sbr.rel (%p2594) target = $region96
      $region95: #{encoder_layer.1} parent=5 // pred_region
        %s2597 = ssub.s32 %s26, 2
        // Predicated region
        $region97: #{encoder_layer.1} parent=95 // pred_check
          %p2598 = pneg %p417
        $region98: #{encoder_layer.1} parent=95 // pred_check_branch
          %2600 = sbr.rel (%p2598) target = $region100
        $region99: #{encoder_layer.1} parent=95 // pred_region
          %s2601 = sand.u32 %s402, 1
          %s2602 = scalar_lea.sflag [#allocation3], %s2601
          %s2603 = sand.u32 %s402, 1
          %s2604 = smul.addr %s2603, 8
          %s2605 = scalar_lea.vmem [#allocation2], %s2604
          %2606 = dma.done %s2602, 128
        $region100: #{encoder_layer.1} parent=95 // pred_fallthru
          _
      $region96: #{encoder_layer.1} parent=5 // pred_fallthru
        _
    $region6: #{encoder_layer.1} parent=1 // loop_footer
      %s30 = sadd.s32 1, %s26
    $region7: #{encoder_layer.1} parent=1 // loop_footer_branch
      %25 = sbr.rel target = $region3
    $region8: #{encoder_layer.1} parent=1 // loop_exit
      _
    %2607 = vsyncpa [#allocation3], 1
    %s2608 = scalar_lea.sflag [#allocation3], 1
    %2609 = vsyncpa %s2608, 1

</llo_original>
